<compile_context>
chip_gen: v7x
topology: tpu7x:2x2x1
jax: 0.10.0
libtpu: 0.0.40
codegen_flags: <defaults>
</compile_context>

<pallas_src>
import functools

import numpy as np
import jax
import jax.numpy as jnp
from jax.experimental import pallas as pl
from jax.experimental.pallas import tpu as pltpu


_TAPS = ((0, 0), (0, 1), (1, 0), (1, 1))


# ----------------------------------------------------------------------------
# Fused kernel: DownBlock x2 + cls conv + embed projection + cond projection
# ----------------------------------------------------------------------------
def _fused_kernel(xs_ref, emb_ref,
                  w1_ref, s1_ref, b1_ref,
                  w2_ref, s2_ref, b2_ref,
                  wcls_ref, pw_ref, pb_ref,
                  o_ref, slab_ref, *, bt, neg_slope, inv_sqrt_cmap):
    f32, bf16 = jnp.float32, jnp.bfloat16

    def leaky(v):
        return jnp.maximum(v, neg_slope * v)

    # --- DownBlock 1 --------------------------------------------------------
    # Input is a space-to-depth(4) slab (bt, 9, 9, 64).  A single 2x2 stride-1
    # window (4 contiguous tap slices, concatenated to K=256) computes all four
    # conv1 output phases at once (N = 4 phases * 16 ch = 64).
    p1 = jnp.concatenate(
        [xs_ref[:, dh:dh + 8, dw:dw + 8, :] for dh, dw in _TAPS],
        axis=-1).reshape(bt * 64, 256)                             # bf16
    a1 = jnp.dot(p1, w1_ref[...], preferred_element_type=f32)      # (bt*64, 64)
    y1 = leaky(a1 * s1_ref[...] + b1_ref[...]).astype(bf16)
    y1 = y1.reshape(bt, 8, 8, 64)

    # Scatter the 4 output phases into a zero-padded space-to-depth(2) slab:
    # this slab IS DownBlock2's (pad=1) input, so no selection matmul needed.
    slab_ref[...] = jnp.zeros(slab_ref.shape, slab_ref.dtype)
    for p, (qh, qw) in enumerate(_TAPS):
        slab_ref[:, p:p + 1, qh:qh + 8, qw:qw + 8, :] = (
            y1[:, :, :, p * 16:(p + 1) * 16][:, None])

    # --- DownBlock 2 (one K=256 dot) ------------------------------------------
    p2 = jnp.concatenate(
        [slab_ref[:, p:p + 1, dh:dh + 8, dw:dw + 8, :]
         for dh, dw in _TAPS for p in range(4)],
        axis=-1).reshape(bt * 64, 256)                             # bf16
    a2 = jnp.dot(p2, w2_ref[...], preferred_element_type=f32)      # (bt*64, 16)
    y2 = leaky(a2 * s2_ref[...] + b2_ref[...]).astype(bf16)
    # zero-pad W from 8 -> 12 so the cls conv can run dense over 8 output cols
    h2 = jnp.concatenate(
        [y2.reshape(bt, 8, 8, 16), jnp.zeros((bt, 8, 4, 16), bf16)],
        axis=2)                                                    # (bt, 8, 12, 16)

    # --- cls conv 4x4 s1 p0 (dense over 8 output cols; cols 5..7 are slack) ---
    p3 = jnp.concatenate(
        [h2[:, kh:kh + 5, kw:kw + 8, :]
         for kh in range(4) for kw in range(4)],
        axis=-1).reshape(bt * 40, 256)                             # bf16
    a3 = jnp.dot(p3, wcls_ref[...], preferred_element_type=f32)    # (bt*40, 32)

    # --- embedding projection + conditional projection ------------------------
    emb = emb_ref[...].reshape(bt, emb_ref.shape[-1])
    cmap = leaky(jnp.dot(emb, pw_ref[...],
                         preferred_element_type=f32) + pb_ref[...])  # (bt, 32)
    res = jnp.sum(a3.reshape(bt, 40, a3.shape[-1]) * cmap[:, None, :],
                  axis=-1)                                          # (bt, 40)
    o_ref[...] = (res * inv_sqrt_cmap).reshape(bt, 1, 40).astype(o_ref.dtype)


# ----------------------------------------------------------------------------
# Weight re-layout (built once at init, with numpy)
# ----------------------------------------------------------------------------
def _spectral_normalize_np(w):
    # exact spectral norm (deterministic stand-in for torch power iteration)
    sigma = np.linalg.svd(w.reshape(w.shape[0], -1), compute_uv=False)[0]
    return (w / sigma).astype(np.float32)


def _build_w1_big(w_hwio, nc):
    # phase-packed 2x2 conv over the space-to-depth(4) input slab:
    #   K = tap(2x2 block window)*64 + (a*4+b)*nc + ci ; N = phase*16 + cout
    cout = w_hwio.shape[-1]
    big = np.zeros((4 * 16 * nc, 4 * cout), np.float32)
    for qh in range(2):
        for qw in range(2):
            n0 = (2 * qh + qw) * cout
            for kh in range(4):
                for kw in range(4):
                    dh, a = divmod(2 * qh + kh, 4)
                    dw, b = divmod(2 * qw + kw, 4)
                    k0 = (2 * dh + dw) * (16 * nc) + (a * 4 + b) * nc
                    big[k0:k0 + nc, n0:n0 + cout] = w_hwio[kh, kw]
    return big


def _build_w2_big(w_hwio, cin):
    # 2x2 conv over the phase-packed, zero-padded space-to-depth(2) slab:
    #   K = tap*64 + phase*cin + c
    cout = w_hwio.shape[-1]
    big = np.zeros((4 * 4 * cin, cout), np.float32)
    for dh in range(2):
        for dw in range(2):
            for p in range(4):
                qh1, qw1 = p >> 1, p & 1
                kh2 = 2 * dh - qh1 + 1
                kw2 = 2 * dw - qw1 + 1
                k0 = (2 * dh + dw) * (4 * cin) + p * cin
                big[k0:k0 + cin, :] = w_hwio[kh2, kw2]
    return big


# ----------------------------------------------------------------------------
# Deterministic synthetic parameters (no checkpoint)
# ----------------------------------------------------------------------------
def init_params(key, nc, ndf, start_sz, end_sz, c_dim, cmap_dim, embedding_dim):
    channel_dict = {4: 512, 8: 512, 16: 256, 32: 128, 64: 64, 128: 64,
                    256: 32, 512: 16, 1024: 8}
    nfc = {k: (ndf if ndf is not None else v) for k, v in channel_dict.items()}
    if nc is not None:
        nfc[start_sz] = nc
    keys = iter(jax.random.split(key, 64))
    eps = 1e-5

    blocks = []
    sz = start_sz
    while sz > end_sz:
        cin, cout = nfc[sz], nfc[sz // 2]
        w = np.asarray(jax.random.normal(next(keys), (cout, cin, 4, 4),
                                         jnp.float32)) * 0.1
        w = _spectral_normalize_np(w)
        b_conv = 0.05 * np.asarray(jax.random.normal(next(keys), (cout,), jnp.float32))
        gamma = 1.0 + 0.1 * np.asarray(jax.random.normal(next(keys), (cout,), jnp.float32))
        beta = 0.05 * np.asarray(jax.random.normal(next(keys), (cout,), jnp.float32))
        run_mean = 0.05 * np.asarray(jax.random.normal(next(keys), (cout,), jnp.float32))
        run_var = 1.0 + 0.1 * np.abs(
            np.asarray(jax.random.normal(next(keys), (cout,), jnp.float32)))
        s = (gamma / np.sqrt(run_var + eps)).astype(np.float32)   # eval-mode BN fold
        b = ((b_conv - run_mean) * s + beta).astype(np.float32)
        w_hwio = np.transpose(w, (2, 3, 1, 0))                    # (4,4,cin,cout)
        blocks.append(dict(w_hwio=jnp.asarray(w_hwio),
                           scale=jnp.asarray(s), bias=jnp.asarray(b)))
        sz //= 2

    cls_w = _spectral_normalize_np(
        np.asarray(jax.random.normal(next(keys), (cmap_dim, nfc[end_sz], 4, 4),
                                     jnp.float32)) * 0.1)
    cls_w_hwio = np.transpose(cls_w, (2, 3, 1, 0))                # (4,4,16,32)
    embed_w = jax.random.normal(next(keys), (c_dim, embedding_dim), jnp.float32)
    proj_w = np.asarray(jax.random.normal(next(keys), (cmap_dim, embedding_dim),
                                          jnp.float32)) / np.sqrt(embedding_dim)
    proj_b = 0.05 * np.asarray(jax.random.normal(next(keys), (cmap_dim,), jnp.float32))

    assert len(blocks) == 2 and nc == 4 and nfc[end_sz] == 16, \
        "fused kernel geometry is specialized to nc=4, ndf=16, 32->8"
    # TODO(synk): re-derive the space-to-depth geometry for other configurations.

    b1, b2 = blocks
    kernel = dict(
        w1=jnp.asarray(_build_w1_big(np.asarray(b1["w_hwio"]), nc), jnp.bfloat16),
        s1=jnp.asarray(np.tile(np.asarray(b1["scale"]), 4)[None, :]),
        bb1=jnp.asarray(np.tile(np.asarray(b1["bias"]), 4)[None, :]),
        w2=jnp.asarray(_build_w2_big(np.asarray(b2["w_hwio"]), 16), jnp.bfloat16),
        s2=jnp.asarray(np.asarray(b2["scale"])[None, :]),
        bb2=jnp.asarray(np.asarray(b2["bias"])[None, :]),
        wcls=jnp.asarray(cls_w_hwio.reshape(4 * 4 * nfc[end_sz], cmap_dim),
                         jnp.bfloat16),
    )

    return dict(
        blocks=blocks,
        cls_w_hwio=jnp.asarray(cls_w_hwio),
        embed_w=embed_w,
        proj_w=jnp.asarray(np.transpose(proj_w).astype(np.float32)),  # (emb, cmap)
        proj_b=jnp.asarray(proj_b[None, :].astype(np.float32)),       # (1, cmap)
        kernel=kernel,
    )


# ----------------------------------------------------------------------------
# Forward pass (single fused pallas_call)
# ----------------------------------------------------------------------------
def _pick_block_batch(B):
    # Batch several items per grid step (amortize per-step overhead / MXU fill)
    # while keeping the grid length >= 2 so both v7x TensorCores stay busy.
    target = max(1, min(8, B // 2))
    for bt in range(target, 0, -1):
        if B % bt == 0:
            return bt
    return 1


@jax.jit
def single_disc_cond_forward(params, x_nchw, c_onehot):
    kp = params["kernel"]
    B, nc = x_nchw.shape[0], x_nchw.shape[1]
    cmap_dim = params["proj_b"].shape[1]
    bt = _pick_block_batch(B)
    grid = B // bt

    # NCHW -> NHWC, pad (conv p=1 plus slack so H,W are multiples of 4), then
    # space-to-depth(4): (B,36,36,nc) -> (B,9,9,16*nc), channel order (a,b,ci).
    # All stride-2 handling is folded into this layout and into the weight
    # matrices, so the kernel only does contiguous slices and K=256 matmuls.
    x = jnp.transpose(x_nchw, (0, 2, 3, 1))
    canvas = jnp.pad(x, ((0, 0), (1, 3), (1, 3), (0, 0)))          # (B,36,36,nc)
    xs = canvas.reshape(B, 9, 4, 9, 4, nc).transpose(0, 1, 3, 2, 4, 5)
    xs = xs.reshape(B, 9, 9, 16 * nc).astype(jnp.bfloat16)

    idx = jnp.argmax(c_onehot, axis=1)
    emb = jnp.take(params["embed_w"], idx, axis=0).reshape(B, 1, -1)

    def const_spec(a):
        zeros = (0,) * a.ndim
        return pl.BlockSpec(a.shape, lambda g, _z=zeros: _z)

    kernel = functools.partial(_fused_kernel, bt=bt, neg_slope=0.2,
                               inv_sqrt_cmap=float(1.0 / np.sqrt(cmap_dim)))
    out = pl.pallas_call(
        kernel,
        out_shape=jax.ShapeDtypeStruct((B, 1, 40), jnp.float32),
        grid_spec=pltpu.PrefetchScalarGridSpec(
            num_scalar_prefetch=0,
            grid=(grid,),
            in_specs=[
                pl.BlockSpec((bt, 9, 9, 16 * nc), lambda g: (g, 0, 0, 0)),
                pl.BlockSpec((bt, 1, emb.shape[-1]), lambda g: (g, 0, 0)),
                const_spec(kp["w1"]), const_spec(kp["s1"]), const_spec(kp["bb1"]),
                const_spec(kp["w2"]), const_spec(kp["s2"]), const_spec(kp["bb2"]),
                const_spec(kp["wcls"]),
                const_spec(params["proj_w"]), const_spec(params["proj_b"]),
            ],
            out_specs=pl.BlockSpec((bt, 1, 40), lambda g: (g, 0, 0)),
            scratch_shapes=[pltpu.VMEM((bt, 4, 9, 9, 16), jnp.bfloat16)],
        ),
        compiler_params=pltpu.CompilerParams(
            dimension_semantics=("parallel",)),
    )(xs, emb, kp["w1"], kp["s1"], kp["bb1"],
      kp["w2"], kp["s2"], kp["bb2"], kp["wcls"],
      params["proj_w"], params["proj_b"])

    res = out[:, 0, :].reshape(B, 5, 8)[:, :, :5]                  # drop slack cols
    return res[:, None, :, :]                                      # (B, 1, 5, 5)


# ----------------------------------------------------------------------------
# Pure-JAX reference (sanity check; loose tolerance covers bf16 MXU operands)
# ----------------------------------------------------------------------------
def _reference_forward(params, x_nchw, c_onehot):
    leaky = lambda v: jnp.where(v >= 0.0, v, 0.2 * v)
    h = jnp.transpose(x_nchw, (0, 2, 3, 1))
    for blk in params["blocks"]:
        h = jax.lax.conv_general_dilated(
            h, blk["w_hwio"], (2, 2), [(1, 1), (1, 1)],
            dimension_numbers=("NHWC", "HWIO", "NHWC"),
            precision=jax.lax.Precision.HIGHEST)
        h = leaky(h * blk["scale"].reshape(1, 1, 1, -1)
                  + blk["bias"].reshape(1, 1, 1, -1))
    out = jax.lax.conv_general_dilated(
        h, params["cls_w_hwio"], (1, 1), [(0, 0), (0, 0)],
        dimension_numbers=("NHWC", "HWIO", "NHWC"),
        precision=jax.lax.Precision.HIGHEST)                       # (B,5,5,32)

    idx = jnp.argmax(c_onehot, axis=1)
    emb = jnp.take(params["embed_w"], idx, axis=0)
    cmap = leaky(jnp.dot(emb, params["proj_w"],
                         precision=jax.lax.Precision.HIGHEST) + params["proj_b"])
    res = jnp.sum(out * cmap[:, None, None, :], axis=-1, keepdims=True)
    res = res / np.sqrt(params["proj_b"].shape[1])
    return jnp.transpose(res, (0, 3, 1, 2))                        # (B,1,5,5)


# ----------------------------------------------------------------------------
if __name__ == "__main__":
    cfg = dict(nc=4, ndf=16, start_sz=32, end_sz=8,
               c_dim=16, cmap_dim=32, embedding_dim=32)
    key = jax.random.PRNGKey(0)
    kp, kx, kc = jax.random.split(key, 3)

    params = init_params(kp, **cfg)

    # B=2 (bt=1, grid=2) and B=8 (bt=4, grid=2) exercise both code paths.
    for B in (2, 8):
        kxb, kcb = jax.random.split(jax.random.fold_in(kx, B))
        x = jax.random.normal(
            kxb, (B, cfg["nc"], cfg["start_sz"], cfg["start_sz"]), jnp.float32)
        labels = jax.random.randint(kcb, (B,), 0, cfg["c_dim"])
        c = jax.nn.one_hot(labels, cfg["c_dim"], dtype=jnp.float32)

        out = jax.block_until_ready(single_disc_cond_forward(params, x, c))
        assert out.shape == (B, 1, 5, 5), out.shape
        assert out.dtype == jnp.float32

        ref = jax.block_until_ready(_reference_forward(params, x, c))
        np.testing.assert_allclose(np.asarray(out), np.asarray(ref),
                                   rtol=5e-2, atol=5e-2)

    print("KERNEL_OK")
</pallas_src>

<mosaic_0001>
module attributes {stable_mosaic.version = 11 : i64} {
  func.func @_fused_kernel(%arg0: i32, %arg1: memref<1x9x9x64xbf16, #tpu.memory_space<vmem>>, %arg2: memref<1x1x32xf32, #tpu.memory_space<vmem>>, %arg3: memref<256x64xbf16, #tpu.memory_space<vmem>>, %arg4: memref<1x64xf32, #tpu.memory_space<vmem>>, %arg5: memref<1x64xf32, #tpu.memory_space<vmem>>, %arg6: memref<256x16xbf16, #tpu.memory_space<vmem>>, %arg7: memref<1x16xf32, #tpu.memory_space<vmem>>, %arg8: memref<1x16xf32, #tpu.memory_space<vmem>>, %arg9: memref<256x32xbf16, #tpu.memory_space<vmem>>, %arg10: memref<32x32xf32, #tpu.memory_space<vmem>>, %arg11: memref<1x32xf32, #tpu.memory_space<vmem>>, %arg12: memref<1x1x40xf32, #tpu.memory_space<vmem>>, %arg13: memref<1x4x9x9x16xbf16, #tpu.memory_space<vmem>>) attributes {dimension_semantics = [#tpu.dimension_semantics<parallel>], iteration_bounds = array<i64: 2>, scalar_prefetch = 0 : i64, scratch_operands = 1 : i64, tpu.core_type = #tpu.core_type<tc>, window_params = [{transform_indices = @transform_0, window_bounds = array<i64: 1, 9, 9, 64>}, {transform_indices = @transform_1, window_bounds = array<i64: 1, 1, 32>}, {pipeline_mode = #tpu.pipeline_mode<synchronous>, transform_indices = @transform_2, window_bounds = array<i64: 256, 64>}, {pipeline_mode = #tpu.pipeline_mode<synchronous>, transform_indices = @transform_3, window_bounds = array<i64: 1, 64>}, {pipeline_mode = #tpu.pipeline_mode<synchronous>, transform_indices = @transform_4, window_bounds = array<i64: 1, 64>}, {pipeline_mode = #tpu.pipeline_mode<synchronous>, transform_indices = @transform_5, window_bounds = array<i64: 256, 16>}, {pipeline_mode = #tpu.pipeline_mode<synchronous>, transform_indices = @transform_6, window_bounds = array<i64: 1, 16>}, {pipeline_mode = #tpu.pipeline_mode<synchronous>, transform_indices = @transform_7, window_bounds = array<i64: 1, 16>}, {pipeline_mode = #tpu.pipeline_mode<synchronous>, transform_indices = @transform_8, window_bounds = array<i64: 256, 32>}, {pipeline_mode = #tpu.pipeline_mode<synchronous>, transform_indices = @transform_9, window_bounds = array<i64: 32, 32>}, {pipeline_mode = #tpu.pipeline_mode<synchronous>, transform_indices = @transform_10, window_bounds = array<i64: 1, 32>}, {transform_indices = @transform_11, window_bounds = array<i64: 1, 1, 40>}]} {
    %c0 = arith.constant 0 : index
    %c0_0 = arith.constant 0 : index
    %c0_1 = arith.constant 0 : index
    %c0_2 = arith.constant 0 : index
    %0 = vector.load %arg1[%c0, %c0_0, %c0_1, %c0_2] : memref<1x9x9x64xbf16, #tpu.memory_space<vmem>>, vector<1x8x8x64xbf16>
    %c0_3 = arith.constant 0 : index
    %c0_4 = arith.constant 0 : index
    %c1 = arith.constant 1 : index
    %c0_5 = arith.constant 0 : index
    %1 = vector.load %arg1[%c0_3, %c0_4, %c1, %c0_5] : memref<1x9x9x64xbf16, #tpu.memory_space<vmem>>, vector<1x8x8x64xbf16>
    %c0_6 = arith.constant 0 : index
    %c1_7 = arith.constant 1 : index
    %c0_8 = arith.constant 0 : index
    %c0_9 = arith.constant 0 : index
    %2 = vector.load %arg1[%c0_6, %c1_7, %c0_8, %c0_9] : memref<1x9x9x64xbf16, #tpu.memory_space<vmem>>, vector<1x8x8x64xbf16>
    %c0_10 = arith.constant 0 : index
    %c1_11 = arith.constant 1 : index
    %c1_12 = arith.constant 1 : index
    %c0_13 = arith.constant 0 : index
    %3 = vector.load %arg1[%c0_10, %c1_11, %c1_12, %c0_13] : memref<1x9x9x64xbf16, #tpu.memory_space<vmem>>, vector<1x8x8x64xbf16>
    %4 = tpu.concatenate %0, %1, %2, %3 in 3 : vector<1x8x8x64xbf16>, vector<1x8x8x64xbf16>, vector<1x8x8x64xbf16>, vector<1x8x8x64xbf16> -> vector<1x8x8x256xbf16>
    %5 = vector.shape_cast %4 : vector<1x8x8x256xbf16> to vector<64x256xbf16>
    %c0_14 = arith.constant 0 : index
    %c0_15 = arith.constant 0 : index
    %6 = vector.load %arg3[%c0_14, %c0_15] : memref<256x64xbf16, #tpu.memory_space<vmem>>, vector<256x64xbf16>
    %cst = arith.constant dense<0.000000e+00> : vector<64x64xf32>
    %7 = tpu.matmul %5, %6, %cst {dimension_numbers = #tpu.dot_dimension_numbers<[1], [0], [0], [1], [0, 0, 1, 1], [], []>} : vector<64x256xbf16>, vector<256x64xbf16>, vector<64x64xf32> -> vector<64x64xf32>
    %c0_16 = arith.constant 0 : index
    %c0_17 = arith.constant 0 : index
    %8 = vector.load %arg4[%c0_16, %c0_17] : memref<1x64xf32, #tpu.memory_space<vmem>>, vector<1x64xf32>
    %9 = vector.broadcast %8 : vector<1x64xf32> to vector<64x64xf32>
    %10 = arith.mulf %7, %9 : vector<64x64xf32>
    %c0_18 = arith.constant 0 : index
    %c0_19 = arith.constant 0 : index
    %11 = vector.load %arg5[%c0_18, %c0_19] : memref<1x64xf32, #tpu.memory_space<vmem>>, vector<1x64xf32>
    %12 = vector.broadcast %11 : vector<1x64xf32> to vector<64x64xf32>
    %13 = arith.addf %10, %12 : vector<64x64xf32>
    %cst_20 = arith.constant 2.000000e-01 : f32
    %14 = vector.broadcast %cst_20 : f32 to vector<64x64xf32>
    %15 = arith.mulf %14, %13 : vector<64x64xf32>
    %16 = arith.maximumf %13, %15 : vector<64x64xf32>
    %17 = arith.truncf %16 : vector<64x64xf32> to vector<64x64xbf16>
    %18 = vector.shape_cast %17 : vector<64x64xbf16> to vector<1x8x8x64xbf16>
    %cst_21 = arith.constant 0.000000e+00 : bf16
    %19 = vector.broadcast %cst_21 : bf16 to vector<1x4x9x9x16xbf16>
    %c0_22 = arith.constant 0 : index
    %c0_23 = arith.constant 0 : index
    %c0_24 = arith.constant 0 : index
    %c0_25 = arith.constant 0 : index
    %c0_26 = arith.constant 0 : index
    %20 = vector.load %arg13[%c0_22, %c0_23, %c0_24, %c0_25, %c0_26] : memref<1x4x9x9x16xbf16, #tpu.memory_space<vmem>>, vector<1x4x9x9x16xbf16>
    tpu.vector_store %arg13[%c0_22, %c0_23, %c0_24, %c0_25, %c0_26], %19 {strides = array<i32>} : memref<1x4x9x9x16xbf16, #tpu.memory_space<vmem>>, vector<1x4x9x9x16xbf16>,
    %21 = vector.extract_strided_slice %18 {offsets = [0, 0, 0, 0], sizes = [1, 8, 8, 16], strides = [1, 1, 1, 1]} : vector<1x8x8x64xbf16> to vector<1x8x8x16xbf16>
    %22 = vector.shape_cast %21 : vector<1x8x8x16xbf16> to vector<1x1x8x8x16xbf16>
    %c0_27 = arith.constant 0 : index
    %c0_28 = arith.constant 0 : index
    %c0_29 = arith.constant 0 : index
    %c0_30 = arith.constant 0 : index
    %c0_31 = arith.constant 0 : index
    %23 = vector.load %arg13[%c0_27, %c0_28, %c0_29, %c0_30, %c0_31] : memref<1x4x9x9x16xbf16, #tpu.memory_space<vmem>>, vector<1x1x8x8x16xbf16>
    tpu.vector_store %arg13[%c0_27, %c0_28, %c0_29, %c0_30, %c0_31], %22 {strides = array<i32>} : memref<1x4x9x9x16xbf16, #tpu.memory_space<vmem>>, vector<1x1x8x8x16xbf16>,
    %24 = vector.extract_strided_slice %18 {offsets = [0, 0, 0, 16], sizes = [1, 8, 8, 16], strides = [1, 1, 1, 1]} : vector<1x8x8x64xbf16> to vector<1x8x8x16xbf16>
    %25 = vector.shape_cast %24 : vector<1x8x8x16xbf16> to vector<1x1x8x8x16xbf16>
    %c0_32 = arith.constant 0 : index
    %c1_33 = arith.constant 1 : index
    %c0_34 = arith.constant 0 : index
    %c1_35 = arith.constant 1 : index
    %c0_36 = arith.constant 0 : index
    %26 = vector.load %arg13[%c0_32, %c1_33, %c0_34, %c1_35, %c0_36] : memref<1x4x9x9x16xbf16, #tpu.memory_space<vmem>>, vector<1x1x8x8x16xbf16>
    tpu.vector_store %arg13[%c0_32, %c1_33, %c0_34, %c1_35, %c0_36], %25 {strides = array<i32>} : memref<1x4x9x9x16xbf16, #tpu.memory_space<vmem>>, vector<1x1x8x8x16xbf16>,
    %27 = vector.extract_strided_slice %18 {offsets = [0, 0, 0, 32], sizes = [1, 8, 8, 16], strides = [1, 1, 1, 1]} : vector<1x8x8x64xbf16> to vector<1x8x8x16xbf16>
    %28 = vector.shape_cast %27 : vector<1x8x8x16xbf16> to vector<1x1x8x8x16xbf16>
    %c0_37 = arith.constant 0 : index
    %c2 = arith.constant 2 : index
    %c1_38 = arith.constant 1 : index
    %c0_39 = arith.constant 0 : index
    %c0_40 = arith.constant 0 : index
    %29 = vector.load %arg13[%c0_37, %c2, %c1_38, %c0_39, %c0_40] : memref<1x4x9x9x16xbf16, #tpu.memory_space<vmem>>, vector<1x1x8x8x16xbf16>
    tpu.vector_store %arg13[%c0_37, %c2, %c1_38, %c0_39, %c0_40], %28 {strides = array<i32>} : memref<1x4x9x9x16xbf16, #tpu.memory_space<vmem>>, vector<1x1x8x8x16xbf16>,
    %30 = vector.extract_strided_slice %18 {offsets = [0, 0, 0, 48], sizes = [1, 8, 8, 16], strides = [1, 1, 1, 1]} : vector<1x8x8x64xbf16> to vector<1x8x8x16xbf16>
    %31 = vector.shape_cast %30 : vector<1x8x8x16xbf16> to vector<1x1x8x8x16xbf16>
    %c0_41 = arith.constant 0 : index
    %c3 = arith.constant 3 : index
    %c1_42 = arith.constant 1 : index
    %c1_43 = arith.constant 1 : index
    %c0_44 = arith.constant 0 : index
    %32 = vector.load %arg13[%c0_41, %c3, %c1_42, %c1_43, %c0_44] : memref<1x4x9x9x16xbf16, #tpu.memory_space<vmem>>, vector<1x1x8x8x16xbf16>
    tpu.vector_store %arg13[%c0_41, %c3, %c1_42, %c1_43, %c0_44], %31 {strides = array<i32>} : memref<1x4x9x9x16xbf16, #tpu.memory_space<vmem>>, vector<1x1x8x8x16xbf16>,
    %c0_45 = arith.constant 0 : index
    %c0_46 = arith.constant 0 : index
    %c0_47 = arith.constant 0 : index
    %c0_48 = arith.constant 0 : index
    %c0_49 = arith.constant 0 : index
    %33 = vector.load %arg13[%c0_45, %c0_46, %c0_47, %c0_48, %c0_49] : memref<1x4x9x9x16xbf16, #tpu.memory_space<vmem>>, vector<1x1x8x8x16xbf16>
    %c0_50 = arith.constant 0 : index
    %c1_51 = arith.constant 1 : index
    %c0_52 = arith.constant 0 : index
    %c0_53 = arith.constant 0 : index
    %c0_54 = arith.constant 0 : index
    %34 = vector.load %arg13[%c0_50, %c1_51, %c0_52, %c0_53, %c0_54] : memref<1x4x9x9x16xbf16, #tpu.memory_space<vmem>>, vector<1x1x8x8x16xbf16>
    %c0_55 = arith.constant 0 : index
    %c2_56 = arith.constant 2 : index
    %c0_57 = arith.constant 0 : index
    %c0_58 = arith.constant 0 : index
    %c0_59 = arith.constant 0 : index
    %35 = vector.load %arg13[%c0_55, %c2_56, %c0_57, %c0_58, %c0_59] : memref<1x4x9x9x16xbf16, #tpu.memory_space<vmem>>, vector<1x1x8x8x16xbf16>
    %c0_60 = arith.constant 0 : index
    %c3_61 = arith.constant 3 : index
    %c0_62 = arith.constant 0 : index
    %c0_63 = arith.constant 0 : index
    %c0_64 = arith.constant 0 : index
    %36 = vector.load %arg13[%c0_60, %c3_61, %c0_62, %c0_63, %c0_64] : memref<1x4x9x9x16xbf16, #tpu.memory_space<vmem>>, vector<1x1x8x8x16xbf16>
    %c0_65 = arith.constant 0 : index
    %c0_66 = arith.constant 0 : index
    %c0_67 = arith.constant 0 : index
    %c1_68 = arith.constant 1 : index
    %c0_69 = arith.constant 0 : index
    %37 = vector.load %arg13[%c0_65, %c0_66, %c0_67, %c1_68, %c0_69] : memref<1x4x9x9x16xbf16, #tpu.memory_space<vmem>>, vector<1x1x8x8x16xbf16>
    %c0_70 = arith.constant 0 : index
    %c1_71 = arith.constant 1 : index
    %c0_72 = arith.constant 0 : index
    %c1_73 = arith.constant 1 : index
    %c0_74 = arith.constant 0 : index
    %38 = vector.load %arg13[%c0_70, %c1_71, %c0_72, %c1_73, %c0_74] : memref<1x4x9x9x16xbf16, #tpu.memory_space<vmem>>, vector<1x1x8x8x16xbf16>
    %c0_75 = arith.constant 0 : index
    %c2_76 = arith.constant 2 : index
    %c0_77 = arith.constant 0 : index
    %c1_78 = arith.constant 1 : index
    %c0_79 = arith.constant 0 : index
    %39 = vector.load %arg13[%c0_75, %c2_76, %c0_77, %c1_78, %c0_79] : memref<1x4x9x9x16xbf16, #tpu.memory_space<vmem>>, vector<1x1x8x8x16xbf16>
    %c0_80 = arith.constant 0 : index
    %c3_81 = arith.constant 3 : index
    %c0_82 = arith.constant 0 : index
    %c1_83 = arith.constant 1 : index
    %c0_84 = arith.constant 0 : index
    %40 = vector.load %arg13[%c0_80, %c3_81, %c0_82, %c1_83, %c0_84] : memref<1x4x9x9x16xbf16, #tpu.memory_space<vmem>>, vector<1x1x8x8x16xbf16>
    %c0_85 = arith.constant 0 : index
    %c0_86 = arith.constant 0 : index
    %c1_87 = arith.constant 1 : index
    %c0_88 = arith.constant 0 : index
    %c0_89 = arith.constant 0 : index
    %41 = vector.load %arg13[%c0_85, %c0_86, %c1_87, %c0_88, %c0_89] : memref<1x4x9x9x16xbf16, #tpu.memory_space<vmem>>, vector<1x1x8x8x16xbf16>
    %c0_90 = arith.constant 0 : index
    %c1_91 = arith.constant 1 : index
    %c1_92 = arith.constant 1 : index
    %c0_93 = arith.constant 0 : index
    %c0_94 = arith.constant 0 : index
    %42 = vector.load %arg13[%c0_90, %c1_91, %c1_92, %c0_93, %c0_94] : memref<1x4x9x9x16xbf16, #tpu.memory_space<vmem>>, vector<1x1x8x8x16xbf16>
    %c0_95 = arith.constant 0 : index
    %c2_96 = arith.constant 2 : index
    %c1_97 = arith.constant 1 : index
    %c0_98 = arith.constant 0 : index
    %c0_99 = arith.constant 0 : index
    %43 = vector.load %arg13[%c0_95, %c2_96, %c1_97, %c0_98, %c0_99] : memref<1x4x9x9x16xbf16, #tpu.memory_space<vmem>>, vector<1x1x8x8x16xbf16>
    %c0_100 = arith.constant 0 : index
    %c3_101 = arith.constant 3 : index
    %c1_102 = arith.constant 1 : index
    %c0_103 = arith.constant 0 : index
    %c0_104 = arith.constant 0 : index
    %44 = vector.load %arg13[%c0_100, %c3_101, %c1_102, %c0_103, %c0_104] : memref<1x4x9x9x16xbf16, #tpu.memory_space<vmem>>, vector<1x1x8x8x16xbf16>
    %c0_105 = arith.constant 0 : index
    %c0_106 = arith.constant 0 : index
    %c1_107 = arith.constant 1 : index
    %c1_108 = arith.constant 1 : index
    %c0_109 = arith.constant 0 : index
    %45 = vector.load %arg13[%c0_105, %c0_106, %c1_107, %c1_108, %c0_109] : memref<1x4x9x9x16xbf16, #tpu.memory_space<vmem>>, vector<1x1x8x8x16xbf16>
    %c0_110 = arith.constant 0 : index
    %c1_111 = arith.constant 1 : index
    %c1_112 = arith.constant 1 : index
    %c1_113 = arith.constant 1 : index
    %c0_114 = arith.constant 0 : index
    %46 = vector.load %arg13[%c0_110, %c1_111, %c1_112, %c1_113, %c0_114] : memref<1x4x9x9x16xbf16, #tpu.memory_space<vmem>>, vector<1x1x8x8x16xbf16>
    %c0_115 = arith.constant 0 : index
    %c2_116 = arith.constant 2 : index
    %c1_117 = arith.constant 1 : index
    %c1_118 = arith.constant 1 : index
    %c0_119 = arith.constant 0 : index
    %47 = vector.load %arg13[%c0_115, %c2_116, %c1_117, %c1_118, %c0_119] : memref<1x4x9x9x16xbf16, #tpu.memory_space<vmem>>, vector<1x1x8x8x16xbf16>
    %c0_120 = arith.constant 0 : index
    %c3_121 = arith.constant 3 : index
    %c1_122 = arith.constant 1 : index
    %c1_123 = arith.constant 1 : index
    %c0_124 = arith.constant 0 : index
    %48 = vector.load %arg13[%c0_120, %c3_121, %c1_122, %c1_123, %c0_124] : memref<1x4x9x9x16xbf16, #tpu.memory_space<vmem>>, vector<1x1x8x8x16xbf16>
    %49 = tpu.concatenate %33, %34, %35, %36, %37, %38, %39, %40, %41, %42, %43, %44, %45, %46, %47, %48 in 4 : vector<1x1x8x8x16xbf16>, vector<1x1x8x8x16xbf16>, vector<1x1x8x8x16xbf16>, vector<1x1x8x8x16xbf16>, vector<1x1x8x8x16xbf16>, vector<1x1x8x8x16xbf16>, vector<1x1x8x8x16xbf16>, vector<1x1x8x8x16xbf16>, vector<1x1x8x8x16xbf16>, vector<1x1x8x8x16xbf16>, vector<1x1x8x8x16xbf16>, vector<1x1x8x8x16xbf16>, vector<1x1x8x8x16xbf16>, vector<1x1x8x8x16xbf16>, vector<1x1x8x8x16xbf16>, vector<1x1x8x8x16xbf16> -> vector<1x1x8x8x256xbf16>
    %50 = vector.shape_cast %49 : vector<1x1x8x8x256xbf16> to vector<64x256xbf16>
    %c0_125 = arith.constant 0 : index
    %c0_126 = arith.constant 0 : index
    %51 = vector.load %arg6[%c0_125, %c0_126] : memref<256x16xbf16, #tpu.memory_space<vmem>>, vector<256x16xbf16>
    %cst_127 = arith.constant dense<0.000000e+00> : vector<64x16xf32>
    %52 = tpu.matmul %50, %51, %cst_127 {dimension_numbers = #tpu.dot_dimension_numbers<[1], [0], [0], [1], [0, 0, 1, 1], [], []>} : vector<64x256xbf16>, vector<256x16xbf16>, vector<64x16xf32> -> vector<64x16xf32>
    %c0_128 = arith.constant 0 : index
    %c0_129 = arith.constant 0 : index
    %53 = vector.load %arg7[%c0_128, %c0_129] : memref<1x16xf32, #tpu.memory_space<vmem>>, vector<1x16xf32>
    %54 = vector.broadcast %53 : vector<1x16xf32> to vector<64x16xf32>
    %55 = arith.mulf %52, %54 : vector<64x16xf32>
    %c0_130 = arith.constant 0 : index
    %c0_131 = arith.constant 0 : index
    %56 = vector.load %arg8[%c0_130, %c0_131] : memref<1x16xf32, #tpu.memory_space<vmem>>, vector<1x16xf32>
    %57 = vector.broadcast %56 : vector<1x16xf32> to vector<64x16xf32>
    %58 = arith.addf %55, %57 : vector<64x16xf32>
    %cst_132 = arith.constant 2.000000e-01 : f32
    %59 = vector.broadcast %cst_132 : f32 to vector<64x16xf32>
    %60 = arith.mulf %59, %58 : vector<64x16xf32>
    %61 = arith.maximumf %58, %60 : vector<64x16xf32>
    %62 = arith.truncf %61 : vector<64x16xf32> to vector<64x16xbf16>
    %63 = vector.shape_cast %62 : vector<64x16xbf16> to vector<1x8x8x16xbf16>
    %cst_133 = arith.constant 0.000000e+00 : bf16
    %64 = vector.broadcast %cst_133 : bf16 to vector<1x8x4x16xbf16>
    %65 = tpu.concatenate %63, %64 in 2 : vector<1x8x8x16xbf16>, vector<1x8x4x16xbf16> -> vector<1x8x12x16xbf16>
    %66 = vector.extract_strided_slice %65 {offsets = [0, 0, 0, 0], sizes = [1, 5, 8, 16], strides = [1, 1, 1, 1]} : vector<1x8x12x16xbf16> to vector<1x5x8x16xbf16>
    %67 = vector.extract_strided_slice %65 {offsets = [0, 0, 1, 0], sizes = [1, 5, 8, 16], strides = [1, 1, 1, 1]} : vector<1x8x12x16xbf16> to vector<1x5x8x16xbf16>
    %68 = vector.extract_strided_slice %65 {offsets = [0, 0, 2, 0], sizes = [1, 5, 8, 16], strides = [1, 1, 1, 1]} : vector<1x8x12x16xbf16> to vector<1x5x8x16xbf16>
    %69 = vector.extract_strided_slice %65 {offsets = [0, 0, 3, 0], sizes = [1, 5, 8, 16], strides = [1, 1, 1, 1]} : vector<1x8x12x16xbf16> to vector<1x5x8x16xbf16>
    %70 = vector.extract_strided_slice %65 {offsets = [0, 1, 0, 0], sizes = [1, 5, 8, 16], strides = [1, 1, 1, 1]} : vector<1x8x12x16xbf16> to vector<1x5x8x16xbf16>
    %71 = vector.extract_strided_slice %65 {offsets = [0, 1, 1, 0], sizes = [1, 5, 8, 16], strides = [1, 1, 1, 1]} : vector<1x8x12x16xbf16> to vector<1x5x8x16xbf16>
    %72 = vector.extract_strided_slice %65 {offsets = [0, 1, 2, 0], sizes = [1, 5, 8, 16], strides = [1, 1, 1, 1]} : vector<1x8x12x16xbf16> to vector<1x5x8x16xbf16>
    %73 = vector.extract_strided_slice %65 {offsets = [0, 1, 3, 0], sizes = [1, 5, 8, 16], strides = [1, 1, 1, 1]} : vector<1x8x12x16xbf16> to vector<1x5x8x16xbf16>
    %74 = vector.extract_strided_slice %65 {offsets = [0, 2, 0, 0], sizes = [1, 5, 8, 16], strides = [1, 1, 1, 1]} : vector<1x8x12x16xbf16> to vector<1x5x8x16xbf16>
    %75 = vector.extract_strided_slice %65 {offsets = [0, 2, 1, 0], sizes = [1, 5, 8, 16], strides = [1, 1, 1, 1]} : vector<1x8x12x16xbf16> to vector<1x5x8x16xbf16>
    %76 = vector.extract_strided_slice %65 {offsets = [0, 2, 2, 0], sizes = [1, 5, 8, 16], strides = [1, 1, 1, 1]} : vector<1x8x12x16xbf16> to vector<1x5x8x16xbf16>
    %77 = vector.extract_strided_slice %65 {offsets = [0, 2, 3, 0], sizes = [1, 5, 8, 16], strides = [1, 1, 1, 1]} : vector<1x8x12x16xbf16> to vector<1x5x8x16xbf16>
    %78 = vector.extract_strided_slice %65 {offsets = [0, 3, 0, 0], sizes = [1, 5, 8, 16], strides = [1, 1, 1, 1]} : vector<1x8x12x16xbf16> to vector<1x5x8x16xbf16>
    %79 = vector.extract_strided_slice %65 {offsets = [0, 3, 1, 0], sizes = [1, 5, 8, 16], strides = [1, 1, 1, 1]} : vector<1x8x12x16xbf16> to vector<1x5x8x16xbf16>
    %80 = vector.extract_strided_slice %65 {offsets = [0, 3, 2, 0], sizes = [1, 5, 8, 16], strides = [1, 1, 1, 1]} : vector<1x8x12x16xbf16> to vector<1x5x8x16xbf16>
    %81 = vector.extract_strided_slice %65 {offsets = [0, 3, 3, 0], sizes = [1, 5, 8, 16], strides = [1, 1, 1, 1]} : vector<1x8x12x16xbf16> to vector<1x5x8x16xbf16>
    %82 = tpu.concatenate %66, %67, %68, %69, %70, %71, %72, %73, %74, %75, %76, %77, %78, %79, %80, %81 in 3 : vector<1x5x8x16xbf16>, vector<1x5x8x16xbf16>, vector<1x5x8x16xbf16>, vector<1x5x8x16xbf16>, vector<1x5x8x16xbf16>, vector<1x5x8x16xbf16>, vector<1x5x8x16xbf16>, vector<1x5x8x16xbf16>, vector<1x5x8x16xbf16>, vector<1x5x8x16xbf16>, vector<1x5x8x16xbf16>, vector<1x5x8x16xbf16>, vector<1x5x8x16xbf16>, vector<1x5x8x16xbf16>, vector<1x5x8x16xbf16>, vector<1x5x8x16xbf16> -> vector<1x5x8x256xbf16>
    %83 = vector.shape_cast %82 : vector<1x5x8x256xbf16> to vector<40x256xbf16>
    %c0_134 = arith.constant 0 : index
    %c0_135 = arith.constant 0 : index
    %84 = vector.load %arg9[%c0_134, %c0_135] : memref<256x32xbf16, #tpu.memory_space<vmem>>, vector<256x32xbf16>
    %cst_136 = arith.constant dense<0.000000e+00> : vector<40x32xf32>
    %85 = tpu.matmul %83, %84, %cst_136 {dimension_numbers = #tpu.dot_dimension_numbers<[1], [0], [0], [1], [0, 0, 1, 1], [], []>} : vector<40x256xbf16>, vector<256x32xbf16>, vector<40x32xf32> -> vector<40x32xf32>
    %c0_137 = arith.constant 0 : index
    %c0_138 = arith.constant 0 : index
    %c0_139 = arith.constant 0 : index
    %86 = vector.load %arg2[%c0_137, %c0_138, %c0_139] : memref<1x1x32xf32, #tpu.memory_space<vmem>>, vector<1x1x32xf32>
    %87 = vector.shape_cast %86 : vector<1x1x32xf32> to vector<1x32xf32>
    %c0_140 = arith.constant 0 : index
    %c0_141 = arith.constant 0 : index
    %88 = vector.load %arg10[%c0_140, %c0_141] : memref<32x32xf32, #tpu.memory_space<vmem>>, vector<32x32xf32>
    %cst_142 = arith.constant dense<0.000000e+00> : vector<1x32xf32>
    %89 = tpu.matmul %87, %88, %cst_142 {dimension_numbers = #tpu.dot_dimension_numbers<[1], [0], [0], [1], [0, 0, 1, 1], [], []>} : vector<1x32xf32>, vector<32x32xf32>, vector<1x32xf32> -> vector<1x32xf32>
    %c0_143 = arith.constant 0 : index
    %c0_144 = arith.constant 0 : index
    %90 = vector.load %arg11[%c0_143, %c0_144] : memref<1x32xf32, #tpu.memory_space<vmem>>, vector<1x32xf32>
    %91 = arith.addf %89, %90 : vector<1x32xf32>
    %cst_145 = arith.constant 2.000000e-01 : f32
    %92 = vector.broadcast %cst_145 : f32 to vector<1x32xf32>
    %93 = arith.mulf %92, %91 : vector<1x32xf32>
    %94 = arith.maximumf %91, %93 : vector<1x32xf32>
    %95 = vector.shape_cast %85 : vector<40x32xf32> to vector<1x40x32xf32>
    %96 = vector.shape_cast %94 : vector<1x32xf32> to vector<1x1x32xf32>
    %97 = vector.broadcast %96 : vector<1x1x32xf32> to vector<1x40x32xf32>
    %98 = arith.mulf %95, %97 : vector<1x40x32xf32>
    %cst_146 = arith.constant dense<0.000000e+00> : vector<1x40xf32>
    %99 = vector.multi_reduction <add>, %98, %cst_146 [2] : vector<1x40x32xf32> to vector<1x40xf32>
    %cst_147 = arith.constant 0.176776692 : f32
    %100 = vector.broadcast %cst_147 : f32 to vector<1x40xf32>
    %101 = arith.mulf %99, %100 : vector<1x40xf32>
    %102 = vector.shape_cast %101 : vector<1x40xf32> to vector<1x1x40xf32>
    %c0_148 = arith.constant 0 : index
    %c0_149 = arith.constant 0 : index
    %c0_150 = arith.constant 0 : index
    %103 = vector.load %arg12[%c0_148, %c0_149, %c0_150] : memref<1x1x40xf32, #tpu.memory_space<vmem>>, vector<1x1x40xf32>
    tpu.vector_store %arg12[%c0_148, %c0_149, %c0_150], %102 {strides = array<i32>} : memref<1x1x40xf32, #tpu.memory_space<vmem>>, vector<1x1x40xf32>,
    return
  }
  func.func @transform_0(%arg0: i32) -> (i32, i32, i32, i32) {
    %c0_i32 = arith.constant 0 : i32
    %c0_i32_0 = arith.constant 0 : i32
    %c0_i32_1 = arith.constant 0 : i32
    %c0_i32_2 = arith.constant 0 : i32
    return %arg0, %c0_i32, %c0_i32_0, %c0_i32_1 : i32, i32, i32, i32
  }
  func.func @transform_1(%arg0: i32) -> (i32, i32, i32) {
    %c0_i32 = arith.constant 0 : i32
    %c0_i32_0 = arith.constant 0 : i32
    %c0_i32_1 = arith.constant 0 : i32
    return %arg0, %c0_i32, %c0_i32_0 : i32, i32, i32
  }
  func.func @transform_2(%arg0: i32) -> (i32, i32) {
    %c0_i32 = arith.constant 0 : i32
    %c0_i32_0 = arith.constant 0 : i32
    %c0_i32_1 = arith.constant 0 : i32
    return %c0_i32, %c0_i32_0 : i32, i32
  }
  func.func @transform_3(%arg0: i32) -> (i32, i32) {
    %c0_i32 = arith.constant 0 : i32
    %c0_i32_0 = arith.constant 0 : i32
    %c0_i32_1 = arith.constant 0 : i32
    return %c0_i32, %c0_i32_0 : i32, i32
  }
  func.func @transform_4(%arg0: i32) -> (i32, i32) {
    %c0_i32 = arith.constant 0 : i32
    %c0_i32_0 = arith.constant 0 : i32
    %c0_i32_1 = arith.constant 0 : i32
    return %c0_i32, %c0_i32_0 : i32, i32
  }
  func.func @transform_5(%arg0: i32) -> (i32, i32) {
    %c0_i32 = arith.constant 0 : i32
    %c0_i32_0 = arith.constant 0 : i32
    %c0_i32_1 = arith.constant 0 : i32
    return %c0_i32, %c0_i32_0 : i32, i32
  }
  func.func @transform_6(%arg0: i32) -> (i32, i32) {
    %c0_i32 = arith.constant 0 : i32
    %c0_i32_0 = arith.constant 0 : i32
    %c0_i32_1 = arith.constant 0 : i32
    return %c0_i32, %c0_i32_0 : i32, i32
  }
  func.func @transform_7(%arg0: i32) -> (i32, i32) {
    %c0_i32 = arith.constant 0 : i32
    %c0_i32_0 = arith.constant 0 : i32
    %c0_i32_1 = arith.constant 0 : i32
    return %c0_i32, %c0_i32_0 : i32, i32
  }
  func.func @transform_8(%arg0: i32) -> (i32, i32) {
    %c0_i32 = arith.constant 0 : i32
    %c0_i32_0 = arith.constant 0 : i32
    %c0_i32_1 = arith.constant 0 : i32
    return %c0_i32, %c0_i32_0 : i32, i32
  }
  func.func @transform_9(%arg0: i32) -> (i32, i32) {
    %c0_i32 = arith.constant 0 : i32
    %c0_i32_0 = arith.constant 0 : i32
    %c0_i32_1 = arith.constant 0 : i32
    return %c0_i32, %c0_i32_0 : i32, i32
  }
  func.func @transform_10(%arg0: i32) -> (i32, i32) {
    %c0_i32 = arith.constant 0 : i32
    %c0_i32_0 = arith.constant 0 : i32
    %c0_i32_1 = arith.constant 0 : i32
    return %c0_i32, %c0_i32_0 : i32, i32
  }
  func.func @transform_11(%arg0: i32) -> (i32, i32, i32) {
    %c0_i32 = arith.constant 0 : i32
    %c0_i32_0 = arith.constant 0 : i32
    %c0_i32_1 = arith.constant 0 : i32
    return %arg0, %c0_i32, %c0_i32_0 : i32, i32, i32
  }
}

</mosaic_0001>

<llo_original>
// kernel: squeeze.1
$region0: #{squeeze.1}
  %s0 = inlined_call_operand.vmem [shape: f32[2,40], index: 0, kind: input, shape index: {}]
  %s1 = inlined_call_operand.vmem [shape: f32[2,5,8], index: 1, kind: output, shape index: {}]
  $region1: #{squeeze.1} parent=0
    #allocation0 [shape = 'u8[4096]{0}', space=vmem, size = 0x1000, scoped, tag = 'scoped mem for input reshape']
    %s3 = sshllo.u32 0, 2
    %v4 = vld [vmem:[%s0] sm:%s3]
    %5 = vst [vmem:[#allocation0] sm:%s3] %v4
    %v6 = vld [vmem:[#allocation0] sm:$0x3]
    %vm7 = vcmask 64512
    %8 = vst.msk [vmem:[%s1] ss:$8 sm:$0x3] %vm7, %v6
    %v9 = vld [vmem:[#allocation0] sm:$0x3]
    %10 = vrot.lane.b32.xlu0 %v9, 120
    %v11 = vpop.permute.xlu0 %10
    %vm12 = vcmask 64512
    %s13 = scalar_lea.vmem %s1, 1
    %14 = vst.msk [vmem:[%s13] ss:$8 sm:$0x3] %vm12, %v11
    %v15 = vld [vmem:[#allocation0] sm:$0x3]
    %16 = vrot.lane.b32.xlu0 %v15, 112
    %v17 = vpop.permute.xlu0 %16
    %vm18 = vcmask 64512
    %s19 = scalar_lea.vmem %s1, 2
    %20 = vst.msk [vmem:[%s19] ss:$8 sm:$0x3] %vm18, %v17
    %v21 = vld [vmem:[#allocation0] sm:$0x3]
    %22 = vrot.lane.b32.xlu0 %v21, 104
    %v23 = vpop.permute.xlu0 %22
    %vm24 = vcmask 64512
    %s25 = scalar_lea.vmem %s1, 3
    %26 = vst.msk [vmem:[%s25] ss:$8 sm:$0x3] %vm24, %v23
    %v27 = vld [vmem:[#allocation0] sm:$0x3]
    %28 = vrot.lane.b32.xlu0 %v27, 96
    %v29 = vpop.permute.xlu0 %28
    %vm30 = vcmask 64512
    %s31 = scalar_lea.vmem %s1, 4
    %32 = vst.msk [vmem:[%s31] ss:$8 sm:$0x3] %vm30, %v29

// kernel: single_disc_cond_forward.1
$region0: #{single_disc_cond_forward.1}
  #allocation0 [shape = 'u32[]', space=smem, size = 0x4, offset = 0x4, fixed_abs, tag = 'smem constant byte address 0x4 - core index']
  #allocation1 [shape = 'u32[144,128]{1,0:T(1,128)}', space=vmem, size = 0x12000, scoped, tag = 'internal scratch']
  #allocation2 [shape = 'bf16[1,4,9,9,16]{4,3,2,1,0:T(8,128)(2,1)}', space=vmem, size = 0x24000, scoped, tag = 'scratch operand']
  %s0 = inlined_call_operand.vmem [shape: bf16[2,9,9,64], index: 0, kind: input, shape index: {}]
  %s1 = inlined_call_operand.vmem [shape: f32[2,1,32], index: 1, kind: input, shape index: {}]
  %s2 = inlined_call_operand.vmem [shape: bf16[256,64], index: 2, kind: input, shape index: {}]
  %s3 = inlined_call_operand.vmem [shape: f32[1,64], index: 3, kind: input, shape index: {}]
  %s4 = inlined_call_operand.vmem [shape: f32[1,64], index: 4, kind: input, shape index: {}]
  %s5 = inlined_call_operand.vmem [shape: bf16[256,16], index: 5, kind: input, shape index: {}]
  %s6 = inlined_call_operand.vmem [shape: f32[1,16], index: 6, kind: input, shape index: {}]
  %s7 = inlined_call_operand.vmem [shape: f32[1,16], index: 7, kind: input, shape index: {}]
  %s8 = inlined_call_operand.vmem [shape: bf16[256,32], index: 8, kind: input, shape index: {}]
  %s9 = inlined_call_operand.vmem [shape: f32[32,32], index: 9, kind: input, shape index: {}]
  %s10 = inlined_call_operand.vmem [shape: f32[1,32], index: 10, kind: input, shape index: {}]
  %s11 = inlined_call_operand.vmem [shape: f32[2,1,40], index: 11, kind: output, shape index: {}]
  %s12 = sld [smem:[#allocation0]]
  $region77: #{single_disc_cond_forward.1} parent=0
    _
  %s14 = ssub.s32 1, %s12
  %s15 = scalar_select 0, %s14, %s12
  loop: start=0, step=1, limit=4
  $region2: #{single_disc_cond_forward.1} parent=0 // loop_pre_header
    _
  $region3: #{single_disc_cond_forward.1} parent=0 // loop_header
    %s17 = sphi 0, %s21
    %p18 = scmp.ge.s32.totalorder %s17, 4
    %s27 = sphi 0, %s29
    %s30 = sphi 0, %s27
    %s31 = sphi 0, %s30
    %s47 = sphi 0, %s31
    %s53 = sphi 0, %s55
    %s56 = sphi 0, %s53
    %s57 = sphi 0, %s56
    %s73 = sphi 0, %s57
    %s77 = sphi 0, %s77
    %s79 = sphi 0, %s77
    %s80 = sphi 0, %s79
    %s94 = sphi 0, %s80
    %s98 = sphi 0, %s98
    %s100 = sphi 0, %s98
    %s101 = sphi 0, %s100
    %s115 = sphi 0, %s101
    %s119 = sphi 0, %s119
    %s121 = sphi 0, %s119
    %s122 = sphi 0, %s121
    %s136 = sphi 0, %s122
    %s140 = sphi 0, %s140
    %s142 = sphi 0, %s140
    %s143 = sphi 0, %s142
    %s157 = sphi 0, %s143
    %s161 = sphi 0, %s161
    %s163 = sphi 0, %s161
    %s164 = sphi 0, %s163
    %s178 = sphi 0, %s164
    %s182 = sphi 0, %s182
    %s184 = sphi 0, %s182
    %s185 = sphi 0, %s184
    %s199 = sphi 0, %s185
    %s203 = sphi 0, %s203
    %s205 = sphi 0, %s203
    %s206 = sphi 0, %s205
    %s220 = sphi 0, %s206
    %s224 = sphi 0, %s224
    %s226 = sphi 0, %s224
    %s227 = sphi 0, %s226
    %s241 = sphi 0, %s227
    %s245 = sphi 0, %s245
    %s247 = sphi 0, %s245
    %s248 = sphi 0, %s247
    %s262 = sphi 0, %s248
    %s268 = sphi 0, %s270
    %s271 = sphi 0, %s268
    %s272 = sphi 0, %s271
    %s288 = sphi 0, %s272
  $region4: #{single_disc_cond_forward.1} parent=0 // loop_header_branch
    %20 = sbr.rel (%p18) target = $region8
  $region5: #{single_disc_cond_forward.1} parent=0 // loop_body
    %s22 = ssub.s32 %s17, 1
    %s23 = ssub.s32 %s17, 2
    %s24 = sadd.s32 %s17, 1
    %s25 = ssub.s32 %s17, %s24
    %p26 = scmp.eq.s32.totalorder %s25, 0
    %s28 = sadd.s32 %s27, 1
    %s29 = scalar_select %p26, %s27, %s28
    %p32 = pneg %p26
    %p33 = scmp.eq.s32.totalorder %s17, 1
    %p34 = por %p32, %p33
    %p35 = scmp.ne.s32.totalorder %s27, %s30
    %p36 = scmp.eq.s32.totalorder %s17, 0
    %p37 = por %p35, %p36
    %p38 = scmp.ne.s32.totalorder %s27, %s30
    %p39 = scmp.eq.s32.totalorder %s22, 1
    %p40 = por %p38, %p39
    %p41 = scmp.ne.s32.totalorder %s30, %s31
    %p42 = scmp.eq.s32.totalorder %s22, 0
    %p43 = por %p41, %p42
    %p44 = scmp.ne.s32.totalorder %s30, %s31
    %p45 = scmp.eq.s32.totalorder %s23, 1
    %p46 = por %p44, %p45
    %p48 = scmp.ne.s32.totalorder %s31, %s47
    %p49 = scmp.eq.s32.totalorder %s23, 0
    %p50 = por %p48, %p49
    %s51 = ssub.s32 %s17, %s24
    %p52 = scmp.eq.s32.totalorder %s51, 0
    %s54 = sadd.s32 %s53, 1
    %s55 = scalar_select %p52, %s53, %s54
    %p58 = pneg %p52
    %p59 = scmp.eq.s32.totalorder %s17, 1
    %p60 = por %p58, %p59
    %p61 = scmp.ne.s32.totalorder %s53, %s56
    %p62 = scmp.eq.s32.totalorder %s17, 0
    %p63 = por %p61, %p62
    %p64 = scmp.ne.s32.totalorder %s53, %s56
    %p65 = scmp.eq.s32.totalorder %s22, 1
    %p66 = por %p64, %p65
    %p67 = scmp.ne.s32.totalorder %s56, %s57
    %p68 = scmp.eq.s32.totalorder %s22, 0
    %p69 = por %p67, %p68
    %p70 = scmp.ne.s32.totalorder %s56, %s57
    %p71 = scmp.eq.s32.totalorder %s23, 1
    %p72 = por %p70, %p71
    %p74 = scmp.ne.s32.totalorder %s57, %s73
    %p75 = scmp.eq.s32.totalorder %s23, 0
    %p76 = por %p74, %p75
    %s78 = sadd.s32 %s77, 1
    %p81 = scmp.eq.s32.totalorder %s17, 1
    %p82 = scmp.ne.s32.totalorder %s77, %s79
    %p83 = scmp.eq.s32.totalorder %s17, 0
    %p84 = por %p82, %p83
    %p85 = scmp.ne.s32.totalorder %s77, %s79
    %p86 = scmp.eq.s32.totalorder %s22, 1
    %p87 = por %p85, %p86
    %p88 = scmp.ne.s32.totalorder %s79, %s80
    %p89 = scmp.eq.s32.totalorder %s22, 0
    %p90 = por %p88, %p89
    %p91 = scmp.ne.s32.totalorder %s79, %s80
    %p92 = scmp.eq.s32.totalorder %s23, 1
    %p93 = por %p91, %p92
    %p95 = scmp.ne.s32.totalorder %s80, %s94
    %p96 = scmp.eq.s32.totalorder %s23, 0
    %p97 = por %p95, %p96
    %s99 = sadd.s32 %s98, 1
    %p102 = scmp.eq.s32.totalorder %s17, 1
    %p103 = scmp.ne.s32.totalorder %s98, %s100
    %p104 = scmp.eq.s32.totalorder %s17, 0
    %p105 = por %p103, %p104
    %p106 = scmp.ne.s32.totalorder %s98, %s100
    %p107 = scmp.eq.s32.totalorder %s22, 1
    %p108 = por %p106, %p107
    %p109 = scmp.ne.s32.totalorder %s100, %s101
    %p110 = scmp.eq.s32.totalorder %s22, 0
    %p111 = por %p109, %p110
    %p112 = scmp.ne.s32.totalorder %s100, %s101
    %p113 = scmp.eq.s32.totalorder %s23, 1
    %p114 = por %p112, %p113
    %p116 = scmp.ne.s32.totalorder %s101, %s115
    %p117 = scmp.eq.s32.totalorder %s23, 0
    %p118 = por %p116, %p117
    %s120 = sadd.s32 %s119, 1
    %p123 = scmp.eq.s32.totalorder %s17, 1
    %p124 = scmp.ne.s32.totalorder %s119, %s121
    %p125 = scmp.eq.s32.totalorder %s17, 0
    %p126 = por %p124, %p125
    %p127 = scmp.ne.s32.totalorder %s119, %s121
    %p128 = scmp.eq.s32.totalorder %s22, 1
    %p129 = por %p127, %p128
    %p130 = scmp.ne.s32.totalorder %s121, %s122
    %p131 = scmp.eq.s32.totalorder %s22, 0
    %p132 = por %p130, %p131
    %p133 = scmp.ne.s32.totalorder %s121, %s122
    %p134 = scmp.eq.s32.totalorder %s23, 1
    %p135 = por %p133, %p134
    %p137 = scmp.ne.s32.totalorder %s122, %s136
    %p138 = scmp.eq.s32.totalorder %s23, 0
    %p139 = por %p137, %p138
    %s141 = sadd.s32 %s140, 1
    %p144 = scmp.eq.s32.totalorder %s17, 1
    %p145 = scmp.ne.s32.totalorder %s140, %s142
    %p146 = scmp.eq.s32.totalorder %s17, 0
    %p147 = por %p145, %p146
    %p148 = scmp.ne.s32.totalorder %s140, %s142
    %p149 = scmp.eq.s32.totalorder %s22, 1
    %p150 = por %p148, %p149
    %p151 = scmp.ne.s32.totalorder %s142, %s143
    %p152 = scmp.eq.s32.totalorder %s22, 0
    %p153 = por %p151, %p152
    %p154 = scmp.ne.s32.totalorder %s142, %s143
    %p155 = scmp.eq.s32.totalorder %s23, 1
    %p156 = por %p154, %p155
    %p158 = scmp.ne.s32.totalorder %s143, %s157
    %p159 = scmp.eq.s32.totalorder %s23, 0
    %p160 = por %p158, %p159
    %s162 = sadd.s32 %s161, 1
    %p165 = scmp.eq.s32.totalorder %s17, 1
    %p166 = scmp.ne.s32.totalorder %s161, %s163
    %p167 = scmp.eq.s32.totalorder %s17, 0
    %p168 = por %p166, %p167
    %p169 = scmp.ne.s32.totalorder %s161, %s163
    %p170 = scmp.eq.s32.totalorder %s22, 1
    %p171 = por %p169, %p170
    %p172 = scmp.ne.s32.totalorder %s163, %s164
    %p173 = scmp.eq.s32.totalorder %s22, 0
    %p174 = por %p172, %p173
    %p175 = scmp.ne.s32.totalorder %s163, %s164
    %p176 = scmp.eq.s32.totalorder %s23, 1
    %p177 = por %p175, %p176
    %p179 = scmp.ne.s32.totalorder %s164, %s178
    %p180 = scmp.eq.s32.totalorder %s23, 0
    %p181 = por %p179, %p180
    %s183 = sadd.s32 %s182, 1
    %p186 = scmp.eq.s32.totalorder %s17, 1
    %p187 = scmp.ne.s32.totalorder %s182, %s184
    %p188 = scmp.eq.s32.totalorder %s17, 0
    %p189 = por %p187, %p188
    %p190 = scmp.ne.s32.totalorder %s182, %s184
    %p191 = scmp.eq.s32.totalorder %s22, 1
    %p192 = por %p190, %p191
    %p193 = scmp.ne.s32.totalorder %s184, %s185
    %p194 = scmp.eq.s32.totalorder %s22, 0
    %p195 = por %p193, %p194
    %p196 = scmp.ne.s32.totalorder %s184, %s185
    %p197 = scmp.eq.s32.totalorder %s23, 1
    %p198 = por %p196, %p197
    %p200 = scmp.ne.s32.totalorder %s185, %s199
    %p201 = scmp.eq.s32.totalorder %s23, 0
    %p202 = por %p200, %p201
    %s204 = sadd.s32 %s203, 1
    %p207 = scmp.eq.s32.totalorder %s17, 1
    %p208 = scmp.ne.s32.totalorder %s203, %s205
    %p209 = scmp.eq.s32.totalorder %s17, 0
    %p210 = por %p208, %p209
    %p211 = scmp.ne.s32.totalorder %s203, %s205
    %p212 = scmp.eq.s32.totalorder %s22, 1
    %p213 = por %p211, %p212
    %p214 = scmp.ne.s32.totalorder %s205, %s206
    %p215 = scmp.eq.s32.totalorder %s22, 0
    %p216 = por %p214, %p215
    %p217 = scmp.ne.s32.totalorder %s205, %s206
    %p218 = scmp.eq.s32.totalorder %s23, 1
    %p219 = por %p217, %p218
    %p221 = scmp.ne.s32.totalorder %s206, %s220
    %p222 = scmp.eq.s32.totalorder %s23, 0
    %p223 = por %p221, %p222
    %s225 = sadd.s32 %s224, 1
    %p228 = scmp.eq.s32.totalorder %s17, 1
    %p229 = scmp.ne.s32.totalorder %s224, %s226
    %p230 = scmp.eq.s32.totalorder %s17, 0
    %p231 = por %p229, %p230
    %p232 = scmp.ne.s32.totalorder %s224, %s226
    %p233 = scmp.eq.s32.totalorder %s22, 1
    %p234 = por %p232, %p233
    %p235 = scmp.ne.s32.totalorder %s226, %s227
    %p236 = scmp.eq.s32.totalorder %s22, 0
    %p237 = por %p235, %p236
    %p238 = scmp.ne.s32.totalorder %s226, %s227
    %p239 = scmp.eq.s32.totalorder %s23, 1
    %p240 = por %p238, %p239
    %p242 = scmp.ne.s32.totalorder %s227, %s241
    %p243 = scmp.eq.s32.totalorder %s23, 0
    %p244 = por %p242, %p243
    %s246 = sadd.s32 %s245, 1
    %p249 = scmp.eq.s32.totalorder %s17, 1
    %p250 = scmp.ne.s32.totalorder %s245, %s247
    %p251 = scmp.eq.s32.totalorder %s17, 0
    %p252 = por %p250, %p251
    %p253 = scmp.ne.s32.totalorder %s245, %s247
    %p254 = scmp.eq.s32.totalorder %s22, 1
    %p255 = por %p253, %p254
    %p256 = scmp.ne.s32.totalorder %s247, %s248
    %p257 = scmp.eq.s32.totalorder %s22, 0
    %p258 = por %p256, %p257
    %p259 = scmp.ne.s32.totalorder %s247, %s248
    %p260 = scmp.eq.s32.totalorder %s23, 1
    %p261 = por %p259, %p260
    %p263 = scmp.ne.s32.totalorder %s248, %s262
    %p264 = scmp.eq.s32.totalorder %s23, 0
    %p265 = por %p263, %p264
    %s266 = ssub.s32 %s17, %s24
    %p267 = scmp.eq.s32.totalorder %s266, 0
    %s269 = sadd.s32 %s268, 1
    %s270 = scalar_select %p267, %s268, %s269
    %p273 = pneg %p267
    %p274 = scmp.eq.s32.totalorder %s17, 1
    %p275 = por %p273, %p274
    %p276 = scmp.ne.s32.totalorder %s268, %s271
    %p277 = scmp.eq.s32.totalorder %s17, 0
    %p278 = por %p276, %p277
    %p279 = scmp.ne.s32.totalorder %s268, %s271
    %p280 = scmp.eq.s32.totalorder %s22, 1
    %p281 = por %p279, %p280
    %p282 = scmp.ne.s32.totalorder %s271, %s272
    %p283 = scmp.eq.s32.totalorder %s22, 0
    %p284 = por %p282, %p283
    %p285 = scmp.ne.s32.totalorder %s271, %s272
    %p286 = scmp.eq.s32.totalorder %s23, 1
    %p287 = por %p285, %p286
    %p289 = scmp.ne.s32.totalorder %s272, %s288
    %p290 = scmp.eq.s32.totalorder %s23, 0
    %p291 = por %p289, %p290
    %p292 = scmp.le.s32.totalorder 1, %s17
    %p293 = scmp.lt.s32.totalorder %s17, 3
    %p294 = pnand %p292, %p293
    %p295 = pneg %p294
    // Predicated region
    $region9: #{single_disc_cond_forward.1} parent=5 // pred_check
      _
    $region10: #{single_disc_cond_forward.1} parent=5 // pred_check_branch
      %297 = sbr.rel (%p294) target = $region12
    $region11: #{single_disc_cond_forward.1} parent=5 // pred_region
      %s298 = ssub.s32 %s17, 1
      // Predicated region
      $region13: #{single_disc_cond_forward.1} parent=11 // pred_check
        %p299 = pneg %p90
      $region14: #{single_disc_cond_forward.1} parent=11 // pred_check_branch
        %301 = sbr.rel (%p299) target = $region16
      $region15: #{single_disc_cond_forward.1} parent=11 // pred_region
        _
      $region16: #{single_disc_cond_forward.1} parent=11 // pred_fallthru
        _
      // Predicated region
      $region17: #{single_disc_cond_forward.1} parent=11 // pred_check
        %p302 = pneg %p111
      $region18: #{single_disc_cond_forward.1} parent=11 // pred_check_branch
        %304 = sbr.rel (%p302) target = $region20
      $region19: #{single_disc_cond_forward.1} parent=11 // pred_region
        _
      $region20: #{single_disc_cond_forward.1} parent=11 // pred_fallthru
        _
      // Predicated region
      $region21: #{single_disc_cond_forward.1} parent=11 // pred_check
        %p305 = pneg %p132
      $region22: #{single_disc_cond_forward.1} parent=11 // pred_check_branch
        %307 = sbr.rel (%p305) target = $region24
      $region23: #{single_disc_cond_forward.1} parent=11 // pred_region
        _
      $region24: #{single_disc_cond_forward.1} parent=11 // pred_fallthru
        _
      // Predicated region
      $region25: #{single_disc_cond_forward.1} parent=11 // pred_check
        %p308 = pneg %p153
      $region26: #{single_disc_cond_forward.1} parent=11 // pred_check_branch
        %310 = sbr.rel (%p308) target = $region28
      $region27: #{single_disc_cond_forward.1} parent=11 // pred_region
        _
      $region28: #{single_disc_cond_forward.1} parent=11 // pred_fallthru
        _
      // Predicated region
      $region29: #{single_disc_cond_forward.1} parent=11 // pred_check
        %p311 = pneg %p174
      $region30: #{single_disc_cond_forward.1} parent=11 // pred_check_branch
        %313 = sbr.rel (%p311) target = $region32
      $region31: #{single_disc_cond_forward.1} parent=11 // pred_region
        _
      $region32: #{single_disc_cond_forward.1} parent=11 // pred_fallthru
        _
      // Predicated region
      $region33: #{single_disc_cond_forward.1} parent=11 // pred_check
        %p314 = pneg %p195
      $region34: #{single_disc_cond_forward.1} parent=11 // pred_check_branch
        %316 = sbr.rel (%p314) target = $region36
      $region35: #{single_disc_cond_forward.1} parent=11 // pred_region
        _
      $region36: #{single_disc_cond_forward.1} parent=11 // pred_fallthru
        _
      // Predicated region
      $region37: #{single_disc_cond_forward.1} parent=11 // pred_check
        %p317 = pneg %p216
      $region38: #{single_disc_cond_forward.1} parent=11 // pred_check_branch
        %319 = sbr.rel (%p317) target = $region40
      $region39: #{single_disc_cond_forward.1} parent=11 // pred_region
        _
      $region40: #{single_disc_cond_forward.1} parent=11 // pred_fallthru
        _
      // Predicated region
      $region41: #{single_disc_cond_forward.1} parent=11 // pred_check
        %p320 = pneg %p237
      $region42: #{single_disc_cond_forward.1} parent=11 // pred_check_branch
        %322 = sbr.rel (%p320) target = $region44
      $region43: #{single_disc_cond_forward.1} parent=11 // pred_region
        _
      $region44: #{single_disc_cond_forward.1} parent=11 // pred_fallthru
        _
      // Predicated region
      $region45: #{single_disc_cond_forward.1} parent=11 // pred_check
        %p323 = pneg %p258
      $region46: #{single_disc_cond_forward.1} parent=11 // pred_check_branch
        %325 = sbr.rel (%p323) target = $region48
      $region47: #{single_disc_cond_forward.1} parent=11 // pred_region
        _
      $region48: #{single_disc_cond_forward.1} parent=11 // pred_fallthru
        _
    $region12: #{single_disc_cond_forward.1} parent=5 // pred_fallthru
      _
    %p326 = scmp.lt.s32.totalorder %s17, 2
    // Predicated region
    $region49: #{single_disc_cond_forward.1} parent=5 // pred_check
      %p327 = pneg %p326
    $region50: #{single_disc_cond_forward.1} parent=5 // pred_check_branch
      %329 = sbr.rel (%p327) target = $region52
    $region51: #{single_disc_cond_forward.1} parent=5 // pred_region
      // Predicated region
      $region53: #{single_disc_cond_forward.1} parent=51 // pred_check
        %p330 = pneg %p37
      $region54: #{single_disc_cond_forward.1} parent=51 // pred_check_branch
        %332 = sbr.rel (%p330) target = $region56
      $region55: #{single_disc_cond_forward.1} parent=51 // pred_region
        %p333 = scmp.lt.s32.totalorder %s17, 1
        %s334 = scalar_select %p333, %s17, 1
        %s335 = smul.addr %s334, 18
        %s336 = smul.addr %s335, 4
        %s337 = scalar_lea.vmem %s0, %s336
      $region56: #{single_disc_cond_forward.1} parent=51 // pred_fallthru
        _
      // Predicated region
      $region57: #{single_disc_cond_forward.1} parent=51 // pred_check
        %p338 = pneg %p63
      $region58: #{single_disc_cond_forward.1} parent=51 // pred_check_branch
        %340 = sbr.rel (%p338) target = $region60
      $region59: #{single_disc_cond_forward.1} parent=51 // pred_region
        %p341 = scmp.lt.s32.totalorder %s17, 1
        %s342 = scalar_select %p341, %s17, 1
        %s343 = scalar_lea.vmem %s1, %s342
      $region60: #{single_disc_cond_forward.1} parent=51 // pred_fallthru
        _
    $region52: #{single_disc_cond_forward.1} parent=5 // pred_fallthru
      _
    %p344 = scmp.le.s32.totalorder 1, %s17
    %p345 = scmp.lt.s32.totalorder %s17, 3
    %p346 = pnand %p344, %p345
    %p347 = pneg %p346
    // Predicated region
    $region61: #{single_disc_cond_forward.1} parent=5 // pred_check
      _
    $region62: #{single_disc_cond_forward.1} parent=5 // pred_check_branch
      %349 = sbr.rel (%p346) target = $region64
    $region63: #{single_disc_cond_forward.1} parent=5 // pred_region
      %s350 = ssub.s32 %s17, 1
      %p351 = scmp.lt.s32.totalorder %s22, 1
      %s352 = scalar_select %p351, %s22, 1
      %s353 = smul.addr %s352, 18
      %s354 = smul.addr %s353, 4
      %s355 = scalar_lea.vmem %s0, %s354
      %p356 = pneg %p43
      %p357 = pneg %p40
      %p358 = scmp.lt.s32.totalorder %s22, 1
      %s359 = scalar_select %p358, %s22, 1
      %s360 = scalar_lea.vmem %s1, %s359
      %p361 = pneg %p69
      %p362 = pneg %p66
      %p363 = pneg %p90
      %p364 = pneg %p87
      %p365 = pneg %p111
      %p366 = pneg %p108
      %p367 = pneg %p132
      %p368 = pneg %p129
      %p369 = pneg %p153
      %p370 = pneg %p150
      %p371 = pneg %p174
      %p372 = pneg %p171
      %p373 = pneg %p195
      %p374 = pneg %p192
      %p375 = pneg %p216
      %p376 = pneg %p213
      %p377 = pneg %p237
      %p378 = pneg %p234
      %p379 = pneg %p258
      %p380 = pneg %p255
      %p381 = pneg %p284
      %p382 = pneg %p281
      %p383 = scmp.lt.s32.totalorder %s22, 1
      %s384 = scalar_select %p383, %s22, 1
      %s385 = scalar_lea.vmem %s11, %s384
      %p386 = scmp.lt.s32.totalorder %s22, 1
      %s387 = scalar_select %p386, %s22, 1
      %s388 = smul.addr %s387, 18
      %s389 = smul.addr %s388, 4
      %s390 = scalar_lea.vmem %s0, %s389
      %p391 = scmp.lt.s32.totalorder %s22, 1
      %s392 = scalar_select %p391, %s22, 1
      %s393 = scalar_lea.vmem %s1, %s392
      %p394 = scmp.lt.s32.totalorder %s22, 1
      %s395 = scalar_select %p394, %s22, 1
      %s396 = scalar_lea.vmem %s11, %s395
      %v398 = vld [vmem:[%s390] sm:$0xf]
      %v399 = vld [vmem:[%s390 + $0x8] sm:$0xf]
      %v400 = vld [vmem:[%s390 + $0x10] sm:$0xf]
      %v401 = vld [vmem:[%s390 + $0x18] sm:$0xf]
      %v402 = vld [vmem:[%s390 + $0x20] sm:$0xf]
      %v403 = vld [vmem:[%s390 + $0x28] sm:$0xf]
      %v404 = vld [vmem:[%s390 + $0x30] sm:$0xf]
      %v405 = vld [vmem:[%s390 + $0x38] sm:$0xf]
      %v406 = vld [vmem:[%s390 + $0x4] sm:$0x1]
      %v407 = vld [vmem:[%s390 + $0xc] sm:$0x1]
      %v408 = vld [vmem:[%s390 + $0x14] sm:$0x1]
      %v409 = vld [vmem:[%s390 + $0x1c] sm:$0x1]
      %v410 = vld [vmem:[%s390 + $0x24] sm:$0x1]
      %v411 = vld [vmem:[%s390 + $0x2c] sm:$0x1]
      %v412 = vld [vmem:[%s390 + $0x34] sm:$0x1]
      %v413 = vld [vmem:[%s390 + $0x3c] sm:$0x1]
      %s414 = scalar_lea.vmem %s390, 8
      %v415 = vld [vmem:[%s414] sm:$0xf]
      %v416 = vld [vmem:[%s414 + $0x8] sm:$0xf]
      %v417 = vld [vmem:[%s414 + $0x10] sm:$0xf]
      %v418 = vld [vmem:[%s414 + $0x18] sm:$0xf]
      %v419 = vld [vmem:[%s414 + $0x20] sm:$0xf]
      %v420 = vld [vmem:[%s414 + $0x28] sm:$0xf]
      %v421 = vld [vmem:[%s414 + $0x30] sm:$0xf]
      %v422 = vld [vmem:[%s414 + $0x38] sm:$0xf]
      %v423 = vld [vmem:[%s414 + $0x4] sm:$0x1]
      %v424 = vld [vmem:[%s414 + $0xc] sm:$0x1]
      %v425 = vld [vmem:[%s414 + $0x14] sm:$0x1]
      %v426 = vld [vmem:[%s414 + $0x1c] sm:$0x1]
      %v427 = vld [vmem:[%s414 + $0x24] sm:$0x1]
      %v428 = vld [vmem:[%s414 + $0x2c] sm:$0x1]
      %v429 = vld [vmem:[%s414 + $0x34] sm:$0x1]
      %v430 = vld [vmem:[%s414 + $0x3c] sm:$0x1]
      %v447 = vunpack.c.l.b16 %v398
      %v448 = vunpack.c.l.b16 %v406
      %v449 = vunpack.c.l.b16 %v399
      %v450 = vunpack.c.l.b16 %v407
      %v451 = vunpack.c.l.b16 %v400
      %v452 = vunpack.c.l.b16 %v408
      %v453 = vunpack.c.l.b16 %v401
      %v454 = vunpack.c.l.b16 %v409
      %v455 = vunpack.c.l.b16 %v402
      %v456 = vunpack.c.l.b16 %v410
      %v457 = vunpack.c.l.b16 %v403
      %v458 = vunpack.c.l.b16 %v411
      %v459 = vunpack.c.l.b16 %v404
      %v460 = vunpack.c.l.b16 %v412
      %v461 = vunpack.c.l.b16 %v405
      %v462 = vunpack.c.l.b16 %v413
      %v463 = vpack.c.b16 %v448, %v447
      %v464 = vpack.c.b16 %v450, %v449
      %v465 = vpack.c.b16 %v452, %v451
      %v466 = vpack.c.b16 %v454, %v453
      %v467 = vpack.c.b16 %v456, %v455
      %v468 = vpack.c.b16 %v458, %v457
      %v469 = vpack.c.b16 %v460, %v459
      %v470 = vpack.c.b16 %v462, %v461
      %v472 = vshrl.u32 %v463, 16
      %v474 = vshll.u32 %v463, 16
      %v476 = vrot.slane %v474, 1
      %v477 = vor.u32 %v472, %v476
      %v479 = vshrl.u32 %v464, 16
      %v481 = vshll.u32 %v464, 16
      %v483 = vrot.slane %v481, 1
      %v484 = vor.u32 %v479, %v483
      %v486 = vshrl.u32 %v465, 16
      %v488 = vshll.u32 %v465, 16
      %v490 = vrot.slane %v488, 1
      %v491 = vor.u32 %v486, %v490
      %v493 = vshrl.u32 %v466, 16
      %v495 = vshll.u32 %v466, 16
      %v497 = vrot.slane %v495, 1
      %v498 = vor.u32 %v493, %v497
      %v500 = vshrl.u32 %v467, 16
      %v502 = vshll.u32 %v467, 16
      %v504 = vrot.slane %v502, 1
      %v505 = vor.u32 %v500, %v504
      %v507 = vshrl.u32 %v468, 16
      %v509 = vshll.u32 %v468, 16
      %v511 = vrot.slane %v509, 1
      %v512 = vor.u32 %v507, %v511
      %v514 = vshrl.u32 %v469, 16
      %v516 = vshll.u32 %v469, 16
      %v518 = vrot.slane %v516, 1
      %v519 = vor.u32 %v514, %v518
      %v521 = vshrl.u32 %v470, 16
      %v523 = vshll.u32 %v470, 16
      %v525 = vrot.slane %v523, 1
      %v526 = vor.u32 %v521, %v525
      %527 = vrot.lane.b32.xlu0 %v477, 64
      %v528 = vpop.permute.xlu0 %527
      %529 = vrot.lane.b32.xlu0 %v484, 64
      %v530 = vpop.permute.xlu0 %529
      %531 = vrot.lane.b32.xlu0 %v491, 64
      %v532 = vpop.permute.xlu0 %531
      %533 = vrot.lane.b32.xlu0 %v498, 64
      %v534 = vpop.permute.xlu0 %533
      %535 = vrot.lane.b32.xlu0 %v505, 64
      %v536 = vpop.permute.xlu0 %535
      %537 = vrot.lane.b32.xlu0 %v512, 64
      %v538 = vpop.permute.xlu0 %537
      %539 = vrot.lane.b32.xlu0 %v519, 64
      %v540 = vpop.permute.xlu0 %539
      %541 = vrot.lane.b32.xlu0 %v526, 64
      %v542 = vpop.permute.xlu0 %541
      %v559 = vunpack.c.l.b16 %v415
      %v560 = vunpack.c.l.b16 %v423
      %v561 = vunpack.c.l.b16 %v416
      %v562 = vunpack.c.l.b16 %v424
      %v563 = vunpack.c.l.b16 %v417
      %v564 = vunpack.c.l.b16 %v425
      %v565 = vunpack.c.l.b16 %v418
      %v566 = vunpack.c.l.b16 %v426
      %v567 = vunpack.c.l.b16 %v419
      %v568 = vunpack.c.l.b16 %v427
      %v569 = vunpack.c.l.b16 %v420
      %v570 = vunpack.c.l.b16 %v428
      %v571 = vunpack.c.l.b16 %v421
      %v572 = vunpack.c.l.b16 %v429
      %v573 = vunpack.c.l.b16 %v422
      %v574 = vunpack.c.l.b16 %v430
      %v575 = vpack.c.b16 %v560, %v559
      %v576 = vpack.c.b16 %v562, %v561
      %v577 = vpack.c.b16 %v564, %v563
      %v578 = vpack.c.b16 %v566, %v565
      %v579 = vpack.c.b16 %v568, %v567
      %v580 = vpack.c.b16 %v570, %v569
      %v581 = vpack.c.b16 %v572, %v571
      %v582 = vpack.c.b16 %v574, %v573
      %v584 = vshrl.u32 %v575, 16
      %v586 = vshll.u32 %v575, 16
      %v588 = vrot.slane %v586, 1
      %v589 = vor.u32 %v584, %v588
      %v591 = vshrl.u32 %v576, 16
      %v593 = vshll.u32 %v576, 16
      %v595 = vrot.slane %v593, 1
      %v596 = vor.u32 %v591, %v595
      %v598 = vshrl.u32 %v577, 16
      %v600 = vshll.u32 %v577, 16
      %v602 = vrot.slane %v600, 1
      %v603 = vor.u32 %v598, %v602
      %v605 = vshrl.u32 %v578, 16
      %v607 = vshll.u32 %v578, 16
      %v609 = vrot.slane %v607, 1
      %v610 = vor.u32 %v605, %v609
      %v612 = vshrl.u32 %v579, 16
      %v614 = vshll.u32 %v579, 16
      %v616 = vrot.slane %v614, 1
      %v617 = vor.u32 %v612, %v616
      %v619 = vshrl.u32 %v580, 16
      %v621 = vshll.u32 %v580, 16
      %v623 = vrot.slane %v621, 1
      %v624 = vor.u32 %v619, %v623
      %v626 = vshrl.u32 %v581, 16
      %v628 = vshll.u32 %v581, 16
      %v630 = vrot.slane %v628, 1
      %v631 = vor.u32 %v626, %v630
      %v633 = vshrl.u32 %v582, 16
      %v635 = vshll.u32 %v582, 16
      %v637 = vrot.slane %v635, 1
      %v638 = vor.u32 %v633, %v637
      %639 = vrot.lane.b32.xlu0 %v589, 64
      %v640 = vpop.permute.xlu0 %639
      %641 = vrot.lane.b32.xlu0 %v596, 64
      %v642 = vpop.permute.xlu0 %641
      %643 = vrot.lane.b32.xlu0 %v603, 64
      %v644 = vpop.permute.xlu0 %643
      %645 = vrot.lane.b32.xlu0 %v610, 64
      %v646 = vpop.permute.xlu0 %645
      %647 = vrot.lane.b32.xlu0 %v617, 64
      %v648 = vpop.permute.xlu0 %647
      %649 = vrot.lane.b32.xlu0 %v624, 64
      %v650 = vpop.permute.xlu0 %649
      %651 = vrot.lane.b32.xlu0 %v631, 64
      %v652 = vpop.permute.xlu0 %651
      %653 = vrot.lane.b32.xlu0 %v638, 64
      %v654 = vpop.permute.xlu0 %653
      %vm655 = vcmask 523264
      %v658 = vsel %vm655, %v398, %v528
      %v661 = vsel %vm655, %v399, %v530
      %v664 = vsel %vm655, %v400, %v532
      %v667 = vsel %vm655, %v401, %v534
      %v670 = vsel %vm655, %v402, %v536
      %v673 = vsel %vm655, %v403, %v538
      %v676 = vsel %vm655, %v404, %v540
      %v679 = vsel %vm655, %v405, %v542
      %v682 = vsel %vm655, %v415, %v640
      %v685 = vsel %vm655, %v416, %v642
      %v688 = vsel %vm655, %v417, %v644
      %v691 = vsel %vm655, %v418, %v646
      %v694 = vsel %vm655, %v419, %v648
      %v697 = vsel %vm655, %v420, %v650
      %v700 = vsel %vm655, %v421, %v652
      %v703 = vsel %vm655, %v422, %v654
      %v720 = vunpack.c.l.b16 %v658
      %v721 = vunpack.c.l.b16 %v682
      %v722 = vunpack.c.l.b16 %v661
      %v723 = vunpack.c.l.b16 %v685
      %v724 = vunpack.c.l.b16 %v664
      %v725 = vunpack.c.l.b16 %v688
      %v726 = vunpack.c.l.b16 %v667
      %v727 = vunpack.c.l.b16 %v691
      %v728 = vunpack.c.l.b16 %v670
      %v729 = vunpack.c.l.b16 %v694
      %v730 = vunpack.c.l.b16 %v673
      %v731 = vunpack.c.l.b16 %v697
      %v732 = vunpack.c.l.b16 %v676
      %v733 = vunpack.c.l.b16 %v700
      %v734 = vunpack.c.l.b16 %v679
      %v735 = vunpack.c.l.b16 %v703
      %v736 = vld [vmem:[%s2] sm:$0xf]
      %v737 = vld [vmem:[%s2 + $0x4] sm:$0xf]
      %v738 = vld [vmem:[%s2 + $0x8] sm:$0xf]
      %v739 = vld [vmem:[%s2 + $0xc] sm:$0xf]
      %v740 = vld [vmem:[%s2 + $0x10] sm:$0xf]
      %v741 = vld [vmem:[%s2 + $0x14] sm:$0xf]
      %v742 = vld [vmem:[%s2 + $0x18] sm:$0xf]
      %v743 = vld [vmem:[%s2 + $0x1c] sm:$0xf]
      %v744 = vld [vmem:[%s2 + $0x20] sm:$0xf]
      %v745 = vld [vmem:[%s2 + $0x24] sm:$0xf]
      %v746 = vld [vmem:[%s2 + $0x28] sm:$0xf]
      %v747 = vld [vmem:[%s2 + $0x2c] sm:$0xf]
      %v748 = vld [vmem:[%s2 + $0x30] sm:$0xf]
      %v749 = vld [vmem:[%s2 + $0x34] sm:$0xf]
      %v750 = vld [vmem:[%s2 + $0x38] sm:$0xf]
      %v751 = vld [vmem:[%s2 + $0x3c] sm:$0xf]
      %v752 = vld [vmem:[%s2 + $0x40] sm:$0xf]
      %v753 = vld [vmem:[%s2 + $0x44] sm:$0xf]
      %v754 = vld [vmem:[%s2 + $0x48] sm:$0xf]
      %v755 = vld [vmem:[%s2 + $0x4c] sm:$0xf]
      %v756 = vld [vmem:[%s2 + $0x50] sm:$0xf]
      %v757 = vld [vmem:[%s2 + $0x54] sm:$0xf]
      %v758 = vld [vmem:[%s2 + $0x58] sm:$0xf]
      %v759 = vld [vmem:[%s2 + $0x5c] sm:$0xf]
      %v760 = vld [vmem:[%s2 + $0x60] sm:$0xf]
      %v761 = vld [vmem:[%s2 + $0x64] sm:$0xf]
      %v762 = vld [vmem:[%s2 + $0x68] sm:$0xf]
      %v763 = vld [vmem:[%s2 + $0x6c] sm:$0xf]
      %v764 = vld [vmem:[%s2 + $0x70] sm:$0xf]
      %v765 = vld [vmem:[%s2 + $0x74] sm:$0xf]
      %v766 = vld [vmem:[%s2 + $0x78] sm:$0xf]
      %v767 = vld [vmem:[%s2 + $0x7c] sm:$0xf]
      %v768 = vpack.c.b16 %v722, %v720
      %v769 = vpack.c.b16 %v723, %v721
      %v770 = vpack.c.b16 %v726, %v724
      %v771 = vpack.c.b16 %v727, %v725
      %v772 = vpack.c.b16 %v730, %v728
      %v773 = vpack.c.b16 %v731, %v729
      %v774 = vpack.c.b16 %v734, %v732
      %v775 = vpack.c.b16 %v735, %v733
      %v816 = vunpack.c.l.b16 %v736
      %v817 = vunpack.c.l.b16 %v737
      %v818 = vunpack.c.l.b16 %v738
      %v819 = vunpack.c.l.b16 %v739
      %v820 = vunpack.c.l.b16 %v740
      %v821 = vunpack.c.l.b16 %v741
      %v822 = vunpack.c.l.b16 %v742
      %v823 = vunpack.c.l.b16 %v743
      %v824 = vunpack.c.l.b16 %v744
      %v825 = vunpack.c.l.b16 %v745
      %v826 = vunpack.c.l.b16 %v746
      %v827 = vunpack.c.l.b16 %v747
      %v828 = vunpack.c.l.b16 %v748
      %v829 = vunpack.c.l.b16 %v749
      %v830 = vunpack.c.l.b16 %v750
      %v831 = vunpack.c.l.b16 %v751
      %v832 = vunpack.c.l.b16 %v752
      %v833 = vunpack.c.l.b16 %v753
      %v834 = vunpack.c.l.b16 %v754
      %v835 = vunpack.c.l.b16 %v755
      %v836 = vunpack.c.l.b16 %v756
      %v837 = vunpack.c.l.b16 %v757
      %v838 = vunpack.c.l.b16 %v758
      %v839 = vunpack.c.l.b16 %v759
      %v840 = vunpack.c.l.b16 %v760
      %v841 = vunpack.c.l.b16 %v761
      %v842 = vunpack.c.l.b16 %v762
      %v843 = vunpack.c.l.b16 %v763
      %v844 = vunpack.c.l.b16 %v764
      %v845 = vunpack.c.l.b16 %v765
      %v846 = vunpack.c.l.b16 %v766
      %v847 = vunpack.c.l.b16 %v767
      %v848 = vpack.c.b16 %v817, %v816
      %v849 = vpack.c.b16 %v819, %v818
      %v850 = vpack.c.b16 %v821, %v820
      %v851 = vpack.c.b16 %v823, %v822
      %v852 = vpack.c.b16 %v825, %v824
      %v853 = vpack.c.b16 %v827, %v826
      %v854 = vpack.c.b16 %v829, %v828
      %v855 = vpack.c.b16 %v831, %v830
      %v856 = vpack.c.b16 %v833, %v832
      %v857 = vpack.c.b16 %v835, %v834
      %v858 = vpack.c.b16 %v837, %v836
      %v859 = vpack.c.b16 %v839, %v838
      %v860 = vpack.c.b16 %v841, %v840
      %v861 = vpack.c.b16 %v843, %v842
      %v862 = vpack.c.b16 %v845, %v844
      %v863 = vpack.c.b16 %v847, %v846
      %880 = vmatprep.subr.bf16.mxu0 0
      %881 = vmatpush1.bf16.msra.mxu0 %v848
      %882 = vmatprep.subr.bf16.mxu0 0
      %883 = vmatpush1.bf16.msra.mxu0 %v849
      %884 = vmatprep.subr.bf16.mxu0 0
      %885 = vmatpush1.bf16.msra.mxu0 %v850
      %886 = vmatprep.subr.bf16.mxu0 0
      %887 = vmatpush1.bf16.msra.mxu0 %v851
      %888 = vmatprep.subr.bf16.mxu0 0
      %889 = vmatpush1.bf16.msra.mxu0 %v852
      %890 = vmatprep.subr.bf16.mxu0 0
      %891 = vmatpush1.bf16.msra.mxu0 %v853
      %892 = vmatprep.subr.bf16.mxu0 0
      %893 = vmatpush1.bf16.msra.mxu0 %v854
      %894 = vmatprep.subr.bf16.mxu0 0
      %895 = vmatpush1.bf16.msra.mxu0 %v855
      %896 = vmatprep.subr.bf16.mxu0 0
      %897 = vmatpush1.bf16.msra.mxu0 %v856
      %898 = vmatprep.subr.bf16.mxu0 0
      %899 = vmatpush1.bf16.msra.mxu0 %v857
      %900 = vmatprep.subr.bf16.mxu0 0
      %901 = vmatpush1.bf16.msra.mxu0 %v858
      %902 = vmatprep.subr.bf16.mxu0 0
      %903 = vmatpush1.bf16.msra.mxu0 %v859
      %904 = vmatprep.subr.bf16.mxu0 0
      %905 = vmatpush1.bf16.msra.mxu0 %v860
      %906 = vmatprep.subr.bf16.mxu0 0
      %907 = vmatpush1.bf16.msra.mxu0 %v861
      %908 = vmatprep.subr.bf16.mxu0 0
      %909 = vmatpush1.bf16.msra.mxu0 %v862
      %910 = vmatprep.subr.bf16.mxu0 0
      %911 = vmatpush1.bf16.msra.mxu0 %v863
      %912 = vmatprep.mubr.bf16.mxu0 %v769
      %913 = vmatmul.mubr.bf16.gmra.mrb[0].mxu0 %v768
      %v914 = vpop.f32.mrb[0].mxu0
      %v915 = vadd.f32 0.0, %v914
      %v916 = vpop.f32.mrb[0].mxu0
      %v917 = vpop.f32.mrb[0].mxu0
      %v918 = vadd.f32 0.0, %v917
      %v919 = vpop.f32.mrb[0].mxu0
      %920 = vmatprep.mubr.bf16.mxu0 %v771
      %921 = vmatmul.mubr.bf16.gmra.mrb[0].mxu0 %v770
      %v922 = vpop.f32.mrb[0].mxu0
      %v923 = vadd.f32 0.0, %v922
      %v924 = vpop.f32.mrb[0].mxu0
      %v925 = vpop.f32.mrb[0].mxu0
      %v926 = vadd.f32 0.0, %v925
      %v927 = vpop.f32.mrb[0].mxu0
      %928 = vmatprep.mubr.bf16.mxu0 %v773
      %929 = vmatmul.mubr.bf16.gmra.mrb[0].mxu0 %v772
      %v930 = vpop.f32.mrb[0].mxu0
      %v931 = vadd.f32 0.0, %v930
      %v932 = vpop.f32.mrb[0].mxu0
      %v933 = vpop.f32.mrb[0].mxu0
      %v934 = vadd.f32 0.0, %v933
      %v935 = vpop.f32.mrb[0].mxu0
      %936 = vmatprep.mubr.bf16.mxu0 %v775
      %937 = vmatmul.mubr.bf16.gmra.mrb[0].mxu0 %v774
      %v938 = vpop.f32.mrb[0].mxu0
      %v939 = vadd.f32 0.0, %v938
      %v940 = vpop.f32.mrb[0].mxu0
      %v941 = vpop.f32.mrb[0].mxu0
      %v942 = vadd.f32 0.0, %v941
      %v943 = vpop.f32.mrb[0].mxu0
      %944 = vdwg.mxu0
      %v945 = vld [vmem:[%s3] sm:$0x1]
      %v947 = vlaneseq
      %v948 = vshrl.u32 %v947, 7
      %v949 = vsub.s32 0, %v948
      %v950 = vrot.slane %v945, %v949
      %v952 = vmul.f32 %v915, %v950
      %v953 = vmul.f32 %v918, %v950
      %v954 = vmul.f32 %v923, %v950
      %v955 = vmul.f32 %v926, %v950
      %v956 = vmul.f32 %v931, %v950
      %v957 = vmul.f32 %v934, %v950
      %v958 = vmul.f32 %v939, %v950
      %v959 = vmul.f32 %v942, %v950
      %v960 = vld [vmem:[%s4] sm:$0x1]
      %v962 = vlaneseq
      %v963 = vshrl.u32 %v962, 7
      %v964 = vsub.s32 0, %v963
      %v965 = vrot.slane %v960, %v964
      %v967 = vadd.f32 %v952, %v965
      %v968 = vadd.f32 %v953, %v965
      %v969 = vadd.f32 %v954, %v965
      %v970 = vadd.f32 %v955, %v965
      %v971 = vadd.f32 %v956, %v965
      %v972 = vadd.f32 %v957, %v965
      %v973 = vadd.f32 %v958, %v965
      %v974 = vadd.f32 %v959, %v965
      %v975 = vmul.f32 %v967, 0.2
      %v976 = vmul.f32 %v968, 0.2
      %v977 = vmul.f32 %v969, 0.2
      %v978 = vmul.f32 %v970, 0.2
      %v979 = vmul.f32 %v971, 0.2
      %v980 = vmul.f32 %v972, 0.2
      %v981 = vmul.f32 %v973, 0.2
      %v982 = vmul.f32 %v974, 0.2
      %v983 = vmax.f32 %v967, %v975
      %v984 = vmax.f32 %v968, %v976
      %v985 = vmax.f32 %v969, %v977
      %v986 = vmax.f32 %v970, %v978
      %v987 = vmax.f32 %v971, %v979
      %v988 = vmax.f32 %v972, %v980
      %v989 = vmax.f32 %v973, %v981
      %v990 = vmax.f32 %v974, %v982
      %v991 = vpack.c.bf16 %v984, %v983
      %v992 = vpack.c.bf16 %v986, %v985
      %v993 = vpack.c.bf16 %v988, %v987
      %v994 = vpack.c.bf16 %v990, %v989
      %v999 = vunpack.c.l.b16 %v991
      %v1000 = vunpack.c.h.b16 %v991
      %v1001 = vunpack.c.l.b16 %v992
      %v1002 = vunpack.c.h.b16 %v992
      %v1003 = vunpack.c.l.b16 %v993
      %v1004 = vunpack.c.h.b16 %v993
      %v1005 = vunpack.c.l.b16 %v994
      %v1006 = vunpack.c.h.b16 %v994
      %v1007 = vpack.c.b16 %v999, %v999
      %v1008 = vpack.c.b16 %v1000, %v1000
      %v1009 = vpack.c.b16 %v1001, %v1001
      %v1010 = vpack.c.b16 %v1002, %v1002
      %v1011 = vpack.c.b16 %v1003, %v1003
      %v1012 = vpack.c.b16 %v1004, %v1004
      %v1013 = vpack.c.b16 %v1005, %v1005
      %v1014 = vpack.c.b16 %v1006, %v1006
      %vm1023 = vcmask 125952
      %1024 = vst.msk [vmem:[#allocation2] sm:$0xf] %vm1023, 0
      %vm1025 = vcmask 122880
      %vm1026 = vsmask.f32 256
      %vm1027 = vmand %vm1025, %vm1026
      %v1028 = vld [vmem:[#allocation2 + $0x4] sm:$0x1]
      %v1029 = vsel %vm1027, 0, %v1028
      %1030 = vst [vmem:[#allocation2 + $0x4] sm:$0x1] %v1029
      %1031 = vst.msk [vmem:[#allocation2 + $0x8] sm:$0xf] %vm1023, 0
      %v1032 = vld [vmem:[#allocation2 + $0xc] sm:$0x1]
      %v1033 = vsel %vm1027, 0, %v1032
      %1034 = vst [vmem:[#allocation2 + $0xc] sm:$0x1] %v1033
      %1035 = vst.msk [vmem:[#allocation2 + $0x10] sm:$0xf] %vm1023, 0
      %v1036 = vld [vmem:[#allocation2 + $0x14] sm:$0x1]
      %v1037 = vsel %vm1027, 0, %v1036
      %1038 = vst [vmem:[#allocation2 + $0x14] sm:$0x1] %v1037
      %1039 = vst.msk [vmem:[#allocation2 + $0x18] sm:$0xf] %vm1023, 0
      %v1040 = vld [vmem:[#allocation2 + $0x1c] sm:$0x1]
      %v1041 = vsel %vm1027, 0, %v1040
      %1042 = vst [vmem:[#allocation2 + $0x1c] sm:$0x1] %v1041
      %1043 = vst.msk [vmem:[#allocation2 + $0x20] sm:$0xf] %vm1023, 0
      %v1044 = vld [vmem:[#allocation2 + $0x24] sm:$0x1]
      %v1045 = vsel %vm1027, 0, %v1044
      %1046 = vst [vmem:[#allocation2 + $0x24] sm:$0x1] %v1045
      %1047 = vst.msk [vmem:[#allocation2 + $0x28] sm:$0xf] %vm1023, 0
      %v1048 = vld [vmem:[#allocation2 + $0x2c] sm:$0x1]
      %v1049 = vsel %vm1027, 0, %v1048
      %1050 = vst [vmem:[#allocation2 + $0x2c] sm:$0x1] %v1049
      %1051 = vst.msk [vmem:[#allocation2 + $0x30] sm:$0xf] %vm1023, 0
      %v1052 = vld [vmem:[#allocation2 + $0x34] sm:$0x1]
      %v1053 = vsel %vm1027, 0, %v1052
      %1054 = vst [vmem:[#allocation2 + $0x34] sm:$0x1] %v1053
      %1055 = vst.msk [vmem:[#allocation2 + $0x38] sm:$0xf] %vm1023, 0
      %v1056 = vld [vmem:[#allocation2 + $0x3c] sm:$0x1]
      %v1057 = vsel %vm1027, 0, %v1056
      %1058 = vst [vmem:[#allocation2 + $0x3c] sm:$0x1] %v1057
      %1059 = vst.msk [vmem:[#allocation2 + $0x40] sm:$0xf] %vm1023, 0
      %v1060 = vld [vmem:[#allocation2 + $0x44] sm:$0x1]
      %v1061 = vsel %vm1027, 0, %v1060
      %1062 = vst [vmem:[#allocation2 + $0x44] sm:$0x1] %v1061
      %1063 = vst.msk [vmem:[#allocation2 + $0x48] sm:$0xf] %vm1023, 0
      %v1064 = vld [vmem:[#allocation2 + $0x4c] sm:$0x1]
      %v1065 = vsel %vm1027, 0, %v1064
      %1066 = vst [vmem:[#allocation2 + $0x4c] sm:$0x1] %v1065
      %1067 = vst.msk [vmem:[#allocation2 + $0x50] sm:$0xf] %vm1023, 0
      %v1068 = vld [vmem:[#allocation2 + $0x54] sm:$0x1]
      %v1069 = vsel %vm1027, 0, %v1068
      %1070 = vst [vmem:[#allocation2 + $0x54] sm:$0x1] %v1069
      %1071 = vst.msk [vmem:[#allocation2 + $0x58] sm:$0xf] %vm1023, 0
      %v1072 = vld [vmem:[#allocation2 + $0x5c] sm:$0x1]
      %v1073 = vsel %vm1027, 0, %v1072
      %1074 = vst [vmem:[#allocation2 + $0x5c] sm:$0x1] %v1073
      %1075 = vst.msk [vmem:[#allocation2 + $0x60] sm:$0xf] %vm1023, 0
      %v1076 = vld [vmem:[#allocation2 + $0x64] sm:$0x1]
      %v1077 = vsel %vm1027, 0, %v1076
      %1078 = vst [vmem:[#allocation2 + $0x64] sm:$0x1] %v1077
      %1079 = vst.msk [vmem:[#allocation2 + $0x68] sm:$0xf] %vm1023, 0
      %v1080 = vld [vmem:[#allocation2 + $0x6c] sm:$0x1]
      %v1081 = vsel %vm1027, 0, %v1080
      %1082 = vst [vmem:[#allocation2 + $0x6c] sm:$0x1] %v1081
      %1083 = vst.msk [vmem:[#allocation2 + $0x70] sm:$0xf] %vm1023, 0
      %v1084 = vld [vmem:[#allocation2 + $0x74] sm:$0x1]
      %v1085 = vsel %vm1027, 0, %v1084
      %1086 = vst [vmem:[#allocation2 + $0x74] sm:$0x1] %v1085
      %1087 = vst.msk [vmem:[#allocation2 + $0x78] sm:$0xf] %vm1023, 0
      %v1088 = vld [vmem:[#allocation2 + $0x7c] sm:$0x1]
      %v1089 = vsel %vm1027, 0, %v1088
      %1090 = vst [vmem:[#allocation2 + $0x7c] sm:$0x1] %v1089
      %1091 = vst.msk [vmem:[#allocation2 + $0x80] sm:$0xf] %vm1023, 0
      %v1092 = vld [vmem:[#allocation2 + $0x84] sm:$0x1]
      %v1093 = vsel %vm1027, 0, %v1092
      %1094 = vst [vmem:[#allocation2 + $0x84] sm:$0x1] %v1093
      %1095 = vst.msk [vmem:[#allocation2 + $0x88] sm:$0xf] %vm1023, 0
      %v1096 = vld [vmem:[#allocation2 + $0x8c] sm:$0x1]
      %v1097 = vsel %vm1027, 0, %v1096
      %1098 = vst [vmem:[#allocation2 + $0x8c] sm:$0x1] %v1097
      %1099 = vst.msk [vmem:[#allocation2 + $0x90] sm:$0xf] %vm1023, 0
      %v1100 = vld [vmem:[#allocation2 + $0x94] sm:$0x1]
      %v1101 = vsel %vm1027, 0, %v1100
      %1102 = vst [vmem:[#allocation2 + $0x94] sm:$0x1] %v1101
      %1103 = vst.msk [vmem:[#allocation2 + $0x98] sm:$0xf] %vm1023, 0
      %v1104 = vld [vmem:[#allocation2 + $0x9c] sm:$0x1]
      %v1105 = vsel %vm1027, 0, %v1104
      %1106 = vst [vmem:[#allocation2 + $0x9c] sm:$0x1] %v1105
      %1107 = vst.msk [vmem:[#allocation2 + $0xa0] sm:$0xf] %vm1023, 0
      %v1108 = vld [vmem:[#allocation2 + $0xa4] sm:$0x1]
      %v1109 = vsel %vm1027, 0, %v1108
      %1110 = vst [vmem:[#allocation2 + $0xa4] sm:$0x1] %v1109
      %1111 = vst.msk [vmem:[#allocation2 + $0xa8] sm:$0xf] %vm1023, 0
      %v1112 = vld [vmem:[#allocation2 + $0xac] sm:$0x1]
      %v1113 = vsel %vm1027, 0, %v1112
      %1114 = vst [vmem:[#allocation2 + $0xac] sm:$0x1] %v1113
      %1115 = vst.msk [vmem:[#allocation2 + $0xb0] sm:$0xf] %vm1023, 0
      %v1116 = vld [vmem:[#allocation2 + $0xb4] sm:$0x1]
      %v1117 = vsel %vm1027, 0, %v1116
      %1118 = vst [vmem:[#allocation2 + $0xb4] sm:$0x1] %v1117
      %1119 = vst.msk [vmem:[#allocation2 + $0xb8] sm:$0xf] %vm1023, 0
      %v1120 = vld [vmem:[#allocation2 + $0xbc] sm:$0x1]
      %v1121 = vsel %vm1027, 0, %v1120
      %1122 = vst [vmem:[#allocation2 + $0xbc] sm:$0x1] %v1121
      %1123 = vst.msk [vmem:[#allocation2 + $0xc0] sm:$0xf] %vm1023, 0
      %v1124 = vld [vmem:[#allocation2 + $0xc4] sm:$0x1]
      %v1125 = vsel %vm1027, 0, %v1124
      %1126 = vst [vmem:[#allocation2 + $0xc4] sm:$0x1] %v1125
      %1127 = vst.msk [vmem:[#allocation2 + $0xc8] sm:$0xf] %vm1023, 0
      %v1128 = vld [vmem:[#allocation2 + $0xcc] sm:$0x1]
      %v1129 = vsel %vm1027, 0, %v1128
      %1130 = vst [vmem:[#allocation2 + $0xcc] sm:$0x1] %v1129
      %1131 = vst.msk [vmem:[#allocation2 + $0xd0] sm:$0xf] %vm1023, 0
      %v1132 = vld [vmem:[#allocation2 + $0xd4] sm:$0x1]
      %v1133 = vsel %vm1027, 0, %v1132
      %1134 = vst [vmem:[#allocation2 + $0xd4] sm:$0x1] %v1133
      %1135 = vst.msk [vmem:[#allocation2 + $0xd8] sm:$0xf] %vm1023, 0
      %v1136 = vld [vmem:[#allocation2 + $0xdc] sm:$0x1]
      %v1137 = vsel %vm1027, 0, %v1136
      %1138 = vst [vmem:[#allocation2 + $0xdc] sm:$0x1] %v1137
      %1139 = vst.msk [vmem:[#allocation2 + $0xe0] sm:$0xf] %vm1023, 0
      %v1140 = vld [vmem:[#allocation2 + $0xe4] sm:$0x1]
      %v1141 = vsel %vm1027, 0, %v1140
      %1142 = vst [vmem:[#allocation2 + $0xe4] sm:$0x1] %v1141
      %1143 = vst.msk [vmem:[#allocation2 + $0xe8] sm:$0xf] %vm1023, 0
      %v1144 = vld [vmem:[#allocation2 + $0xec] sm:$0x1]
      %v1145 = vsel %vm1027, 0, %v1144
      %1146 = vst [vmem:[#allocation2 + $0xec] sm:$0x1] %v1145
      %1147 = vst.msk [vmem:[#allocation2 + $0xf0] sm:$0xf] %vm1023, 0
      %v1148 = vld [vmem:[#allocation2 + $0xf4] sm:$0x1]
      %v1149 = vsel %vm1027, 0, %v1148
      %1150 = vst [vmem:[#allocation2 + $0xf4] sm:$0x1] %v1149
      %1151 = vst.msk [vmem:[#allocation2 + $0xf8] sm:$0xf] %vm1023, 0
      %v1152 = vld [vmem:[#allocation2 + $0xfc] sm:$0x1]
      %v1153 = vsel %vm1027, 0, %v1152
      %1154 = vst [vmem:[#allocation2 + $0xfc] sm:$0x1] %v1153
      %1155 = vst.msk [vmem:[#allocation2 + $0x100] sm:$0xf] %vm1023, 0
      %v1156 = vld [vmem:[#allocation2 + $0x104] sm:$0x1]
      %v1157 = vsel %vm1027, 0, %v1156
      %1158 = vst [vmem:[#allocation2 + $0x104] sm:$0x1] %v1157
      %1159 = vst.msk [vmem:[#allocation2 + $0x108] sm:$0xf] %vm1023, 0
      %v1160 = vld [vmem:[#allocation2 + $0x10c] sm:$0x1]
      %v1161 = vsel %vm1027, 0, %v1160
      %1162 = vst [vmem:[#allocation2 + $0x10c] sm:$0x1] %v1161
      %1163 = vst.msk [vmem:[#allocation2 + $0x110] sm:$0xf] %vm1023, 0
      %v1164 = vld [vmem:[#allocation2 + $0x114] sm:$0x1]
      %v1165 = vsel %vm1027, 0, %v1164
      %1166 = vst [vmem:[#allocation2 + $0x114] sm:$0x1] %v1165
      %1167 = vst.msk [vmem:[#allocation2 + $0x118] sm:$0xf] %vm1023, 0
      %v1168 = vld [vmem:[#allocation2 + $0x11c] sm:$0x1]
      %v1169 = vsel %vm1027, 0, %v1168
      %1170 = vst [vmem:[#allocation2 + $0x11c] sm:$0x1] %v1169
      %1171 = vst.msk [vmem:[#allocation2] sm:$0xf] %vm1023, %v1007
      %1172 = vst.msk [vmem:[#allocation2 + $0x8] sm:$0xf] %vm1023, %v1008
      %1173 = vst.msk [vmem:[#allocation2 + $0x10] sm:$0xf] %vm1023, %v1009
      %1174 = vst.msk [vmem:[#allocation2 + $0x18] sm:$0xf] %vm1023, %v1010
      %1175 = vst.msk [vmem:[#allocation2 + $0x20] sm:$0xf] %vm1023, %v1011
      %1176 = vst.msk [vmem:[#allocation2 + $0x28] sm:$0xf] %vm1023, %v1012
      %1177 = vst.msk [vmem:[#allocation2 + $0x30] sm:$0xf] %vm1023, %v1013
      %1178 = vst.msk [vmem:[#allocation2 + $0x38] sm:$0xf] %vm1023, %v1014
      %v1180 = vshrl.u32 %v1007, 16
      %v1182 = vrot.slane %v1180, 7
      %v1183 = vshll.u32 %v1007, 16
      %v1185 = vor.u32 %v1182, %v1183
      %v1186 = vrot.slane %v1182, 4
      %v1188 = vshrl.u32 %v1008, 16
      %v1190 = vrot.slane %v1188, 7
      %v1191 = vshll.u32 %v1008, 16
      %v1193 = vor.u32 %v1190, %v1191
      %v1194 = vrot.slane %v1190, 4
      %v1196 = vshrl.u32 %v1009, 16
      %v1198 = vrot.slane %v1196, 7
      %v1199 = vshll.u32 %v1009, 16
      %v1201 = vor.u32 %v1198, %v1199
      %v1202 = vrot.slane %v1198, 4
      %v1204 = vshrl.u32 %v1010, 16
      %v1206 = vrot.slane %v1204, 7
      %v1207 = vshll.u32 %v1010, 16
      %v1209 = vor.u32 %v1206, %v1207
      %v1210 = vrot.slane %v1206, 4
      %v1212 = vshrl.u32 %v1011, 16
      %v1214 = vrot.slane %v1212, 7
      %v1215 = vshll.u32 %v1011, 16
      %v1217 = vor.u32 %v1214, %v1215
      %v1218 = vrot.slane %v1214, 4
      %v1220 = vshrl.u32 %v1012, 16
      %v1222 = vrot.slane %v1220, 7
      %v1223 = vshll.u32 %v1012, 16
      %v1225 = vor.u32 %v1222, %v1223
      %v1226 = vrot.slane %v1222, 4
      %v1228 = vshrl.u32 %v1013, 16
      %v1230 = vrot.slane %v1228, 7
      %v1231 = vshll.u32 %v1013, 16
      %v1233 = vor.u32 %v1230, %v1231
      %v1234 = vrot.slane %v1230, 4
      %v1236 = vshrl.u32 %v1014, 16
      %v1238 = vrot.slane %v1236, 7
      %v1239 = vshll.u32 %v1014, 16
      %v1241 = vor.u32 %v1238, %v1239
      %v1242 = vrot.slane %v1238, 4
      %1243 = vrot.lane.b32.xlu0 %v1185, 112
      %v1244 = vpop.permute.xlu0 %1243
      %1245 = vrot.lane.b32.xlu0 %v1186, 112
      %v1246 = vpop.permute.xlu0 %1245
      %1247 = vrot.lane.b32.xlu0 %v1193, 112
      %v1248 = vpop.permute.xlu0 %1247
      %1249 = vrot.lane.b32.xlu0 %v1194, 112
      %v1250 = vpop.permute.xlu0 %1249
      %1251 = vrot.lane.b32.xlu0 %v1201, 112
      %v1252 = vpop.permute.xlu0 %1251
      %1253 = vrot.lane.b32.xlu0 %v1202, 112
      %v1254 = vpop.permute.xlu0 %1253
      %1255 = vrot.lane.b32.xlu0 %v1209, 112
      %v1256 = vpop.permute.xlu0 %1255
      %1257 = vrot.lane.b32.xlu0 %v1210, 112
      %v1258 = vpop.permute.xlu0 %1257
      %1259 = vrot.lane.b32.xlu0 %v1217, 112
      %v1260 = vpop.permute.xlu0 %1259
      %1261 = vrot.lane.b32.xlu0 %v1218, 112
      %v1262 = vpop.permute.xlu0 %1261
      %1263 = vrot.lane.b32.xlu0 %v1225, 112
      %v1264 = vpop.permute.xlu0 %1263
      %1265 = vrot.lane.b32.xlu0 %v1226, 112
      %v1266 = vpop.permute.xlu0 %1265
      %1267 = vrot.lane.b32.xlu0 %v1233, 112
      %v1268 = vpop.permute.xlu0 %1267
      %1269 = vrot.lane.b32.xlu0 %v1234, 112
      %v1270 = vpop.permute.xlu0 %1269
      %1271 = vrot.lane.b32.xlu0 %v1241, 112
      %v1272 = vpop.permute.xlu0 %1271
      %1273 = vrot.lane.b32.xlu0 %v1242, 112
      %v1274 = vpop.permute.xlu0 %1273
      %s1291 = scalar_lea.vmem [#allocation2], 72
      %vm1292 = vcmask 125952
      %vm1293 = vsmask.f32 7938
      %vm1294 = vmand %vm1292, %vm1293
      %v1295 = vld [vmem:[%s1291] sm:$0xf]
      %v1296 = vsel %vm1294, %v1244, %v1295
      %1297 = vst [vmem:[%s1291] sm:$0xf] %v1296
      %v1298 = vld [vmem:[%s1291 + $0x4] sm:$0x1]
      %v1299 = vsel %vm1027, %v1246, %v1298
      %1300 = vst [vmem:[%s1291 + $0x4] sm:$0x1] %v1299
      %v1301 = vld [vmem:[%s1291 + $0x8] sm:$0xf]
      %v1302 = vsel %vm1294, %v1248, %v1301
      %1303 = vst [vmem:[%s1291 + $0x8] sm:$0xf] %v1302
      %v1304 = vld [vmem:[%s1291 + $0xc] sm:$0x1]
      %v1305 = vsel %vm1027, %v1250, %v1304
      %1306 = vst [vmem:[%s1291 + $0xc] sm:$0x1] %v1305
      %v1307 = vld [vmem:[%s1291 + $0x10] sm:$0xf]
      %v1308 = vsel %vm1294, %v1252, %v1307
      %1309 = vst [vmem:[%s1291 + $0x10] sm:$0xf] %v1308
      %v1310 = vld [vmem:[%s1291 + $0x14] sm:$0x1]
      %v1311 = vsel %vm1027, %v1254, %v1310
      %1312 = vst [vmem:[%s1291 + $0x14] sm:$0x1] %v1311
      %v1313 = vld [vmem:[%s1291 + $0x18] sm:$0xf]
      %v1314 = vsel %vm1294, %v1256, %v1313
      %1315 = vst [vmem:[%s1291 + $0x18] sm:$0xf] %v1314
      %v1316 = vld [vmem:[%s1291 + $0x1c] sm:$0x1]
      %v1317 = vsel %vm1027, %v1258, %v1316
      %1318 = vst [vmem:[%s1291 + $0x1c] sm:$0x1] %v1317
      %v1319 = vld [vmem:[%s1291 + $0x20] sm:$0xf]
      %v1320 = vsel %vm1294, %v1260, %v1319
      %1321 = vst [vmem:[%s1291 + $0x20] sm:$0xf] %v1320
      %v1322 = vld [vmem:[%s1291 + $0x24] sm:$0x1]
      %v1323 = vsel %vm1027, %v1262, %v1322
      %1324 = vst [vmem:[%s1291 + $0x24] sm:$0x1] %v1323
      %v1325 = vld [vmem:[%s1291 + $0x28] sm:$0xf]
      %v1326 = vsel %vm1294, %v1264, %v1325
      %1327 = vst [vmem:[%s1291 + $0x28] sm:$0xf] %v1326
      %v1328 = vld [vmem:[%s1291 + $0x2c] sm:$0x1]
      %v1329 = vsel %vm1027, %v1266, %v1328
      %1330 = vst [vmem:[%s1291 + $0x2c] sm:$0x1] %v1329
      %v1331 = vld [vmem:[%s1291 + $0x30] sm:$0xf]
      %v1332 = vsel %vm1294, %v1268, %v1331
      %1333 = vst [vmem:[%s1291 + $0x30] sm:$0xf] %v1332
      %v1334 = vld [vmem:[%s1291 + $0x34] sm:$0x1]
      %v1335 = vsel %vm1027, %v1270, %v1334
      %1336 = vst [vmem:[%s1291 + $0x34] sm:$0x1] %v1335
      %v1337 = vld [vmem:[%s1291 + $0x38] sm:$0xf]
      %v1338 = vsel %vm1294, %v1272, %v1337
      %1339 = vst [vmem:[%s1291 + $0x38] sm:$0xf] %v1338
      %v1340 = vld [vmem:[%s1291 + $0x3c] sm:$0x1]
      %v1341 = vsel %vm1027, %v1274, %v1340
      %1342 = vst [vmem:[%s1291 + $0x3c] sm:$0x1] %v1341
      %1343 = vrot.lane.b32.xlu0 %v1007, 96
      %v1344 = vpop.permute.xlu0 %1343
      %1345 = vrot.lane.b32.xlu0 %v1008, 96
      %v1346 = vpop.permute.xlu0 %1345
      %1347 = vrot.lane.b32.xlu0 %v1009, 96
      %v1348 = vpop.permute.xlu0 %1347
      %1349 = vrot.lane.b32.xlu0 %v1010, 96
      %v1350 = vpop.permute.xlu0 %1349
      %1351 = vrot.lane.b32.xlu0 %v1011, 96
      %v1352 = vpop.permute.xlu0 %1351
      %1353 = vrot.lane.b32.xlu0 %v1012, 96
      %v1354 = vpop.permute.xlu0 %1353
      %1355 = vrot.lane.b32.xlu0 %v1013, 96
      %v1356 = vpop.permute.xlu0 %1355
      %1357 = vrot.lane.b32.xlu0 %v1014, 96
      %v1358 = vpop.permute.xlu0 %1357
      %s1367 = scalar_lea.vmem [#allocation2], 152
      %1368 = vst.msk [vmem:[%s1367] sm:$0xf] %vm1023, %v1344
      %1369 = vst.msk [vmem:[%s1367 + $0x8] sm:$0xf] %vm1023, %v1346
      %1370 = vst.msk [vmem:[%s1367 + $0x10] sm:$0xf] %vm1023, %v1348
      %1371 = vst.msk [vmem:[%s1367 + $0x18] sm:$0xf] %vm1023, %v1350
      %1372 = vst.msk [vmem:[%s1367 + $0x20] sm:$0xf] %vm1023, %v1352
      %1373 = vst.msk [vmem:[%s1367 + $0x28] sm:$0xf] %vm1023, %v1354
      %1374 = vst.msk [vmem:[%s1367 + $0x30] sm:$0xf] %vm1023, %v1356
      %1375 = vst.msk [vmem:[%s1367 + $0x38] sm:$0xf] %vm1023, %v1358
      %1376 = vrot.lane.b32.xlu0 %v1185, 80
      %v1377 = vpop.permute.xlu0 %1376
      %1378 = vrot.lane.b32.xlu0 %v1186, 80
      %v1379 = vpop.permute.xlu0 %1378
      %1380 = vrot.lane.b32.xlu0 %v1193, 80
      %v1381 = vpop.permute.xlu0 %1380
      %1382 = vrot.lane.b32.xlu0 %v1194, 80
      %v1383 = vpop.permute.xlu0 %1382
      %1384 = vrot.lane.b32.xlu0 %v1201, 80
      %v1385 = vpop.permute.xlu0 %1384
      %1386 = vrot.lane.b32.xlu0 %v1202, 80
      %v1387 = vpop.permute.xlu0 %1386
      %1388 = vrot.lane.b32.xlu0 %v1209, 80
      %v1389 = vpop.permute.xlu0 %1388
      %1390 = vrot.lane.b32.xlu0 %v1210, 80
      %v1391 = vpop.permute.xlu0 %1390
      %1392 = vrot.lane.b32.xlu0 %v1217, 80
      %v1393 = vpop.permute.xlu0 %1392
      %1394 = vrot.lane.b32.xlu0 %v1218, 80
      %v1395 = vpop.permute.xlu0 %1394
      %1396 = vrot.lane.b32.xlu0 %v1225, 80
      %v1397 = vpop.permute.xlu0 %1396
      %1398 = vrot.lane.b32.xlu0 %v1226, 80
      %v1399 = vpop.permute.xlu0 %1398
      %1400 = vrot.lane.b32.xlu0 %v1233, 80
      %v1401 = vpop.permute.xlu0 %1400
      %1402 = vrot.lane.b32.xlu0 %v1234, 80
      %v1403 = vpop.permute.xlu0 %1402
      %1404 = vrot.lane.b32.xlu0 %v1241, 80
      %v1405 = vpop.permute.xlu0 %1404
      %1406 = vrot.lane.b32.xlu0 %v1242, 80
      %v1407 = vpop.permute.xlu0 %1406
      %s1424 = scalar_lea.vmem [#allocation2], 224
      %v1425 = vld [vmem:[%s1424] sm:$0xf]
      %v1426 = vsel %vm1294, %v1377, %v1425
      %1427 = vst [vmem:[%s1424] sm:$0xf] %v1426
      %v1428 = vld [vmem:[%s1424 + $0x4] sm:$0x1]
      %v1429 = vsel %vm1027, %v1379, %v1428
      %1430 = vst [vmem:[%s1424 + $0x4] sm:$0x1] %v1429
      %v1431 = vld [vmem:[%s1424 + $0x8] sm:$0xf]
      %v1432 = vsel %vm1294, %v1381, %v1431
      %1433 = vst [vmem:[%s1424 + $0x8] sm:$0xf] %v1432
      %v1434 = vld [vmem:[%s1424 + $0xc] sm:$0x1]
      %v1435 = vsel %vm1027, %v1383, %v1434
      %1436 = vst [vmem:[%s1424 + $0xc] sm:$0x1] %v1435
      %v1437 = vld [vmem:[%s1424 + $0x10] sm:$0xf]
      %v1438 = vsel %vm1294, %v1385, %v1437
      %1439 = vst [vmem:[%s1424 + $0x10] sm:$0xf] %v1438
      %v1440 = vld [vmem:[%s1424 + $0x14] sm:$0x1]
      %v1441 = vsel %vm1027, %v1387, %v1440
      %1442 = vst [vmem:[%s1424 + $0x14] sm:$0x1] %v1441
      %v1443 = vld [vmem:[%s1424 + $0x18] sm:$0xf]
      %v1444 = vsel %vm1294, %v1389, %v1443
      %1445 = vst [vmem:[%s1424 + $0x18] sm:$0xf] %v1444
      %v1446 = vld [vmem:[%s1424 + $0x1c] sm:$0x1]
      %v1447 = vsel %vm1027, %v1391, %v1446
      %1448 = vst [vmem:[%s1424 + $0x1c] sm:$0x1] %v1447
      %v1449 = vld [vmem:[%s1424 + $0x20] sm:$0xf]
      %v1450 = vsel %vm1294, %v1393, %v1449
      %1451 = vst [vmem:[%s1424 + $0x20] sm:$0xf] %v1450
      %v1452 = vld [vmem:[%s1424 + $0x24] sm:$0x1]
      %v1453 = vsel %vm1027, %v1395, %v1452
      %1454 = vst [vmem:[%s1424 + $0x24] sm:$0x1] %v1453
      %v1455 = vld [vmem:[%s1424 + $0x28] sm:$0xf]
      %v1456 = vsel %vm1294, %v1397, %v1455
      %1457 = vst [vmem:[%s1424 + $0x28] sm:$0xf] %v1456
      %v1458 = vld [vmem:[%s1424 + $0x2c] sm:$0x1]
      %v1459 = vsel %vm1027, %v1399, %v1458
      %1460 = vst [vmem:[%s1424 + $0x2c] sm:$0x1] %v1459
      %v1461 = vld [vmem:[%s1424 + $0x30] sm:$0xf]
      %v1462 = vsel %vm1294, %v1401, %v1461
      %1463 = vst [vmem:[%s1424 + $0x30] sm:$0xf] %v1462
      %v1464 = vld [vmem:[%s1424 + $0x34] sm:$0x1]
      %v1465 = vsel %vm1027, %v1403, %v1464
      %1466 = vst [vmem:[%s1424 + $0x34] sm:$0x1] %v1465
      %v1467 = vld [vmem:[%s1424 + $0x38] sm:$0xf]
      %v1468 = vsel %vm1294, %v1405, %v1467
      %1469 = vst [vmem:[%s1424 + $0x38] sm:$0xf] %v1468
      %v1470 = vld [vmem:[%s1424 + $0x3c] sm:$0x1]
      %v1471 = vsel %vm1027, %v1407, %v1470
      %1472 = vst [vmem:[%s1424 + $0x3c] sm:$0x1] %v1471
      %v1473 = vld [vmem:[#allocation2] sm:$0xf]
      %v1474 = vld [vmem:[#allocation2 + $0x8] sm:$0xf]
      %v1475 = vld [vmem:[#allocation2 + $0x10] sm:$0xf]
      %v1476 = vld [vmem:[#allocation2 + $0x18] sm:$0xf]
      %v1477 = vld [vmem:[#allocation2 + $0x20] sm:$0xf]
      %v1478 = vld [vmem:[#allocation2 + $0x28] sm:$0xf]
      %v1479 = vld [vmem:[#allocation2 + $0x30] sm:$0xf]
      %v1480 = vld [vmem:[#allocation2 + $0x38] sm:$0xf]
      %v1481 = vld [vmem:[%s1291] sm:$0xf]
      %v1482 = vld [vmem:[%s1291 + $0x8] sm:$0xf]
      %v1483 = vld [vmem:[%s1291 + $0x10] sm:$0xf]
      %v1484 = vld [vmem:[%s1291 + $0x18] sm:$0xf]
      %v1485 = vld [vmem:[%s1291 + $0x20] sm:$0xf]
      %v1486 = vld [vmem:[%s1291 + $0x28] sm:$0xf]
      %v1487 = vld [vmem:[%s1291 + $0x30] sm:$0xf]
      %v1488 = vld [vmem:[%s1291 + $0x38] sm:$0xf]
      %s1489 = scalar_lea.vmem [#allocation2], 144
      %v1490 = vld [vmem:[%s1489] sm:$0xf]
      %v1491 = vld [vmem:[%s1489 + $0x8] sm:$0xf]
      %v1492 = vld [vmem:[%s1489 + $0x10] sm:$0xf]
      %v1493 = vld [vmem:[%s1489 + $0x18] sm:$0xf]
      %v1494 = vld [vmem:[%s1489 + $0x20] sm:$0xf]
      %v1495 = vld [vmem:[%s1489 + $0x28] sm:$0xf]
      %v1496 = vld [vmem:[%s1489 + $0x30] sm:$0xf]
      %v1497 = vld [vmem:[%s1489 + $0x38] sm:$0xf]
      %s1498 = scalar_lea.vmem [#allocation2], 216
      %v1499 = vld [vmem:[%s1498] sm:$0xf]
      %v1500 = vld [vmem:[%s1498 + $0x8] sm:$0xf]
      %v1501 = vld [vmem:[%s1498 + $0x10] sm:$0xf]
      %v1502 = vld [vmem:[%s1498 + $0x18] sm:$0xf]
      %v1503 = vld [vmem:[%s1498 + $0x20] sm:$0xf]
      %v1504 = vld [vmem:[%s1498 + $0x28] sm:$0xf]
      %v1505 = vld [vmem:[%s1498 + $0x30] sm:$0xf]
      %v1506 = vld [vmem:[%s1498 + $0x38] sm:$0xf]
      %v1507 = vld [vmem:[#allocation2 + $0x4] sm:$0x1]
      %v1508 = vld [vmem:[#allocation2 + $0xc] sm:$0x1]
      %v1509 = vld [vmem:[#allocation2 + $0x14] sm:$0x1]
      %v1510 = vld [vmem:[#allocation2 + $0x1c] sm:$0x1]
      %v1511 = vld [vmem:[#allocation2 + $0x24] sm:$0x1]
      %v1512 = vld [vmem:[#allocation2 + $0x2c] sm:$0x1]
      %v1513 = vld [vmem:[#allocation2 + $0x34] sm:$0x1]
      %v1514 = vld [vmem:[#allocation2 + $0x3c] sm:$0x1]
      %v1515 = vld [vmem:[%s1291 + $0x4] sm:$0x1]
      %v1516 = vld [vmem:[%s1291 + $0xc] sm:$0x1]
      %v1517 = vld [vmem:[%s1291 + $0x14] sm:$0x1]
      %v1518 = vld [vmem:[%s1291 + $0x1c] sm:$0x1]
      %v1519 = vld [vmem:[%s1291 + $0x24] sm:$0x1]
      %v1520 = vld [vmem:[%s1291 + $0x2c] sm:$0x1]
      %v1521 = vld [vmem:[%s1291 + $0x34] sm:$0x1]
      %v1522 = vld [vmem:[%s1291 + $0x3c] sm:$0x1]
      %v1523 = vld [vmem:[%s1489 + $0x4] sm:$0x1]
      %v1524 = vld [vmem:[%s1489 + $0xc] sm:$0x1]
      %v1525 = vld [vmem:[%s1489 + $0x14] sm:$0x1]
      %v1526 = vld [vmem:[%s1489 + $0x1c] sm:$0x1]
      %v1527 = vld [vmem:[%s1489 + $0x24] sm:$0x1]
      %v1528 = vld [vmem:[%s1489 + $0x2c] sm:$0x1]
      %v1529 = vld [vmem:[%s1489 + $0x34] sm:$0x1]
      %v1530 = vld [vmem:[%s1489 + $0x3c] sm:$0x1]
      %v1531 = vld [vmem:[%s1498 + $0x4] sm:$0x1]
      %v1532 = vld [vmem:[%s1498 + $0xc] sm:$0x1]
      %v1533 = vld [vmem:[%s1498 + $0x14] sm:$0x1]
      %v1534 = vld [vmem:[%s1498 + $0x1c] sm:$0x1]
      %v1535 = vld [vmem:[%s1498 + $0x24] sm:$0x1]
      %v1536 = vld [vmem:[%s1498 + $0x2c] sm:$0x1]
      %v1537 = vld [vmem:[%s1498 + $0x34] sm:$0x1]
      %v1538 = vld [vmem:[%s1498 + $0x3c] sm:$0x1]
      %s1539 = scalar_lea.vmem [#allocation2], 8
      %v1540 = vld [vmem:[%s1539] sm:$0xf]
      %v1541 = vld [vmem:[%s1539 + $0x8] sm:$0xf]
      %v1542 = vld [vmem:[%s1539 + $0x10] sm:$0xf]
      %v1543 = vld [vmem:[%s1539 + $0x18] sm:$0xf]
      %v1544 = vld [vmem:[%s1539 + $0x20] sm:$0xf]
      %v1545 = vld [vmem:[%s1539 + $0x28] sm:$0xf]
      %v1546 = vld [vmem:[%s1539 + $0x30] sm:$0xf]
      %v1547 = vld [vmem:[%s1539 + $0x38] sm:$0xf]
      %s1548 = scalar_lea.vmem [#allocation2], 80
      %v1549 = vld [vmem:[%s1548] sm:$0xf]
      %v1550 = vld [vmem:[%s1548 + $0x8] sm:$0xf]
      %v1551 = vld [vmem:[%s1548 + $0x10] sm:$0xf]
      %v1552 = vld [vmem:[%s1548 + $0x18] sm:$0xf]
      %v1553 = vld [vmem:[%s1548 + $0x20] sm:$0xf]
      %v1554 = vld [vmem:[%s1548 + $0x28] sm:$0xf]
      %v1555 = vld [vmem:[%s1548 + $0x30] sm:$0xf]
      %v1556 = vld [vmem:[%s1548 + $0x38] sm:$0xf]
      %v1557 = vld [vmem:[%s1367] sm:$0xf]
      %v1558 = vld [vmem:[%s1367 + $0x8] sm:$0xf]
      %v1559 = vld [vmem:[%s1367 + $0x10] sm:$0xf]
      %v1560 = vld [vmem:[%s1367 + $0x18] sm:$0xf]
      %v1561 = vld [vmem:[%s1367 + $0x20] sm:$0xf]
      %v1562 = vld [vmem:[%s1367 + $0x28] sm:$0xf]
      %v1563 = vld [vmem:[%s1367 + $0x30] sm:$0xf]
      %v1564 = vld [vmem:[%s1367 + $0x38] sm:$0xf]
      %v1565 = vld [vmem:[%s1424] sm:$0xf]
      %v1566 = vld [vmem:[%s1424 + $0x8] sm:$0xf]
      %v1567 = vld [vmem:[%s1424 + $0x10] sm:$0xf]
      %v1568 = vld [vmem:[%s1424 + $0x18] sm:$0xf]
      %v1569 = vld [vmem:[%s1424 + $0x20] sm:$0xf]
      %v1570 = vld [vmem:[%s1424 + $0x28] sm:$0xf]
      %v1571 = vld [vmem:[%s1424 + $0x30] sm:$0xf]
      %v1572 = vld [vmem:[%s1424 + $0x38] sm:$0xf]
      %v1573 = vld [vmem:[%s1539 + $0x4] sm:$0x1]
      %v1574 = vld [vmem:[%s1539 + $0xc] sm:$0x1]
      %v1575 = vld [vmem:[%s1539 + $0x14] sm:$0x1]
      %v1576 = vld [vmem:[%s1539 + $0x1c] sm:$0x1]
      %v1577 = vld [vmem:[%s1539 + $0x24] sm:$0x1]
      %v1578 = vld [vmem:[%s1539 + $0x2c] sm:$0x1]
      %v1579 = vld [vmem:[%s1539 + $0x34] sm:$0x1]
      %v1580 = vld [vmem:[%s1539 + $0x3c] sm:$0x1]
      %v1581 = vld [vmem:[%s1548 + $0x4] sm:$0x1]
      %v1582 = vld [vmem:[%s1548 + $0xc] sm:$0x1]
      %v1583 = vld [vmem:[%s1548 + $0x14] sm:$0x1]
      %v1584 = vld [vmem:[%s1548 + $0x1c] sm:$0x1]
      %v1585 = vld [vmem:[%s1548 + $0x24] sm:$0x1]
      %v1586 = vld [vmem:[%s1548 + $0x2c] sm:$0x1]
      %v1587 = vld [vmem:[%s1548 + $0x34] sm:$0x1]
      %v1588 = vld [vmem:[%s1548 + $0x3c] sm:$0x1]
      %v1589 = vld [vmem:[%s1367 + $0x4] sm:$0x1]
      %v1590 = vld [vmem:[%s1367 + $0xc] sm:$0x1]
      %v1591 = vld [vmem:[%s1367 + $0x14] sm:$0x1]
      %v1592 = vld [vmem:[%s1367 + $0x1c] sm:$0x1]
      %v1593 = vld [vmem:[%s1367 + $0x24] sm:$0x1]
      %v1594 = vld [vmem:[%s1367 + $0x2c] sm:$0x1]
      %v1595 = vld [vmem:[%s1367 + $0x34] sm:$0x1]
      %v1596 = vld [vmem:[%s1367 + $0x3c] sm:$0x1]
      %v1597 = vld [vmem:[%s1424 + $0x4] sm:$0x1]
      %v1598 = vld [vmem:[%s1424 + $0xc] sm:$0x1]
      %v1599 = vld [vmem:[%s1424 + $0x14] sm:$0x1]
      %v1600 = vld [vmem:[%s1424 + $0x1c] sm:$0x1]
      %v1601 = vld [vmem:[%s1424 + $0x24] sm:$0x1]
      %v1602 = vld [vmem:[%s1424 + $0x2c] sm:$0x1]
      %v1603 = vld [vmem:[%s1424 + $0x34] sm:$0x1]
      %v1604 = vld [vmem:[%s1424 + $0x3c] sm:$0x1]
      %v1613 = vunpack.c.l.b16 %v1481
      %v1614 = vunpack.c.l.b16 %v1482
      %v1615 = vunpack.c.l.b16 %v1483
      %v1616 = vunpack.c.l.b16 %v1484
      %v1617 = vunpack.c.l.b16 %v1485
      %v1618 = vunpack.c.l.b16 %v1486
      %v1619 = vunpack.c.l.b16 %v1487
      %v1620 = vunpack.c.l.b16 %v1488
      %v1621 = vpack.c.b16 %v1613, %v1613
      %v1622 = vpack.c.b16 %v1614, %v1614
      %v1623 = vpack.c.b16 %v1615, %v1615
      %v1624 = vpack.c.b16 %v1616, %v1616
      %v1625 = vpack.c.b16 %v1617, %v1617
      %v1626 = vpack.c.b16 %v1618, %v1618
      %v1627 = vpack.c.b16 %v1619, %v1619
      %v1628 = vpack.c.b16 %v1620, %v1620
      %1629 = vrot.lane.b32.xlu0 %v1621, 16
      %v1630 = vpop.permute.xlu0 %1629
      %1631 = vrot.lane.b32.xlu0 %v1622, 16
      %v1632 = vpop.permute.xlu0 %1631
      %1633 = vrot.lane.b32.xlu0 %v1623, 16
      %v1634 = vpop.permute.xlu0 %1633
      %1635 = vrot.lane.b32.xlu0 %v1624, 16
      %v1636 = vpop.permute.xlu0 %1635
      %1637 = vrot.lane.b32.xlu0 %v1625, 16
      %v1638 = vpop.permute.xlu0 %1637
      %1639 = vrot.lane.b32.xlu0 %v1626, 16
      %v1640 = vpop.permute.xlu0 %1639
      %1641 = vrot.lane.b32.xlu0 %v1627, 16
      %v1642 = vpop.permute.xlu0 %1641
      %1643 = vrot.lane.b32.xlu0 %v1628, 16
      %v1644 = vpop.permute.xlu0 %1643
      %v1653 = vunpack.c.l.b16 %v1490
      %v1654 = vunpack.c.l.b16 %v1491
      %v1655 = vunpack.c.l.b16 %v1492
      %v1656 = vunpack.c.l.b16 %v1493
      %v1657 = vunpack.c.l.b16 %v1494
      %v1658 = vunpack.c.l.b16 %v1495
      %v1659 = vunpack.c.l.b16 %v1496
      %v1660 = vunpack.c.l.b16 %v1497
      %v1661 = vpack.c.b16 %v1653, %v1653
      %v1662 = vpack.c.b16 %v1654, %v1654
      %v1663 = vpack.c.b16 %v1655, %v1655
      %v1664 = vpack.c.b16 %v1656, %v1656
      %v1665 = vpack.c.b16 %v1657, %v1657
      %v1666 = vpack.c.b16 %v1658, %v1658
      %v1667 = vpack.c.b16 %v1659, %v1659
      %v1668 = vpack.c.b16 %v1660, %v1660
      %1669 = vrot.lane.b32.xlu0 %v1661, 32
      %v1670 = vpop.permute.xlu0 %1669
      %1671 = vrot.lane.b32.xlu0 %v1662, 32
      %v1672 = vpop.permute.xlu0 %1671
      %1673 = vrot.lane.b32.xlu0 %v1663, 32
      %v1674 = vpop.permute.xlu0 %1673
      %1675 = vrot.lane.b32.xlu0 %v1664, 32
      %v1676 = vpop.permute.xlu0 %1675
      %1677 = vrot.lane.b32.xlu0 %v1665, 32
      %v1678 = vpop.permute.xlu0 %1677
      %1679 = vrot.lane.b32.xlu0 %v1666, 32
      %v1680 = vpop.permute.xlu0 %1679
      %1681 = vrot.lane.b32.xlu0 %v1667, 32
      %v1682 = vpop.permute.xlu0 %1681
      %1683 = vrot.lane.b32.xlu0 %v1668, 32
      %v1684 = vpop.permute.xlu0 %1683
      %v1693 = vunpack.c.l.b16 %v1499
      %v1694 = vunpack.c.l.b16 %v1500
      %v1695 = vunpack.c.l.b16 %v1501
      %v1696 = vunpack.c.l.b16 %v1502
      %v1697 = vunpack.c.l.b16 %v1503
      %v1698 = vunpack.c.l.b16 %v1504
      %v1699 = vunpack.c.l.b16 %v1505
      %v1700 = vunpack.c.l.b16 %v1506
      %v1701 = vpack.c.b16 %v1693, %v1693
      %v1702 = vpack.c.b16 %v1694, %v1694
      %v1703 = vpack.c.b16 %v1695, %v1695
      %v1704 = vpack.c.b16 %v1696, %v1696
      %v1705 = vpack.c.b16 %v1697, %v1697
      %v1706 = vpack.c.b16 %v1698, %v1698
      %v1707 = vpack.c.b16 %v1699, %v1699
      %v1708 = vpack.c.b16 %v1700, %v1700
      %1709 = vrot.lane.b32.xlu0 %v1701, 48
      %v1710 = vpop.permute.xlu0 %1709
      %1711 = vrot.lane.b32.xlu0 %v1702, 48
      %v1712 = vpop.permute.xlu0 %1711
      %1713 = vrot.lane.b32.xlu0 %v1703, 48
      %v1714 = vpop.permute.xlu0 %1713
      %1715 = vrot.lane.b32.xlu0 %v1704, 48
      %v1716 = vpop.permute.xlu0 %1715
      %1717 = vrot.lane.b32.xlu0 %v1705, 48
      %v1718 = vpop.permute.xlu0 %1717
      %1719 = vrot.lane.b32.xlu0 %v1706, 48
      %v1720 = vpop.permute.xlu0 %1719
      %1721 = vrot.lane.b32.xlu0 %v1707, 48
      %v1722 = vpop.permute.xlu0 %1721
      %1723 = vrot.lane.b32.xlu0 %v1708, 48
      %v1724 = vpop.permute.xlu0 %1723
      %v1741 = vunpack.c.l.b16 %v1473
      %v1742 = vunpack.c.l.b16 %v1507
      %v1743 = vunpack.c.l.b16 %v1474
      %v1744 = vunpack.c.l.b16 %v1508
      %v1745 = vunpack.c.l.b16 %v1475
      %v1746 = vunpack.c.l.b16 %v1509
      %v1747 = vunpack.c.l.b16 %v1476
      %v1748 = vunpack.c.l.b16 %v1510
      %v1749 = vunpack.c.l.b16 %v1477
      %v1750 = vunpack.c.l.b16 %v1511
      %v1751 = vunpack.c.l.b16 %v1478
      %v1752 = vunpack.c.l.b16 %v1512
      %v1753 = vunpack.c.l.b16 %v1479
      %v1754 = vunpack.c.l.b16 %v1513
      %v1755 = vunpack.c.l.b16 %v1480
      %v1756 = vunpack.c.l.b16 %v1514
      %v1757 = vpack.c.b16 %v1742, %v1741
      %v1758 = vpack.c.b16 %v1744, %v1743
      %v1759 = vpack.c.b16 %v1746, %v1745
      %v1760 = vpack.c.b16 %v1748, %v1747
      %v1761 = vpack.c.b16 %v1750, %v1749
      %v1762 = vpack.c.b16 %v1752, %v1751
      %v1763 = vpack.c.b16 %v1754, %v1753
      %v1764 = vpack.c.b16 %v1756, %v1755
      %v1766 = vshrl.u32 %v1757, 16
      %v1768 = vshll.u32 %v1757, 16
      %v1770 = vrot.slane %v1768, 1
      %v1771 = vor.u32 %v1766, %v1770
      %v1773 = vshrl.u32 %v1758, 16
      %v1775 = vshll.u32 %v1758, 16
      %v1777 = vrot.slane %v1775, 1
      %v1778 = vor.u32 %v1773, %v1777
      %v1780 = vshrl.u32 %v1759, 16
      %v1782 = vshll.u32 %v1759, 16
      %v1784 = vrot.slane %v1782, 1
      %v1785 = vor.u32 %v1780, %v1784
      %v1787 = vshrl.u32 %v1760, 16
      %v1789 = vshll.u32 %v1760, 16
      %v1791 = vrot.slane %v1789, 1
      %v1792 = vor.u32 %v1787, %v1791
      %v1794 = vshrl.u32 %v1761, 16
      %v1796 = vshll.u32 %v1761, 16
      %v1798 = vrot.slane %v1796, 1
      %v1799 = vor.u32 %v1794, %v1798
      %v1801 = vshrl.u32 %v1762, 16
      %v1803 = vshll.u32 %v1762, 16
      %v1805 = vrot.slane %v1803, 1
      %v1806 = vor.u32 %v1801, %v1805
      %v1808 = vshrl.u32 %v1763, 16
      %v1810 = vshll.u32 %v1763, 16
      %v1812 = vrot.slane %v1810, 1
      %v1813 = vor.u32 %v1808, %v1812
      %v1815 = vshrl.u32 %v1764, 16
      %v1817 = vshll.u32 %v1764, 16
      %v1819 = vrot.slane %v1817, 1
      %v1820 = vor.u32 %v1815, %v1819
      %1821 = vrot.lane.b32.xlu0 %v1771, 64
      %v1822 = vpop.permute.xlu0 %1821
      %1823 = vrot.lane.b32.xlu0 %v1778, 64
      %v1824 = vpop.permute.xlu0 %1823
      %1825 = vrot.lane.b32.xlu0 %v1785, 64
      %v1826 = vpop.permute.xlu0 %1825
      %1827 = vrot.lane.b32.xlu0 %v1792, 64
      %v1828 = vpop.permute.xlu0 %1827
      %1829 = vrot.lane.b32.xlu0 %v1799, 64
      %v1830 = vpop.permute.xlu0 %1829
      %1831 = vrot.lane.b32.xlu0 %v1806, 64
      %v1832 = vpop.permute.xlu0 %1831
      %1833 = vrot.lane.b32.xlu0 %v1813, 64
      %v1834 = vpop.permute.xlu0 %1833
      %1835 = vrot.lane.b32.xlu0 %v1820, 64
      %v1836 = vpop.permute.xlu0 %1835
      %v1845 = vunpack.c.l.b16 %v1515
      %v1846 = vunpack.c.l.b16 %v1516
      %v1847 = vunpack.c.l.b16 %v1517
      %v1848 = vunpack.c.l.b16 %v1518
      %v1849 = vunpack.c.l.b16 %v1519
      %v1850 = vunpack.c.l.b16 %v1520
      %v1851 = vunpack.c.l.b16 %v1521
      %v1852 = vunpack.c.l.b16 %v1522
      %v1853 = vpack.c.b16 %v1845, %v1613
      %v1854 = vpack.c.b16 %v1846, %v1614
      %v1855 = vpack.c.b16 %v1847, %v1615
      %v1856 = vpack.c.b16 %v1848, %v1616
      %v1857 = vpack.c.b16 %v1849, %v1617
      %v1858 = vpack.c.b16 %v1850, %v1618
      %v1859 = vpack.c.b16 %v1851, %v1619
      %v1860 = vpack.c.b16 %v1852, %v1620
      %v1862 = vshrl.u32 %v1853, 16
      %v1864 = vshll.u32 %v1853, 16
      %v1866 = vrot.slane %v1864, 1
      %v1867 = vor.u32 %v1862, %v1866
      %v1869 = vshrl.u32 %v1854, 16
      %v1871 = vshll.u32 %v1854, 16
      %v1873 = vrot.slane %v1871, 1
      %v1874 = vor.u32 %v1869, %v1873
      %v1876 = vshrl.u32 %v1855, 16
      %v1878 = vshll.u32 %v1855, 16
      %v1880 = vrot.slane %v1878, 1
      %v1881 = vor.u32 %v1876, %v1880
      %v1883 = vshrl.u32 %v1856, 16
      %v1885 = vshll.u32 %v1856, 16
      %v1887 = vrot.slane %v1885, 1
      %v1888 = vor.u32 %v1883, %v1887
      %v1890 = vshrl.u32 %v1857, 16
      %v1892 = vshll.u32 %v1857, 16
      %v1894 = vrot.slane %v1892, 1
      %v1895 = vor.u32 %v1890, %v1894
      %v1897 = vshrl.u32 %v1858, 16
      %v1899 = vshll.u32 %v1858, 16
      %v1901 = vrot.slane %v1899, 1
      %v1902 = vor.u32 %v1897, %v1901
      %v1904 = vshrl.u32 %v1859, 16
      %v1906 = vshll.u32 %v1859, 16
      %v1908 = vrot.slane %v1906, 1
      %v1909 = vor.u32 %v1904, %v1908
      %v1911 = vshrl.u32 %v1860, 16
      %v1913 = vshll.u32 %v1860, 16
      %v1915 = vrot.slane %v1913, 1
      %v1916 = vor.u32 %v1911, %v1915
      %1917 = vrot.lane.b32.xlu0 %v1867, 80
      %v1918 = vpop.permute.xlu0 %1917
      %1919 = vrot.lane.b32.xlu0 %v1874, 80
      %v1920 = vpop.permute.xlu0 %1919
      %1921 = vrot.lane.b32.xlu0 %v1881, 80
      %v1922 = vpop.permute.xlu0 %1921
      %1923 = vrot.lane.b32.xlu0 %v1888, 80
      %v1924 = vpop.permute.xlu0 %1923
      %1925 = vrot.lane.b32.xlu0 %v1895, 80
      %v1926 = vpop.permute.xlu0 %1925
      %1927 = vrot.lane.b32.xlu0 %v1902, 80
      %v1928 = vpop.permute.xlu0 %1927
      %1929 = vrot.lane.b32.xlu0 %v1909, 80
      %v1930 = vpop.permute.xlu0 %1929
      %1931 = vrot.lane.b32.xlu0 %v1916, 80
      %v1932 = vpop.permute.xlu0 %1931
      %v1941 = vunpack.c.l.b16 %v1523
      %v1942 = vunpack.c.l.b16 %v1524
      %v1943 = vunpack.c.l.b16 %v1525
      %v1944 = vunpack.c.l.b16 %v1526
      %v1945 = vunpack.c.l.b16 %v1527
      %v1946 = vunpack.c.l.b16 %v1528
      %v1947 = vunpack.c.l.b16 %v1529
      %v1948 = vunpack.c.l.b16 %v1530
      %v1949 = vpack.c.b16 %v1941, %v1653
      %v1950 = vpack.c.b16 %v1942, %v1654
      %v1951 = vpack.c.b16 %v1943, %v1655
      %v1952 = vpack.c.b16 %v1944, %v1656
      %v1953 = vpack.c.b16 %v1945, %v1657
      %v1954 = vpack.c.b16 %v1946, %v1658
      %v1955 = vpack.c.b16 %v1947, %v1659
      %v1956 = vpack.c.b16 %v1948, %v1660
      %v1958 = vshrl.u32 %v1949, 16
      %v1960 = vshll.u32 %v1949, 16
      %v1962 = vrot.slane %v1960, 1
      %v1963 = vor.u32 %v1958, %v1962
      %v1965 = vshrl.u32 %v1950, 16
      %v1967 = vshll.u32 %v1950, 16
      %v1969 = vrot.slane %v1967, 1
      %v1970 = vor.u32 %v1965, %v1969
      %v1972 = vshrl.u32 %v1951, 16
      %v1974 = vshll.u32 %v1951, 16
      %v1976 = vrot.slane %v1974, 1
      %v1977 = vor.u32 %v1972, %v1976
      %v1979 = vshrl.u32 %v1952, 16
      %v1981 = vshll.u32 %v1952, 16
      %v1983 = vrot.slane %v1981, 1
      %v1984 = vor.u32 %v1979, %v1983
      %v1986 = vshrl.u32 %v1953, 16
      %v1988 = vshll.u32 %v1953, 16
      %v1990 = vrot.slane %v1988, 1
      %v1991 = vor.u32 %v1986, %v1990
      %v1993 = vshrl.u32 %v1954, 16
      %v1995 = vshll.u32 %v1954, 16
      %v1997 = vrot.slane %v1995, 1
      %v1998 = vor.u32 %v1993, %v1997
      %v2000 = vshrl.u32 %v1955, 16
      %v2002 = vshll.u32 %v1955, 16
      %v2004 = vrot.slane %v2002, 1
      %v2005 = vor.u32 %v2000, %v2004
      %v2007 = vshrl.u32 %v1956, 16
      %v2009 = vshll.u32 %v1956, 16
      %v2011 = vrot.slane %v2009, 1
      %v2012 = vor.u32 %v2007, %v2011
      %2013 = vrot.lane.b32.xlu0 %v1963, 96
      %v2014 = vpop.permute.xlu0 %2013
      %2015 = vrot.lane.b32.xlu0 %v1970, 96
      %v2016 = vpop.permute.xlu0 %2015
      %2017 = vrot.lane.b32.xlu0 %v1977, 96
      %v2018 = vpop.permute.xlu0 %2017
      %2019 = vrot.lane.b32.xlu0 %v1984, 96
      %v2020 = vpop.permute.xlu0 %2019
      %2021 = vrot.lane.b32.xlu0 %v1991, 96
      %v2022 = vpop.permute.xlu0 %2021
      %2023 = vrot.lane.b32.xlu0 %v1998, 96
      %v2024 = vpop.permute.xlu0 %2023
      %2025 = vrot.lane.b32.xlu0 %v2005, 96
      %v2026 = vpop.permute.xlu0 %2025
      %2027 = vrot.lane.b32.xlu0 %v2012, 96
      %v2028 = vpop.permute.xlu0 %2027
      %v2037 = vunpack.c.l.b16 %v1531
      %v2038 = vunpack.c.l.b16 %v1532
      %v2039 = vunpack.c.l.b16 %v1533
      %v2040 = vunpack.c.l.b16 %v1534
      %v2041 = vunpack.c.l.b16 %v1535
      %v2042 = vunpack.c.l.b16 %v1536
      %v2043 = vunpack.c.l.b16 %v1537
      %v2044 = vunpack.c.l.b16 %v1538
      %v2045 = vpack.c.b16 %v2037, %v1693
      %v2046 = vpack.c.b16 %v2038, %v1694
      %v2047 = vpack.c.b16 %v2039, %v1695
      %v2048 = vpack.c.b16 %v2040, %v1696
      %v2049 = vpack.c.b16 %v2041, %v1697
      %v2050 = vpack.c.b16 %v2042, %v1698
      %v2051 = vpack.c.b16 %v2043, %v1699
      %v2052 = vpack.c.b16 %v2044, %v1700
      %v2054 = vshrl.u32 %v2045, 16
      %v2056 = vshll.u32 %v2045, 16
      %v2058 = vrot.slane %v2056, 1
      %v2059 = vor.u32 %v2054, %v2058
      %v2061 = vshrl.u32 %v2046, 16
      %v2063 = vshll.u32 %v2046, 16
      %v2065 = vrot.slane %v2063, 1
      %v2066 = vor.u32 %v2061, %v2065
      %v2068 = vshrl.u32 %v2047, 16
      %v2070 = vshll.u32 %v2047, 16
      %v2072 = vrot.slane %v2070, 1
      %v2073 = vor.u32 %v2068, %v2072
      %v2075 = vshrl.u32 %v2048, 16
      %v2077 = vshll.u32 %v2048, 16
      %v2079 = vrot.slane %v2077, 1
      %v2080 = vor.u32 %v2075, %v2079
      %v2082 = vshrl.u32 %v2049, 16
      %v2084 = vshll.u32 %v2049, 16
      %v2086 = vrot.slane %v2084, 1
      %v2087 = vor.u32 %v2082, %v2086
      %v2089 = vshrl.u32 %v2050, 16
      %v2091 = vshll.u32 %v2050, 16
      %v2093 = vrot.slane %v2091, 1
      %v2094 = vor.u32 %v2089, %v2093
      %v2096 = vshrl.u32 %v2051, 16
      %v2098 = vshll.u32 %v2051, 16
      %v2100 = vrot.slane %v2098, 1
      %v2101 = vor.u32 %v2096, %v2100
      %v2103 = vshrl.u32 %v2052, 16
      %v2105 = vshll.u32 %v2052, 16
      %v2107 = vrot.slane %v2105, 1
      %v2108 = vor.u32 %v2103, %v2107
      %2109 = vrot.lane.b32.xlu0 %v2059, 112
      %v2110 = vpop.permute.xlu0 %2109
      %2111 = vrot.lane.b32.xlu0 %v2066, 112
      %v2112 = vpop.permute.xlu0 %2111
      %2113 = vrot.lane.b32.xlu0 %v2073, 112
      %v2114 = vpop.permute.xlu0 %2113
      %2115 = vrot.lane.b32.xlu0 %v2080, 112
      %v2116 = vpop.permute.xlu0 %2115
      %2117 = vrot.lane.b32.xlu0 %v2087, 112
      %v2118 = vpop.permute.xlu0 %2117
      %2119 = vrot.lane.b32.xlu0 %v2094, 112
      %v2120 = vpop.permute.xlu0 %2119
      %2121 = vrot.lane.b32.xlu0 %v2101, 112
      %v2122 = vpop.permute.xlu0 %2121
      %2123 = vrot.lane.b32.xlu0 %v2108, 112
      %v2124 = vpop.permute.xlu0 %2123
      %v2133 = vunpack.c.l.b16 %v1549
      %v2134 = vunpack.c.l.b16 %v1550
      %v2135 = vunpack.c.l.b16 %v1551
      %v2136 = vunpack.c.l.b16 %v1552
      %v2137 = vunpack.c.l.b16 %v1553
      %v2138 = vunpack.c.l.b16 %v1554
      %v2139 = vunpack.c.l.b16 %v1555
      %v2140 = vunpack.c.l.b16 %v1556
      %v2141 = vpack.c.b16 %v2133, %v2133
      %v2142 = vpack.c.b16 %v2134, %v2134
      %v2143 = vpack.c.b16 %v2135, %v2135
      %v2144 = vpack.c.b16 %v2136, %v2136
      %v2145 = vpack.c.b16 %v2137, %v2137
      %v2146 = vpack.c.b16 %v2138, %v2138
      %v2147 = vpack.c.b16 %v2139, %v2139
      %v2148 = vpack.c.b16 %v2140, %v2140
      %2149 = vrot.lane.b32.xlu0 %v2141, 16
      %v2150 = vpop.permute.xlu0 %2149
      %2151 = vrot.lane.b32.xlu0 %v2142, 16
      %v2152 = vpop.permute.xlu0 %2151
      %2153 = vrot.lane.b32.xlu0 %v2143, 16
      %v2154 = vpop.permute.xlu0 %2153
      %2155 = vrot.lane.b32.xlu0 %v2144, 16
      %v2156 = vpop.permute.xlu0 %2155
      %2157 = vrot.lane.b32.xlu0 %v2145, 16
      %v2158 = vpop.permute.xlu0 %2157
      %2159 = vrot.lane.b32.xlu0 %v2146, 16
      %v2160 = vpop.permute.xlu0 %2159
      %2161 = vrot.lane.b32.xlu0 %v2147, 16
      %v2162 = vpop.permute.xlu0 %2161
      %2163 = vrot.lane.b32.xlu0 %v2148, 16
      %v2164 = vpop.permute.xlu0 %2163
      %v2173 = vunpack.c.l.b16 %v1557
      %v2174 = vunpack.c.l.b16 %v1558
      %v2175 = vunpack.c.l.b16 %v1559
      %v2176 = vunpack.c.l.b16 %v1560
      %v2177 = vunpack.c.l.b16 %v1561
      %v2178 = vunpack.c.l.b16 %v1562
      %v2179 = vunpack.c.l.b16 %v1563
      %v2180 = vunpack.c.l.b16 %v1564
      %v2181 = vpack.c.b16 %v2173, %v2173
      %v2182 = vpack.c.b16 %v2174, %v2174
      %v2183 = vpack.c.b16 %v2175, %v2175
      %v2184 = vpack.c.b16 %v2176, %v2176
      %v2185 = vpack.c.b16 %v2177, %v2177
      %v2186 = vpack.c.b16 %v2178, %v2178
      %v2187 = vpack.c.b16 %v2179, %v2179
      %v2188 = vpack.c.b16 %v2180, %v2180
      %2189 = vrot.lane.b32.xlu0 %v2181, 32
      %v2190 = vpop.permute.xlu0 %2189
      %2191 = vrot.lane.b32.xlu0 %v2182, 32
      %v2192 = vpop.permute.xlu0 %2191
      %2193 = vrot.lane.b32.xlu0 %v2183, 32
      %v2194 = vpop.permute.xlu0 %2193
      %2195 = vrot.lane.b32.xlu0 %v2184, 32
      %v2196 = vpop.permute.xlu0 %2195
      %2197 = vrot.lane.b32.xlu0 %v2185, 32
      %v2198 = vpop.permute.xlu0 %2197
      %2199 = vrot.lane.b32.xlu0 %v2186, 32
      %v2200 = vpop.permute.xlu0 %2199
      %2201 = vrot.lane.b32.xlu0 %v2187, 32
      %v2202 = vpop.permute.xlu0 %2201
      %2203 = vrot.lane.b32.xlu0 %v2188, 32
      %v2204 = vpop.permute.xlu0 %2203
      %v2213 = vunpack.c.l.b16 %v1565
      %v2214 = vunpack.c.l.b16 %v1566
      %v2215 = vunpack.c.l.b16 %v1567
      %v2216 = vunpack.c.l.b16 %v1568
      %v2217 = vunpack.c.l.b16 %v1569
      %v2218 = vunpack.c.l.b16 %v1570
      %v2219 = vunpack.c.l.b16 %v1571
      %v2220 = vunpack.c.l.b16 %v1572
      %v2221 = vpack.c.b16 %v2213, %v2213
      %v2222 = vpack.c.b16 %v2214, %v2214
      %v2223 = vpack.c.b16 %v2215, %v2215
      %v2224 = vpack.c.b16 %v2216, %v2216
      %v2225 = vpack.c.b16 %v2217, %v2217
      %v2226 = vpack.c.b16 %v2218, %v2218
      %v2227 = vpack.c.b16 %v2219, %v2219
      %v2228 = vpack.c.b16 %v2220, %v2220
      %2229 = vrot.lane.b32.xlu0 %v2221, 48
      %v2230 = vpop.permute.xlu0 %2229
      %2231 = vrot.lane.b32.xlu0 %v2222, 48
      %v2232 = vpop.permute.xlu0 %2231
      %2233 = vrot.lane.b32.xlu0 %v2223, 48
      %v2234 = vpop.permute.xlu0 %2233
      %2235 = vrot.lane.b32.xlu0 %v2224, 48
      %v2236 = vpop.permute.xlu0 %2235
      %2237 = vrot.lane.b32.xlu0 %v2225, 48
      %v2238 = vpop.permute.xlu0 %2237
      %2239 = vrot.lane.b32.xlu0 %v2226, 48
      %v2240 = vpop.permute.xlu0 %2239
      %2241 = vrot.lane.b32.xlu0 %v2227, 48
      %v2242 = vpop.permute.xlu0 %2241
      %2243 = vrot.lane.b32.xlu0 %v2228, 48
      %v2244 = vpop.permute.xlu0 %2243
      %v2261 = vunpack.c.l.b16 %v1540
      %v2262 = vunpack.c.l.b16 %v1573
      %v2263 = vunpack.c.l.b16 %v1541
      %v2264 = vunpack.c.l.b16 %v1574
      %v2265 = vunpack.c.l.b16 %v1542
      %v2266 = vunpack.c.l.b16 %v1575
      %v2267 = vunpack.c.l.b16 %v1543
      %v2268 = vunpack.c.l.b16 %v1576
      %v2269 = vunpack.c.l.b16 %v1544
      %v2270 = vunpack.c.l.b16 %v1577
      %v2271 = vunpack.c.l.b16 %v1545
      %v2272 = vunpack.c.l.b16 %v1578
      %v2273 = vunpack.c.l.b16 %v1546
      %v2274 = vunpack.c.l.b16 %v1579
      %v2275 = vunpack.c.l.b16 %v1547
      %v2276 = vunpack.c.l.b16 %v1580
      %v2277 = vpack.c.b16 %v2262, %v2261
      %v2278 = vpack.c.b16 %v2264, %v2263
      %v2279 = vpack.c.b16 %v2266, %v2265
      %v2280 = vpack.c.b16 %v2268, %v2267
      %v2281 = vpack.c.b16 %v2270, %v2269
      %v2282 = vpack.c.b16 %v2272, %v2271
      %v2283 = vpack.c.b16 %v2274, %v2273
      %v2284 = vpack.c.b16 %v2276, %v2275
      %v2286 = vshrl.u32 %v2277, 16
      %v2288 = vshll.u32 %v2277, 16
      %v2290 = vrot.slane %v2288, 1
      %v2291 = vor.u32 %v2286, %v2290
      %v2293 = vshrl.u32 %v2278, 16
      %v2295 = vshll.u32 %v2278, 16
      %v2297 = vrot.slane %v2295, 1
      %v2298 = vor.u32 %v2293, %v2297
      %v2300 = vshrl.u32 %v2279, 16
      %v2302 = vshll.u32 %v2279, 16
      %v2304 = vrot.slane %v2302, 1
      %v2305 = vor.u32 %v2300, %v2304
      %v2307 = vshrl.u32 %v2280, 16
      %v2309 = vshll.u32 %v2280, 16
      %v2311 = vrot.slane %v2309, 1
      %v2312 = vor.u32 %v2307, %v2311
      %v2314 = vshrl.u32 %v2281, 16
      %v2316 = vshll.u32 %v2281, 16
      %v2318 = vrot.slane %v2316, 1
      %v2319 = vor.u32 %v2314, %v2318
      %v2321 = vshrl.u32 %v2282, 16
      %v2323 = vshll.u32 %v2282, 16
      %v2325 = vrot.slane %v2323, 1
      %v2326 = vor.u32 %v2321, %v2325
      %v2328 = vshrl.u32 %v2283, 16
      %v2330 = vshll.u32 %v2283, 16
      %v2332 = vrot.slane %v2330, 1
      %v2333 = vor.u32 %v2328, %v2332
      %v2335 = vshrl.u32 %v2284, 16
      %v2337 = vshll.u32 %v2284, 16
      %v2339 = vrot.slane %v2337, 1
      %v2340 = vor.u32 %v2335, %v2339
      %2341 = vrot.lane.b32.xlu0 %v2291, 64
      %v2342 = vpop.permute.xlu0 %2341
      %2343 = vrot.lane.b32.xlu0 %v2298, 64
      %v2344 = vpop.permute.xlu0 %2343
      %2345 = vrot.lane.b32.xlu0 %v2305, 64
      %v2346 = vpop.permute.xlu0 %2345
      %2347 = vrot.lane.b32.xlu0 %v2312, 64
      %v2348 = vpop.permute.xlu0 %2347
      %2349 = vrot.lane.b32.xlu0 %v2319, 64
      %v2350 = vpop.permute.xlu0 %2349
      %2351 = vrot.lane.b32.xlu0 %v2326, 64
      %v2352 = vpop.permute.xlu0 %2351
      %2353 = vrot.lane.b32.xlu0 %v2333, 64
      %v2354 = vpop.permute.xlu0 %2353
      %2355 = vrot.lane.b32.xlu0 %v2340, 64
      %v2356 = vpop.permute.xlu0 %2355
      %v2365 = vunpack.c.l.b16 %v1581
      %v2366 = vunpack.c.l.b16 %v1582
      %v2367 = vunpack.c.l.b16 %v1583
      %v2368 = vunpack.c.l.b16 %v1584
      %v2369 = vunpack.c.l.b16 %v1585
      %v2370 = vunpack.c.l.b16 %v1586
      %v2371 = vunpack.c.l.b16 %v1587
      %v2372 = vunpack.c.l.b16 %v1588
      %v2373 = vpack.c.b16 %v2365, %v2133
      %v2374 = vpack.c.b16 %v2366, %v2134
      %v2375 = vpack.c.b16 %v2367, %v2135
      %v2376 = vpack.c.b16 %v2368, %v2136
      %v2377 = vpack.c.b16 %v2369, %v2137
      %v2378 = vpack.c.b16 %v2370, %v2138
      %v2379 = vpack.c.b16 %v2371, %v2139
      %v2380 = vpack.c.b16 %v2372, %v2140
      %v2382 = vshrl.u32 %v2373, 16
      %v2384 = vshll.u32 %v2373, 16
      %v2386 = vrot.slane %v2384, 1
      %v2387 = vor.u32 %v2382, %v2386
      %v2389 = vshrl.u32 %v2374, 16
      %v2391 = vshll.u32 %v2374, 16
      %v2393 = vrot.slane %v2391, 1
      %v2394 = vor.u32 %v2389, %v2393
      %v2396 = vshrl.u32 %v2375, 16
      %v2398 = vshll.u32 %v2375, 16
      %v2400 = vrot.slane %v2398, 1
      %v2401 = vor.u32 %v2396, %v2400
      %v2403 = vshrl.u32 %v2376, 16
      %v2405 = vshll.u32 %v2376, 16
      %v2407 = vrot.slane %v2405, 1
      %v2408 = vor.u32 %v2403, %v2407
      %v2410 = vshrl.u32 %v2377, 16
      %v2412 = vshll.u32 %v2377, 16
      %v2414 = vrot.slane %v2412, 1
      %v2415 = vor.u32 %v2410, %v2414
      %v2417 = vshrl.u32 %v2378, 16
      %v2419 = vshll.u32 %v2378, 16
      %v2421 = vrot.slane %v2419, 1
      %v2422 = vor.u32 %v2417, %v2421
      %v2424 = vshrl.u32 %v2379, 16
      %v2426 = vshll.u32 %v2379, 16
      %v2428 = vrot.slane %v2426, 1
      %v2429 = vor.u32 %v2424, %v2428
      %v2431 = vshrl.u32 %v2380, 16
      %v2433 = vshll.u32 %v2380, 16
      %v2435 = vrot.slane %v2433, 1
      %v2436 = vor.u32 %v2431, %v2435
      %2437 = vrot.lane.b32.xlu0 %v2387, 80
      %v2438 = vpop.permute.xlu0 %2437
      %2439 = vrot.lane.b32.xlu0 %v2394, 80
      %v2440 = vpop.permute.xlu0 %2439
      %2441 = vrot.lane.b32.xlu0 %v2401, 80
      %v2442 = vpop.permute.xlu0 %2441
      %2443 = vrot.lane.b32.xlu0 %v2408, 80
      %v2444 = vpop.permute.xlu0 %2443
      %2445 = vrot.lane.b32.xlu0 %v2415, 80
      %v2446 = vpop.permute.xlu0 %2445
      %2447 = vrot.lane.b32.xlu0 %v2422, 80
      %v2448 = vpop.permute.xlu0 %2447
      %2449 = vrot.lane.b32.xlu0 %v2429, 80
      %v2450 = vpop.permute.xlu0 %2449
      %2451 = vrot.lane.b32.xlu0 %v2436, 80
      %v2452 = vpop.permute.xlu0 %2451
      %v2461 = vunpack.c.l.b16 %v1589
      %v2462 = vunpack.c.l.b16 %v1590
      %v2463 = vunpack.c.l.b16 %v1591
      %v2464 = vunpack.c.l.b16 %v1592
      %v2465 = vunpack.c.l.b16 %v1593
      %v2466 = vunpack.c.l.b16 %v1594
      %v2467 = vunpack.c.l.b16 %v1595
      %v2468 = vunpack.c.l.b16 %v1596
      %v2469 = vpack.c.b16 %v2461, %v2173
      %v2470 = vpack.c.b16 %v2462, %v2174
      %v2471 = vpack.c.b16 %v2463, %v2175
      %v2472 = vpack.c.b16 %v2464, %v2176
      %v2473 = vpack.c.b16 %v2465, %v2177
      %v2474 = vpack.c.b16 %v2466, %v2178
      %v2475 = vpack.c.b16 %v2467, %v2179
      %v2476 = vpack.c.b16 %v2468, %v2180
      %v2478 = vshrl.u32 %v2469, 16
      %v2480 = vshll.u32 %v2469, 16
      %v2482 = vrot.slane %v2480, 1
      %v2483 = vor.u32 %v2478, %v2482
      %v2485 = vshrl.u32 %v2470, 16
      %v2487 = vshll.u32 %v2470, 16
      %v2489 = vrot.slane %v2487, 1
      %v2490 = vor.u32 %v2485, %v2489
      %v2492 = vshrl.u32 %v2471, 16
      %v2494 = vshll.u32 %v2471, 16
      %v2496 = vrot.slane %v2494, 1
      %v2497 = vor.u32 %v2492, %v2496
      %v2499 = vshrl.u32 %v2472, 16
      %v2501 = vshll.u32 %v2472, 16
      %v2503 = vrot.slane %v2501, 1
      %v2504 = vor.u32 %v2499, %v2503
      %v2506 = vshrl.u32 %v2473, 16
      %v2508 = vshll.u32 %v2473, 16
      %v2510 = vrot.slane %v2508, 1
      %v2511 = vor.u32 %v2506, %v2510
      %v2513 = vshrl.u32 %v2474, 16
      %v2515 = vshll.u32 %v2474, 16
      %v2517 = vrot.slane %v2515, 1
      %v2518 = vor.u32 %v2513, %v2517
      %v2520 = vshrl.u32 %v2475, 16
      %v2522 = vshll.u32 %v2475, 16
      %v2524 = vrot.slane %v2522, 1
      %v2525 = vor.u32 %v2520, %v2524
      %v2527 = vshrl.u32 %v2476, 16
      %v2529 = vshll.u32 %v2476, 16
      %v2531 = vrot.slane %v2529, 1
      %v2532 = vor.u32 %v2527, %v2531
      %2533 = vrot.lane.b32.xlu0 %v2483, 96
      %v2534 = vpop.permute.xlu0 %2533
      %2535 = vrot.lane.b32.xlu0 %v2490, 96
      %v2536 = vpop.permute.xlu0 %2535
      %2537 = vrot.lane.b32.xlu0 %v2497, 96
      %v2538 = vpop.permute.xlu0 %2537
      %2539 = vrot.lane.b32.xlu0 %v2504, 96
      %v2540 = vpop.permute.xlu0 %2539
      %2541 = vrot.lane.b32.xlu0 %v2511, 96
      %v2542 = vpop.permute.xlu0 %2541
      %2543 = vrot.lane.b32.xlu0 %v2518, 96
      %v2544 = vpop.permute.xlu0 %2543
      %2545 = vrot.lane.b32.xlu0 %v2525, 96
      %v2546 = vpop.permute.xlu0 %2545
      %2547 = vrot.lane.b32.xlu0 %v2532, 96
      %v2548 = vpop.permute.xlu0 %2547
      %v2557 = vunpack.c.l.b16 %v1597
      %v2558 = vunpack.c.l.b16 %v1598
      %v2559 = vunpack.c.l.b16 %v1599
      %v2560 = vunpack.c.l.b16 %v1600
      %v2561 = vunpack.c.l.b16 %v1601
      %v2562 = vunpack.c.l.b16 %v1602
      %v2563 = vunpack.c.l.b16 %v1603
      %v2564 = vunpack.c.l.b16 %v1604
      %v2565 = vpack.c.b16 %v2557, %v2213
      %v2566 = vpack.c.b16 %v2558, %v2214
      %v2567 = vpack.c.b16 %v2559, %v2215
      %v2568 = vpack.c.b16 %v2560, %v2216
      %v2569 = vpack.c.b16 %v2561, %v2217
      %v2570 = vpack.c.b16 %v2562, %v2218
      %v2571 = vpack.c.b16 %v2563, %v2219
      %v2572 = vpack.c.b16 %v2564, %v2220
      %v2574 = vshrl.u32 %v2565, 16
      %v2576 = vshll.u32 %v2565, 16
      %v2578 = vrot.slane %v2576, 1
      %v2579 = vor.u32 %v2574, %v2578
      %v2581 = vshrl.u32 %v2566, 16
      %v2583 = vshll.u32 %v2566, 16
      %v2585 = vrot.slane %v2583, 1
      %v2586 = vor.u32 %v2581, %v2585
      %v2588 = vshrl.u32 %v2567, 16
      %v2590 = vshll.u32 %v2567, 16
      %v2592 = vrot.slane %v2590, 1
      %v2593 = vor.u32 %v2588, %v2592
      %v2595 = vshrl.u32 %v2568, 16
      %v2597 = vshll.u32 %v2568, 16
      %v2599 = vrot.slane %v2597, 1
      %v2600 = vor.u32 %v2595, %v2599
      %v2602 = vshrl.u32 %v2569, 16
      %v2604 = vshll.u32 %v2569, 16
      %v2606 = vrot.slane %v2604, 1
      %v2607 = vor.u32 %v2602, %v2606
      %v2609 = vshrl.u32 %v2570, 16
      %v2611 = vshll.u32 %v2570, 16
      %v2613 = vrot.slane %v2611, 1
      %v2614 = vor.u32 %v2609, %v2613
      %v2616 = vshrl.u32 %v2571, 16
      %v2618 = vshll.u32 %v2571, 16
      %v2620 = vrot.slane %v2618, 1
      %v2621 = vor.u32 %v2616, %v2620
      %v2623 = vshrl.u32 %v2572, 16
      %v2625 = vshll.u32 %v2572, 16
      %v2627 = vrot.slane %v2625, 1
      %v2628 = vor.u32 %v2623, %v2627
      %2629 = vrot.lane.b32.xlu0 %v2579, 112
      %v2630 = vpop.permute.xlu0 %2629
      %2631 = vrot.lane.b32.xlu0 %v2586, 112
      %v2632 = vpop.permute.xlu0 %2631
      %2633 = vrot.lane.b32.xlu0 %v2593, 112
      %v2634 = vpop.permute.xlu0 %2633
      %2635 = vrot.lane.b32.xlu0 %v2600, 112
      %v2636 = vpop.permute.xlu0 %2635
      %2637 = vrot.lane.b32.xlu0 %v2607, 112
      %v2638 = vpop.permute.xlu0 %2637
      %2639 = vrot.lane.b32.xlu0 %v2614, 112
      %v2640 = vpop.permute.xlu0 %2639
      %2641 = vrot.lane.b32.xlu0 %v2621, 112
      %v2642 = vpop.permute.xlu0 %2641
      %2643 = vrot.lane.b32.xlu0 %v2628, 112
      %v2644 = vpop.permute.xlu0 %2643
      %vm2645 = vcmask 130048
      %v2648 = vsel %vm2645, %v1473, %v1630
      %v2651 = vsel %vm2645, %v1474, %v1632
      %v2654 = vsel %vm2645, %v1475, %v1634
      %v2657 = vsel %vm2645, %v1476, %v1636
      %v2660 = vsel %vm2645, %v1477, %v1638
      %v2663 = vsel %vm2645, %v1478, %v1640
      %v2666 = vsel %vm2645, %v1479, %v1642
      %v2669 = vsel %vm2645, %v1480, %v1644
      %vm2670 = vcmask 261120
      %v2672 = vsel %vm2670, %v2648, %v1670
      %v2674 = vsel %vm2670, %v2651, %v1672
      %v2676 = vsel %vm2670, %v2654, %v1674
      %v2678 = vsel %vm2670, %v2657, %v1676
      %v2680 = vsel %vm2670, %v2660, %v1678
      %v2682 = vsel %vm2670, %v2663, %v1680
      %v2684 = vsel %vm2670, %v2666, %v1682
      %v2686 = vsel %vm2670, %v2669, %v1684
      %vm2687 = vcmask 392192
      %v2689 = vsel %vm2687, %v2672, %v1710
      %v2691 = vsel %vm2687, %v2674, %v1712
      %v2693 = vsel %vm2687, %v2676, %v1714
      %v2695 = vsel %vm2687, %v2678, %v1716
      %v2697 = vsel %vm2687, %v2680, %v1718
      %v2699 = vsel %vm2687, %v2682, %v1720
      %v2701 = vsel %vm2687, %v2684, %v1722
      %v2703 = vsel %vm2687, %v2686, %v1724
      %v2705 = vsel %vm655, %v2689, %v1822
      %v2707 = vsel %vm655, %v2691, %v1824
      %v2709 = vsel %vm655, %v2693, %v1826
      %v2711 = vsel %vm655, %v2695, %v1828
      %v2713 = vsel %vm655, %v2697, %v1830
      %v2715 = vsel %vm655, %v2699, %v1832
      %v2717 = vsel %vm655, %v2701, %v1834
      %v2719 = vsel %vm655, %v2703, %v1836
      %vm2720 = vcmask 654336
      %v2722 = vsel %vm2720, %v2705, %v1918
      %v2724 = vsel %vm2720, %v2707, %v1920
      %v2726 = vsel %vm2720, %v2709, %v1922
      %v2728 = vsel %vm2720, %v2711, %v1924
      %v2730 = vsel %vm2720, %v2713, %v1926
      %v2732 = vsel %vm2720, %v2715, %v1928
      %v2734 = vsel %vm2720, %v2717, %v1930
      %v2736 = vsel %vm2720, %v2719, %v1932
      %vm2737 = vcmask 785408
      %v2739 = vsel %vm2737, %v2722, %v2014
      %v2741 = vsel %vm2737, %v2724, %v2016
      %v2743 = vsel %vm2737, %v2726, %v2018
      %v2745 = vsel %vm2737, %v2728, %v2020
      %v2747 = vsel %vm2737, %v2730, %v2022
      %v2749 = vsel %vm2737, %v2732, %v2024
      %v2751 = vsel %vm2737, %v2734, %v2026
      %v2753 = vsel %vm2737, %v2736, %v2028
      %vm2754 = vcmask 916480
      %v2756 = vsel %vm2754, %v2739, %v2110
      %v2758 = vsel %vm2754, %v2741, %v2112
      %v2760 = vsel %vm2754, %v2743, %v2114
      %v2762 = vsel %vm2754, %v2745, %v2116
      %v2764 = vsel %vm2754, %v2747, %v2118
      %v2766 = vsel %vm2754, %v2749, %v2120
      %v2768 = vsel %vm2754, %v2751, %v2122
      %v2770 = vsel %vm2754, %v2753, %v2124
      %v2773 = vsel %vm2645, %v1540, %v2150
      %v2776 = vsel %vm2645, %v1541, %v2152
      %v2779 = vsel %vm2645, %v1542, %v2154
      %v2782 = vsel %vm2645, %v1543, %v2156
      %v2785 = vsel %vm2645, %v1544, %v2158
      %v2788 = vsel %vm2645, %v1545, %v2160
      %v2791 = vsel %vm2645, %v1546, %v2162
      %v2794 = vsel %vm2645, %v1547, %v2164
      %v2796 = vsel %vm2670, %v2773, %v2190
      %v2798 = vsel %vm2670, %v2776, %v2192
      %v2800 = vsel %vm2670, %v2779, %v2194
      %v2802 = vsel %vm2670, %v2782, %v2196
      %v2804 = vsel %vm2670, %v2785, %v2198
      %v2806 = vsel %vm2670, %v2788, %v2200
      %v2808 = vsel %vm2670, %v2791, %v2202
      %v2810 = vsel %vm2670, %v2794, %v2204
      %v2812 = vsel %vm2687, %v2796, %v2230
      %v2814 = vsel %vm2687, %v2798, %v2232
      %v2816 = vsel %vm2687, %v2800, %v2234
      %v2818 = vsel %vm2687, %v2802, %v2236
      %v2820 = vsel %vm2687, %v2804, %v2238
      %v2822 = vsel %vm2687, %v2806, %v2240
      %v2824 = vsel %vm2687, %v2808, %v2242
      %v2826 = vsel %vm2687, %v2810, %v2244
      %v2828 = vsel %vm655, %v2812, %v2342
      %v2830 = vsel %vm655, %v2814, %v2344
      %v2832 = vsel %vm655, %v2816, %v2346
      %v2834 = vsel %vm655, %v2818, %v2348
      %v2836 = vsel %vm655, %v2820, %v2350
      %v2838 = vsel %vm655, %v2822, %v2352
      %v2840 = vsel %vm655, %v2824, %v2354
      %v2842 = vsel %vm655, %v2826, %v2356
      %v2844 = vsel %vm2720, %v2828, %v2438
      %v2846 = vsel %vm2720, %v2830, %v2440
      %v2848 = vsel %vm2720, %v2832, %v2442
      %v2850 = vsel %vm2720, %v2834, %v2444
      %v2852 = vsel %vm2720, %v2836, %v2446
      %v2854 = vsel %vm2720, %v2838, %v2448
      %v2856 = vsel %vm2720, %v2840, %v2450
      %v2858 = vsel %vm2720, %v2842, %v2452
      %v2860 = vsel %vm2737, %v2844, %v2534
      %v2862 = vsel %vm2737, %v2846, %v2536
      %v2864 = vsel %vm2737, %v2848, %v2538
      %v2866 = vsel %vm2737, %v2850, %v2540
      %v2868 = vsel %vm2737, %v2852, %v2542
      %v2870 = vsel %vm2737, %v2854, %v2544
      %v2872 = vsel %vm2737, %v2856, %v2546
      %v2874 = vsel %vm2737, %v2858, %v2548
      %v2876 = vsel %vm2754, %v2860, %v2630
      %v2878 = vsel %vm2754, %v2862, %v2632
      %v2880 = vsel %vm2754, %v2864, %v2634
      %v2882 = vsel %vm2754, %v2866, %v2636
      %v2884 = vsel %vm2754, %v2868, %v2638
      %v2886 = vsel %vm2754, %v2870, %v2640
      %v2888 = vsel %vm2754, %v2872, %v2642
      %v2890 = vsel %vm2754, %v2874, %v2644
      %v2907 = vunpack.c.l.b16 %v2756
      %v2908 = vunpack.c.l.b16 %v2876
      %v2909 = vunpack.c.l.b16 %v2758
      %v2910 = vunpack.c.l.b16 %v2878
      %v2911 = vunpack.c.l.b16 %v2760
      %v2912 = vunpack.c.l.b16 %v2880
      %v2913 = vunpack.c.l.b16 %v2762
      %v2914 = vunpack.c.l.b16 %v2882
      %v2915 = vunpack.c.l.b16 %v2764
      %v2916 = vunpack.c.l.b16 %v2884
      %v2917 = vunpack.c.l.b16 %v2766
      %v2918 = vunpack.c.l.b16 %v2886
      %v2919 = vunpack.c.l.b16 %v2768
      %v2920 = vunpack.c.l.b16 %v2888
      %v2921 = vunpack.c.l.b16 %v2770
      %v2922 = vunpack.c.l.b16 %v2890
      %v2923 = vld [vmem:[%s5] sm:$0xf]
      %v2924 = vld [vmem:[%s5 + $0x4] sm:$0xf]
      %v2925 = vld [vmem:[%s5 + $0x8] sm:$0xf]
      %v2926 = vld [vmem:[%s5 + $0xc] sm:$0xf]
      %v2927 = vld [vmem:[%s5 + $0x10] sm:$0xf]
      %v2928 = vld [vmem:[%s5 + $0x14] sm:$0xf]
      %v2929 = vld [vmem:[%s5 + $0x18] sm:$0xf]
      %v2930 = vld [vmem:[%s5 + $0x1c] sm:$0xf]
      %v2931 = vld [vmem:[%s5 + $0x20] sm:$0xf]
      %v2932 = vld [vmem:[%s5 + $0x24] sm:$0xf]
      %v2933 = vld [vmem:[%s5 + $0x28] sm:$0xf]
      %v2934 = vld [vmem:[%s5 + $0x2c] sm:$0xf]
      %v2935 = vld [vmem:[%s5 + $0x30] sm:$0xf]
      %v2936 = vld [vmem:[%s5 + $0x34] sm:$0xf]
      %v2937 = vld [vmem:[%s5 + $0x38] sm:$0xf]
      %v2938 = vld [vmem:[%s5 + $0x3c] sm:$0xf]
      %v2939 = vld [vmem:[%s5 + $0x40] sm:$0xf]
      %v2940 = vld [vmem:[%s5 + $0x44] sm:$0xf]
      %v2941 = vld [vmem:[%s5 + $0x48] sm:$0xf]
      %v2942 = vld [vmem:[%s5 + $0x4c] sm:$0xf]
      %v2943 = vld [vmem:[%s5 + $0x50] sm:$0xf]
      %v2944 = vld [vmem:[%s5 + $0x54] sm:$0xf]
      %v2945 = vld [vmem:[%s5 + $0x58] sm:$0xf]
      %v2946 = vld [vmem:[%s5 + $0x5c] sm:$0xf]
      %v2947 = vld [vmem:[%s5 + $0x60] sm:$0xf]
      %v2948 = vld [vmem:[%s5 + $0x64] sm:$0xf]
      %v2949 = vld [vmem:[%s5 + $0x68] sm:$0xf]
      %v2950 = vld [vmem:[%s5 + $0x6c] sm:$0xf]
      %v2951 = vld [vmem:[%s5 + $0x70] sm:$0xf]
      %v2952 = vld [vmem:[%s5 + $0x74] sm:$0xf]
      %v2953 = vld [vmem:[%s5 + $0x78] sm:$0xf]
      %v2954 = vld [vmem:[%s5 + $0x7c] sm:$0xf]
      %v2955 = vpack.c.b16 %v2909, %v2907
      %v2956 = vpack.c.b16 %v2910, %v2908
      %v2957 = vpack.c.b16 %v2913, %v2911
      %v2958 = vpack.c.b16 %v2914, %v2912
      %v2959 = vpack.c.b16 %v2917, %v2915
      %v2960 = vpack.c.b16 %v2918, %v2916
      %v2961 = vpack.c.b16 %v2921, %v2919
      %v2962 = vpack.c.b16 %v2922, %v2920
      %v3003 = vunpack.c.l.b16 %v2923
      %v3004 = vunpack.c.l.b16 %v2924
      %v3005 = vunpack.c.l.b16 %v2925
      %v3006 = vunpack.c.l.b16 %v2926
      %v3007 = vunpack.c.l.b16 %v2927
      %v3008 = vunpack.c.l.b16 %v2928
      %v3009 = vunpack.c.l.b16 %v2929
      %v3010 = vunpack.c.l.b16 %v2930
      %v3011 = vunpack.c.l.b16 %v2931
      %v3012 = vunpack.c.l.b16 %v2932
      %v3013 = vunpack.c.l.b16 %v2933
      %v3014 = vunpack.c.l.b16 %v2934
      %v3015 = vunpack.c.l.b16 %v2935
      %v3016 = vunpack.c.l.b16 %v2936
      %v3017 = vunpack.c.l.b16 %v2937
      %v3018 = vunpack.c.l.b16 %v2938
      %v3019 = vunpack.c.l.b16 %v2939
      %v3020 = vunpack.c.l.b16 %v2940
      %v3021 = vunpack.c.l.b16 %v2941
      %v3022 = vunpack.c.l.b16 %v2942
      %v3023 = vunpack.c.l.b16 %v2943
      %v3024 = vunpack.c.l.b16 %v2944
      %v3025 = vunpack.c.l.b16 %v2945
      %v3026 = vunpack.c.l.b16 %v2946
      %v3027 = vunpack.c.l.b16 %v2947
      %v3028 = vunpack.c.l.b16 %v2948
      %v3029 = vunpack.c.l.b16 %v2949
      %v3030 = vunpack.c.l.b16 %v2950
      %v3031 = vunpack.c.l.b16 %v2951
      %v3032 = vunpack.c.l.b16 %v2952
      %v3033 = vunpack.c.l.b16 %v2953
      %v3034 = vunpack.c.l.b16 %v2954
      %v3035 = vpack.c.b16 %v3004, %v3003
      %v3036 = vpack.c.b16 %v3006, %v3005
      %v3037 = vpack.c.b16 %v3008, %v3007
      %v3038 = vpack.c.b16 %v3010, %v3009
      %v3039 = vpack.c.b16 %v3012, %v3011
      %v3040 = vpack.c.b16 %v3014, %v3013
      %v3041 = vpack.c.b16 %v3016, %v3015
      %v3042 = vpack.c.b16 %v3018, %v3017
      %v3043 = vpack.c.b16 %v3020, %v3019
      %v3044 = vpack.c.b16 %v3022, %v3021
      %v3045 = vpack.c.b16 %v3024, %v3023
      %v3046 = vpack.c.b16 %v3026, %v3025
      %v3047 = vpack.c.b16 %v3028, %v3027
      %v3048 = vpack.c.b16 %v3030, %v3029
      %v3049 = vpack.c.b16 %v3032, %v3031
      %v3050 = vpack.c.b16 %v3034, %v3033
      %3067 = vmatprep.subr.bf16.mxu0 0
      %3068 = vmatpush1.bf16.msra.mxu0 %v3035
      %3069 = vmatprep.subr.bf16.mxu0 0
      %3070 = vmatpush1.bf16.msra.mxu0 %v3036
      %3071 = vmatprep.subr.bf16.mxu0 0
      %3072 = vmatpush1.bf16.msra.mxu0 %v3037
      %3073 = vmatprep.subr.bf16.mxu0 0
      %3074 = vmatpush1.bf16.msra.mxu0 %v3038
      %3075 = vmatprep.subr.bf16.mxu0 0
      %3076 = vmatpush1.bf16.msra.mxu0 %v3039
      %3077 = vmatprep.subr.bf16.mxu0 0
      %3078 = vmatpush1.bf16.msra.mxu0 %v3040
      %3079 = vmatprep.subr.bf16.mxu0 0
      %3080 = vmatpush1.bf16.msra.mxu0 %v3041
      %3081 = vmatprep.subr.bf16.mxu0 0
      %3082 = vmatpush1.bf16.msra.mxu0 %v3042
      %3083 = vmatprep.subr.bf16.mxu0 0
      %3084 = vmatpush1.bf16.msra.mxu0 %v3043
      %3085 = vmatprep.subr.bf16.mxu0 0
      %3086 = vmatpush1.bf16.msra.mxu0 %v3044
      %3087 = vmatprep.subr.bf16.mxu0 0
      %3088 = vmatpush1.bf16.msra.mxu0 %v3045
      %3089 = vmatprep.subr.bf16.mxu0 0
      %3090 = vmatpush1.bf16.msra.mxu0 %v3046
      %3091 = vmatprep.subr.bf16.mxu0 0
      %3092 = vmatpush1.bf16.msra.mxu0 %v3047
      %3093 = vmatprep.subr.bf16.mxu0 0
      %3094 = vmatpush1.bf16.msra.mxu0 %v3048
      %3095 = vmatprep.subr.bf16.mxu0 0
      %3096 = vmatpush1.bf16.msra.mxu0 %v3049
      %3097 = vmatprep.subr.bf16.mxu0 0
      %3098 = vmatpush1.bf16.msra.mxu0 %v3050
      %3099 = vmatprep.mubr.bf16.mxu0 %v2956
      %3100 = vmatmul.mubr.bf16.gmra.mrb[0].mxu0 %v2955
      %v3101 = vpop.f32.mrb[0].mxu0
      %v3102 = vadd.f32 0.0, %v3101
      %v3103 = vpop.f32.mrb[0].mxu0
      %v3104 = vpop.f32.mrb[0].mxu0
      %v3105 = vadd.f32 0.0, %v3104
      %v3106 = vpop.f32.mrb[0].mxu0
      %3107 = vmatprep.mubr.bf16.mxu0 %v2958
      %3108 = vmatmul.mubr.bf16.gmra.mrb[0].mxu0 %v2957
      %v3109 = vpop.f32.mrb[0].mxu0
      %v3110 = vadd.f32 0.0, %v3109
      %v3111 = vpop.f32.mrb[0].mxu0
      %v3112 = vpop.f32.mrb[0].mxu0
      %v3113 = vadd.f32 0.0, %v3112
      %v3114 = vpop.f32.mrb[0].mxu0
      %3115 = vmatprep.mubr.bf16.mxu0 %v2960
      %3116 = vmatmul.mubr.bf16.gmra.mrb[0].mxu0 %v2959
      %v3117 = vpop.f32.mrb[0].mxu0
      %v3118 = vadd.f32 0.0, %v3117
      %v3119 = vpop.f32.mrb[0].mxu0
      %v3120 = vpop.f32.mrb[0].mxu0
      %v3121 = vadd.f32 0.0, %v3120
      %v3122 = vpop.f32.mrb[0].mxu0
      %3123 = vmatprep.mubr.bf16.mxu0 %v2962
      %3124 = vmatmul.mubr.bf16.gmra.mrb[0].mxu0 %v2961
      %v3125 = vpop.f32.mrb[0].mxu0
      %v3126 = vadd.f32 0.0, %v3125
      %v3127 = vpop.f32.mrb[0].mxu0
      %v3128 = vpop.f32.mrb[0].mxu0
      %v3129 = vadd.f32 0.0, %v3128
      %v3130 = vpop.f32.mrb[0].mxu0
      %3131 = vdwg.mxu0
      %v3132 = vld [vmem:[%s6] sm:$0x1]
      %v3134 = vlaneseq
      %v3135 = vshrl.u32 %v3134, 7
      %v3136 = vsub.s32 0, %v3135
      %v3137 = vrot.slane %v3132, %v3136
      %v3139 = vmul.f32 %v3102, %v3137
      %v3140 = vmul.f32 %v3105, %v3137
      %v3141 = vmul.f32 %v3110, %v3137
      %v3142 = vmul.f32 %v3113, %v3137
      %v3143 = vmul.f32 %v3118, %v3137
      %v3144 = vmul.f32 %v3121, %v3137
      %v3145 = vmul.f32 %v3126, %v3137
      %v3146 = vmul.f32 %v3129, %v3137
      %v3147 = vld [vmem:[%s7] sm:$0x1]
      %v3149 = vlaneseq
      %v3150 = vshrl.u32 %v3149, 7
      %v3151 = vsub.s32 0, %v3150
      %v3152 = vrot.slane %v3147, %v3151
      %v3154 = vadd.f32 %v3139, %v3152
      %v3155 = vadd.f32 %v3140, %v3152
      %v3156 = vadd.f32 %v3141, %v3152
      %v3157 = vadd.f32 %v3142, %v3152
      %v3158 = vadd.f32 %v3143, %v3152
      %v3159 = vadd.f32 %v3144, %v3152
      %v3160 = vadd.f32 %v3145, %v3152
      %v3161 = vadd.f32 %v3146, %v3152
      %v3162 = vmul.f32 %v3154, 0.2
      %v3163 = vmul.f32 %v3155, 0.2
      %v3164 = vmul.f32 %v3156, 0.2
      %v3165 = vmul.f32 %v3157, 0.2
      %v3166 = vmul.f32 %v3158, 0.2
      %v3167 = vmul.f32 %v3159, 0.2
      %v3168 = vmul.f32 %v3160, 0.2
      %v3169 = vmul.f32 %v3161, 0.2
      %v3170 = vmax.f32 %v3154, %v3162
      %v3171 = vmax.f32 %v3155, %v3163
      %v3172 = vmax.f32 %v3156, %v3164
      %v3173 = vmax.f32 %v3157, %v3165
      %v3174 = vmax.f32 %v3158, %v3166
      %v3175 = vmax.f32 %v3159, %v3167
      %v3176 = vmax.f32 %v3160, %v3168
      %v3177 = vmax.f32 %v3161, %v3169
      %v3178 = vpack.c.bf16 %v3171, %v3170
      %v3179 = vpack.c.bf16 %v3173, %v3172
      %v3180 = vpack.c.bf16 %v3175, %v3174
      %v3181 = vpack.c.bf16 %v3177, %v3176
      %v3186 = vunpack.c.l.b16 %v3178
      %v3187 = vunpack.c.h.b16 %v3178
      %v3188 = vunpack.c.l.b16 %v3179
      %v3189 = vunpack.c.h.b16 %v3179
      %v3190 = vunpack.c.l.b16 %v3180
      %v3191 = vunpack.c.h.b16 %v3180
      %v3192 = vunpack.c.l.b16 %v3181
      %v3193 = vunpack.c.h.b16 %v3181
      %v3194 = vpack.c.b16 %v3186, %v3186
      %v3195 = vpack.c.b16 %v3187, %v3187
      %v3196 = vpack.c.b16 %v3188, %v3188
      %v3197 = vpack.c.b16 %v3189, %v3189
      %v3198 = vpack.c.b16 %v3190, %v3190
      %v3199 = vpack.c.b16 %v3191, %v3191
      %v3200 = vpack.c.b16 %v3192, %v3192
      %v3201 = vpack.c.b16 %v3193, %v3193
      %vm3202 = vcmask 1043456
      %v3205 = vsel %vm3202, %v3194, 0
      %v3207 = vsel %vm3202, %v3195, 0
      %v3209 = vsel %vm3202, %v3196, 0
      %v3211 = vsel %vm3202, %v3197, 0
      %v3213 = vsel %vm3202, %v3198, 0
      %v3215 = vsel %vm3202, %v3199, 0
      %v3217 = vsel %vm3202, %v3200, 0
      %v3219 = vsel %vm3202, %v3201, 0
      %v3220 = vshrl.u32 %v3205, 16
      %v3222 = vshll.u32 %v3205, 16
      %v3224 = vrot.slane %v3222, 1
      %v3225 = vor.u32 %v3220, %v3224
      %v3226 = vshrl.u32 %v3207, 16
      %v3228 = vshll.u32 %v3207, 16
      %v3230 = vrot.slane %v3228, 1
      %v3231 = vor.u32 %v3226, %v3230
      %v3232 = vshrl.u32 %v3209, 16
      %v3234 = vshll.u32 %v3209, 16
      %v3236 = vrot.slane %v3234, 1
      %v3237 = vor.u32 %v3232, %v3236
      %v3238 = vshrl.u32 %v3211, 16
      %v3240 = vshll.u32 %v3211, 16
      %v3242 = vrot.slane %v3240, 1
      %v3243 = vor.u32 %v3238, %v3242
      %v3244 = vshrl.u32 %v3213, 16
      %v3246 = vshll.u32 %v3213, 16
      %v3248 = vrot.slane %v3246, 1
      %v3249 = vor.u32 %v3244, %v3248
      %3250 = vrot.lane.b32.xlu0 %v3225, 16
      %v3251 = vpop.permute.xlu0 %3250
      %3252 = vrot.lane.b32.xlu0 %v3231, 16
      %v3253 = vpop.permute.xlu0 %3252
      %3254 = vrot.lane.b32.xlu0 %v3237, 16
      %v3255 = vpop.permute.xlu0 %3254
      %3256 = vrot.lane.b32.xlu0 %v3243, 16
      %v3257 = vpop.permute.xlu0 %3256
      %3258 = vrot.lane.b32.xlu0 %v3249, 16
      %v3259 = vpop.permute.xlu0 %3258
      %v3265 = vrot.slane %v3205, 1
      %v3266 = vrot.slane %v3207, 1
      %v3267 = vrot.slane %v3209, 1
      %v3268 = vrot.slane %v3211, 1
      %v3269 = vrot.slane %v3213, 1
      %3270 = vrot.lane.b32.xlu0 %v3265, 32
      %v3271 = vpop.permute.xlu0 %3270
      %3272 = vrot.lane.b32.xlu0 %v3266, 32
      %v3273 = vpop.permute.xlu0 %3272
      %3274 = vrot.lane.b32.xlu0 %v3267, 32
      %v3275 = vpop.permute.xlu0 %3274
      %3276 = vrot.lane.b32.xlu0 %v3268, 32
      %v3277 = vpop.permute.xlu0 %3276
      %3278 = vrot.lane.b32.xlu0 %v3269, 32
      %v3279 = vpop.permute.xlu0 %3278
      %v3280 = vrot.slane %v3220, 1
      %v3281 = vrot.slane %v3222, 2
      %v3282 = vor.u32 %v3280, %v3281
      %v3283 = vrot.slane %v3226, 1
      %v3284 = vrot.slane %v3228, 2
      %v3285 = vor.u32 %v3283, %v3284
      %v3286 = vrot.slane %v3232, 1
      %v3287 = vrot.slane %v3234, 2
      %v3288 = vor.u32 %v3286, %v3287
      %v3289 = vrot.slane %v3238, 1
      %v3290 = vrot.slane %v3240, 2
      %v3291 = vor.u32 %v3289, %v3290
      %v3292 = vrot.slane %v3244, 1
      %v3293 = vrot.slane %v3246, 2
      %v3294 = vor.u32 %v3292, %v3293
      %3295 = vrot.lane.b32.xlu0 %v3282, 48
      %v3296 = vpop.permute.xlu0 %3295
      %3297 = vrot.lane.b32.xlu0 %v3285, 48
      %v3298 = vpop.permute.xlu0 %3297
      %3299 = vrot.lane.b32.xlu0 %v3288, 48
      %v3300 = vpop.permute.xlu0 %3299
      %3301 = vrot.lane.b32.xlu0 %v3291, 48
      %v3302 = vpop.permute.xlu0 %3301
      %3303 = vrot.lane.b32.xlu0 %v3294, 48
      %v3304 = vpop.permute.xlu0 %3303
      %3306 = vrot.lane.b32.xlu0 %v3207, 64
      %v3307 = vpop.permute.xlu0 %3306
      %3308 = vrot.lane.b32.xlu0 %v3209, 64
      %v3309 = vpop.permute.xlu0 %3308
      %3310 = vrot.lane.b32.xlu0 %v3211, 64
      %v3311 = vpop.permute.xlu0 %3310
      %3312 = vrot.lane.b32.xlu0 %v3213, 64
      %v3313 = vpop.permute.xlu0 %3312
      %3314 = vrot.lane.b32.xlu0 %v3215, 64
      %v3315 = vpop.permute.xlu0 %3314
      %v3316 = vshrl.u32 %v3215, 16
      %v3318 = vshll.u32 %v3215, 16
      %v3320 = vrot.slane %v3318, 1
      %v3321 = vor.u32 %v3316, %v3320
      %3322 = vrot.lane.b32.xlu0 %v3231, 80
      %v3323 = vpop.permute.xlu0 %3322
      %3324 = vrot.lane.b32.xlu0 %v3237, 80
      %v3325 = vpop.permute.xlu0 %3324
      %3326 = vrot.lane.b32.xlu0 %v3243, 80
      %v3327 = vpop.permute.xlu0 %3326
      %3328 = vrot.lane.b32.xlu0 %v3249, 80
      %v3329 = vpop.permute.xlu0 %3328
      %3330 = vrot.lane.b32.xlu0 %v3321, 80
      %v3331 = vpop.permute.xlu0 %3330
      %v3332 = vrot.slane %v3215, 1
      %3333 = vrot.lane.b32.xlu0 %v3266, 96
      %v3334 = vpop.permute.xlu0 %3333
      %3335 = vrot.lane.b32.xlu0 %v3267, 96
      %v3336 = vpop.permute.xlu0 %3335
      %3337 = vrot.lane.b32.xlu0 %v3268, 96
      %v3338 = vpop.permute.xlu0 %3337
      %3339 = vrot.lane.b32.xlu0 %v3269, 96
      %v3340 = vpop.permute.xlu0 %3339
      %3341 = vrot.lane.b32.xlu0 %v3332, 96
      %v3342 = vpop.permute.xlu0 %3341
      %v3343 = vrot.slane %v3316, 1
      %v3344 = vrot.slane %v3318, 2
      %v3345 = vor.u32 %v3343, %v3344
      %3346 = vrot.lane.b32.xlu0 %v3285, 112
      %v3347 = vpop.permute.xlu0 %3346
      %3348 = vrot.lane.b32.xlu0 %v3288, 112
      %v3349 = vpop.permute.xlu0 %3348
      %3350 = vrot.lane.b32.xlu0 %v3291, 112
      %v3351 = vpop.permute.xlu0 %3350
      %3352 = vrot.lane.b32.xlu0 %v3294, 112
      %v3353 = vpop.permute.xlu0 %3352
      %3354 = vrot.lane.b32.xlu0 %v3345, 112
      %v3355 = vpop.permute.xlu0 %3354
      %v3356 = vshrl.u32 %v3217, 16
      %v3358 = vshll.u32 %v3217, 16
      %v3360 = vrot.slane %v3358, 1
      %v3361 = vor.u32 %v3356, %v3360
      %3362 = vrot.lane.b32.xlu0 %v3321, 16
      %v3363 = vpop.permute.xlu0 %3362
      %3364 = vrot.lane.b32.xlu0 %v3361, 16
      %v3365 = vpop.permute.xlu0 %3364
      %v3367 = vrot.slane %v3217, 1
      %3368 = vrot.lane.b32.xlu0 %v3332, 32
      %v3369 = vpop.permute.xlu0 %3368
      %3370 = vrot.lane.b32.xlu0 %v3367, 32
      %v3371 = vpop.permute.xlu0 %3370
      %v3372 = vrot.slane %v3356, 1
      %v3373 = vrot.slane %v3358, 2
      %v3374 = vor.u32 %v3372, %v3373
      %3375 = vrot.lane.b32.xlu0 %v3345, 48
      %v3376 = vpop.permute.xlu0 %3375
      %3377 = vrot.lane.b32.xlu0 %v3374, 48
      %v3378 = vpop.permute.xlu0 %3377
      %3380 = vrot.lane.b32.xlu0 %v3217, 64
      %v3381 = vpop.permute.xlu0 %3380
      %3382 = vrot.lane.b32.xlu0 %v3219, 64
      %v3383 = vpop.permute.xlu0 %3382
      %v3384 = vshrl.u32 %v3219, 16
      %v3386 = vshll.u32 %v3219, 16
      %v3388 = vrot.slane %v3386, 1
      %v3389 = vor.u32 %v3384, %v3388
      %3390 = vrot.lane.b32.xlu0 %v3361, 80
      %v3391 = vpop.permute.xlu0 %3390
      %3392 = vrot.lane.b32.xlu0 %v3389, 80
      %v3393 = vpop.permute.xlu0 %3392
      %v3394 = vrot.slane %v3219, 1
      %3395 = vrot.lane.b32.xlu0 %v3367, 96
      %v3396 = vpop.permute.xlu0 %3395
      %3397 = vrot.lane.b32.xlu0 %v3394, 96
      %v3398 = vpop.permute.xlu0 %3397
      %v3399 = vrot.slane %v3384, 1
      %v3400 = vrot.slane %v3386, 2
      %v3401 = vor.u32 %v3399, %v3400
      %3402 = vrot.lane.b32.xlu0 %v3374, 112
      %v3403 = vpop.permute.xlu0 %3402
      %3404 = vrot.lane.b32.xlu0 %v3401, 112
      %v3405 = vpop.permute.xlu0 %3404
      %v3407 = vsel %vm2645, %v3205, %v3251
      %v3409 = vsel %vm2645, %v3207, %v3253
      %v3411 = vsel %vm2645, %v3209, %v3255
      %v3413 = vsel %vm2645, %v3211, %v3257
      %v3415 = vsel %vm2645, %v3213, %v3259
      %v3417 = vsel %vm2670, %v3407, %v3271
      %v3419 = vsel %vm2670, %v3409, %v3273
      %v3421 = vsel %vm2670, %v3411, %v3275
      %v3423 = vsel %vm2670, %v3413, %v3277
      %v3425 = vsel %vm2670, %v3415, %v3279
      %v3427 = vsel %vm2687, %v3417, %v3296
      %v3429 = vsel %vm2687, %v3419, %v3298
      %v3431 = vsel %vm2687, %v3421, %v3300
      %v3433 = vsel %vm2687, %v3423, %v3302
      %v3435 = vsel %vm2687, %v3425, %v3304
      %v3437 = vsel %vm655, %v3427, %v3307
      %v3439 = vsel %vm655, %v3429, %v3309
      %v3441 = vsel %vm655, %v3431, %v3311
      %v3443 = vsel %vm655, %v3433, %v3313
      %v3445 = vsel %vm655, %v3435, %v3315
      %v3447 = vsel %vm2720, %v3437, %v3323
      %v3449 = vsel %vm2720, %v3439, %v3325
      %v3451 = vsel %vm2720, %v3441, %v3327
      %v3453 = vsel %vm2720, %v3443, %v3329
      %v3455 = vsel %vm2720, %v3445, %v3331
      %v3457 = vsel %vm2737, %v3447, %v3334
      %v3459 = vsel %vm2737, %v3449, %v3336
      %v3461 = vsel %vm2737, %v3451, %v3338
      %v3463 = vsel %vm2737, %v3453, %v3340
      %v3465 = vsel %vm2737, %v3455, %v3342
      %v3467 = vsel %vm2754, %v3457, %v3347
      %v3469 = vsel %vm2754, %v3459, %v3349
      %v3471 = vsel %vm2754, %v3461, %v3351
      %v3473 = vsel %vm2754, %v3463, %v3353
      %v3475 = vsel %vm2754, %v3465, %v3355
      %v3477 = vsel %vm2645, %v3215, %v3363
      %v3479 = vsel %vm2645, %v3217, %v3365
      %v3481 = vsel %vm2670, %v3477, %v3369
      %v3483 = vsel %vm2670, %v3479, %v3371
      %v3485 = vsel %vm2687, %v3481, %v3376
      %v3487 = vsel %vm2687, %v3483, %v3378
      %v3489 = vsel %vm655, %v3485, %v3381
      %v3491 = vsel %vm655, %v3487, %v3383
      %v3493 = vsel %vm2720, %v3489, %v3391
      %v3495 = vsel %vm2720, %v3491, %v3393
      %v3497 = vsel %vm2737, %v3493, %v3396
      %v3499 = vsel %vm2737, %v3495, %v3398
      %v3501 = vsel %vm2754, %v3497, %v3403
      %v3503 = vsel %vm2754, %v3499, %v3405
      %v3511 = vunpack.c.l.b16 %v3467
      %v3512 = vunpack.c.l.b16 %v3471
      %v3513 = vunpack.c.l.b16 %v3469
      %v3514 = vunpack.c.l.b16 %v3473
      %v3515 = vunpack.c.l.b16 %v3475
      %v3516 = vunpack.c.l.b16 %v3501
      %v3517 = vunpack.c.l.b16 %v3503
      %v3518 = vld [vmem:[%s8] sm:$0xf]
      %v3519 = vld [vmem:[%s8 + $0x4] sm:$0xf]
      %v3520 = vld [vmem:[%s8 + $0x8] sm:$0xf]
      %v3521 = vld [vmem:[%s8 + $0xc] sm:$0xf]
      %v3522 = vld [vmem:[%s8 + $0x10] sm:$0xf]
      %v3523 = vld [vmem:[%s8 + $0x14] sm:$0xf]
      %v3524 = vld [vmem:[%s8 + $0x18] sm:$0xf]
      %v3525 = vld [vmem:[%s8 + $0x1c] sm:$0xf]
      %v3526 = vld [vmem:[%s8 + $0x20] sm:$0xf]
      %v3527 = vld [vmem:[%s8 + $0x24] sm:$0xf]
      %v3528 = vld [vmem:[%s8 + $0x28] sm:$0xf]
      %v3529 = vld [vmem:[%s8 + $0x2c] sm:$0xf]
      %v3530 = vld [vmem:[%s8 + $0x30] sm:$0xf]
      %v3531 = vld [vmem:[%s8 + $0x34] sm:$0xf]
      %v3532 = vld [vmem:[%s8 + $0x38] sm:$0xf]
      %v3533 = vld [vmem:[%s8 + $0x3c] sm:$0xf]
      %v3534 = vld [vmem:[%s8 + $0x40] sm:$0xf]
      %v3535 = vld [vmem:[%s8 + $0x44] sm:$0xf]
      %v3536 = vld [vmem:[%s8 + $0x48] sm:$0xf]
      %v3537 = vld [vmem:[%s8 + $0x4c] sm:$0xf]
      %v3538 = vld [vmem:[%s8 + $0x50] sm:$0xf]
      %v3539 = vld [vmem:[%s8 + $0x54] sm:$0xf]
      %v3540 = vld [vmem:[%s8 + $0x58] sm:$0xf]
      %v3541 = vld [vmem:[%s8 + $0x5c] sm:$0xf]
      %v3542 = vld [vmem:[%s8 + $0x60] sm:$0xf]
      %v3543 = vld [vmem:[%s8 + $0x64] sm:$0xf]
      %v3544 = vld [vmem:[%s8 + $0x68] sm:$0xf]
      %v3545 = vld [vmem:[%s8 + $0x6c] sm:$0xf]
      %v3546 = vld [vmem:[%s8 + $0x70] sm:$0xf]
      %v3547 = vld [vmem:[%s8 + $0x74] sm:$0xf]
      %v3548 = vld [vmem:[%s8 + $0x78] sm:$0xf]
      %v3549 = vld [vmem:[%s8 + $0x7c] sm:$0xf]
      %v3550 = vpack.c.b16 %v3513, %v3511
      %v3551 = vpack.c.b16 %v3514, %v3512
      %v3552 = vpack.c.b16 %v3516, %v3515
      %v3553 = vpack.c.b16 %v3515, %v3515
      %v3554 = vpack.c.b16 %v3517, %v3517
      %v3592 = vunpack.c.l.b16 %v3518
      %v3593 = vunpack.c.l.b16 %v3519
      %v3594 = vunpack.c.l.b16 %v3520
      %v3595 = vunpack.c.l.b16 %v3521
      %v3596 = vunpack.c.l.b16 %v3522
      %v3597 = vunpack.c.l.b16 %v3523
      %v3598 = vunpack.c.l.b16 %v3524
      %v3599 = vunpack.c.l.b16 %v3525
      %v3600 = vunpack.c.l.b16 %v3526
      %v3601 = vunpack.c.l.b16 %v3527
      %v3602 = vunpack.c.l.b16 %v3528
      %v3603 = vunpack.c.l.b16 %v3529
      %v3604 = vunpack.c.l.b16 %v3530
      %v3605 = vunpack.c.l.b16 %v3531
      %v3606 = vunpack.c.l.b16 %v3532
      %v3607 = vunpack.c.l.b16 %v3533
      %v3608 = vunpack.c.l.b16 %v3534
      %v3609 = vunpack.c.l.b16 %v3535
      %v3610 = vunpack.c.l.b16 %v3536
      %v3611 = vunpack.c.l.b16 %v3537
      %v3612 = vunpack.c.l.b16 %v3538
      %v3613 = vunpack.c.l.b16 %v3539
      %v3614 = vunpack.c.l.b16 %v3540
      %v3615 = vunpack.c.l.b16 %v3541
      %v3616 = vunpack.c.l.b16 %v3542
      %v3617 = vunpack.c.l.b16 %v3543
      %v3618 = vunpack.c.l.b16 %v3544
      %v3619 = vunpack.c.l.b16 %v3545
      %v3620 = vunpack.c.l.b16 %v3546
      %v3621 = vunpack.c.l.b16 %v3547
      %v3622 = vunpack.c.l.b16 %v3548
      %v3623 = vunpack.c.l.b16 %v3549
      %v3624 = vpack.c.b16 %v3593, %v3592
      %v3625 = vpack.c.b16 %v3595, %v3594
      %v3626 = vpack.c.b16 %v3597, %v3596
      %v3627 = vpack.c.b16 %v3599, %v3598
      %v3628 = vpack.c.b16 %v3601, %v3600
      %v3629 = vpack.c.b16 %v3603, %v3602
      %v3630 = vpack.c.b16 %v3605, %v3604
      %v3631 = vpack.c.b16 %v3607, %v3606
      %v3632 = vpack.c.b16 %v3609, %v3608
      %v3633 = vpack.c.b16 %v3611, %v3610
      %v3634 = vpack.c.b16 %v3613, %v3612
      %v3635 = vpack.c.b16 %v3615, %v3614
      %v3636 = vpack.c.b16 %v3617, %v3616
      %v3637 = vpack.c.b16 %v3619, %v3618
      %v3638 = vpack.c.b16 %v3621, %v3620
      %v3639 = vpack.c.b16 %v3623, %v3622
      %3656 = vmatprep.subr.bf16.mxu0 0
      %3657 = vmatpush1.bf16.msra.mxu0 %v3624
      %3658 = vmatprep.subr.bf16.mxu0 0
      %3659 = vmatpush1.bf16.msra.mxu0 %v3625
      %3660 = vmatprep.subr.bf16.mxu0 0
      %3661 = vmatpush1.bf16.msra.mxu0 %v3626
      %3662 = vmatprep.subr.bf16.mxu0 0
      %3663 = vmatpush1.bf16.msra.mxu0 %v3627
      %3664 = vmatprep.subr.bf16.mxu0 0
      %3665 = vmatpush1.bf16.msra.mxu0 %v3628
      %3666 = vmatprep.subr.bf16.mxu0 0
      %3667 = vmatpush1.bf16.msra.mxu0 %v3629
      %3668 = vmatprep.subr.bf16.mxu0 0
      %3669 = vmatpush1.bf16.msra.mxu0 %v3630
      %3670 = vmatprep.subr.bf16.mxu0 0
      %3671 = vmatpush1.bf16.msra.mxu0 %v3631
      %3672 = vmatprep.subr.bf16.mxu0 0
      %3673 = vmatpush1.bf16.msra.mxu0 %v3632
      %3674 = vmatprep.subr.bf16.mxu0 0
      %3675 = vmatpush1.bf16.msra.mxu0 %v3633
      %3676 = vmatprep.subr.bf16.mxu0 0
      %3677 = vmatpush1.bf16.msra.mxu0 %v3634
      %3678 = vmatprep.subr.bf16.mxu0 0
      %3679 = vmatpush1.bf16.msra.mxu0 %v3635
      %3680 = vmatprep.subr.bf16.mxu0 0
      %3681 = vmatpush1.bf16.msra.mxu0 %v3636
      %3682 = vmatprep.subr.bf16.mxu0 0
      %3683 = vmatpush1.bf16.msra.mxu0 %v3637
      %3684 = vmatprep.subr.bf16.mxu0 0
      %3685 = vmatpush1.bf16.msra.mxu0 %v3638
      %3686 = vmatprep.subr.bf16.mxu0 0
      %3687 = vmatpush1.bf16.msra.mxu0 %v3639
      %3688 = vmatprep.mubr.bf16.mxu0 %v3551
      %3689 = vmatmul.mubr.bf16.gmra.mrb[0].mxu0 %v3550
      %v3690 = vpop.f32.mrb[0].mxu0
      %v3691 = vadd.f32 0.0, %v3690
      %v3692 = vpop.f32.mrb[0].mxu0
      %v3693 = vpop.f32.mrb[0].mxu0
      %v3694 = vadd.f32 0.0, %v3693
      %v3695 = vpop.f32.mrb[0].mxu0
      %3696 = vmatprep.mubr.bf16.mxu0 %v3552
      %3697 = vmatmul.mubr.bf16.gmra.mrb[0].mxu0 %v3551
      %v3698 = vpop.f32.mrb[0].mxu0
      %v3699 = vadd.f32 0.0, %v3698
      %v3700 = vpop.f32.mrb[0].mxu0
      %v3701 = vpop.f32.mrb[0].mxu0
      %v3702 = vadd.f32 0.0, %v3701
      %v3703 = vpop.f32.mrb[0].mxu0
      %3704 = vmatprep.mubr.bf16.mxu0 %v3554
      %3705 = vmatmul.mubr.bf16.gmra.mrb[0].mxu0 %v3553
      %v3706 = vpop.f32.mrb[0].mxu0
      %v3707 = vadd.f32 0.0, %v3706
      %v3708 = vpop.f32.mrb[0].mxu0
      %v3709 = vpop.f32.mrb[0].mxu0
      %v3710 = vpop.f32.mrb[0].mxu0
      %3711 = vdwg.mxu0
      %v3712 = vld [vmem:[%s393] sm:$0x1]
      %v3713 = vld [vmem:[%s9] sm:$0xff]
      %v3714 = vld [vmem:[%s9 + $0x8] sm:$0xff]
      %v3715 = vld [vmem:[%s9 + $0x10] sm:$0xff]
      %v3716 = vld [vmem:[%s9 + $0x18] sm:$0xff]
      %v3717 = vld [vmem:[%s10] sm:$0x1]
      %v3719 = vsel %vm2670, %v3712, 0
      %3721 = vmatprep.subr.mxu0 0.0
      %3722 = vmatpush1.msra.mxu0 %v3713
      %3723 = vmatprep.subr.mxu0 0.0
      %3724 = vmatpush1.msra.mxu0 %v3714
      %3725 = vmatprep.subr.mxu0 0.0
      %3726 = vmatpush1.msra.mxu0 %v3715
      %3727 = vmatprep.subr.mxu0 0.0
      %3728 = vmatpush1.msra.mxu0 %v3716
      %3729 = vmatprep.subr.mxu0 0.0
      %3730 = vmatpush1.msra.mxu0 0.0
      %3731 = vmatprep.subr.mxu0 0.0
      %3732 = vmatpush1.msra.mxu0 0.0
      %3733 = vmatprep.subr.mxu0 0.0
      %3734 = vmatpush1.msra.mxu0 0.0
      %3735 = vmatprep.subr.mxu0 0.0
      %3736 = vmatpush1.msra.mxu0 0.0
      %3737 = vmatprep.subr.mxu0 0.0
      %3738 = vmatpush1.msra.mxu0 0.0
      %3739 = vmatprep.subr.mxu0 0.0
      %3740 = vmatpush1.msra.mxu0 0.0
      %3741 = vmatprep.subr.mxu0 0.0
      %3742 = vmatpush1.msra.mxu0 0.0
      %3743 = vmatprep.subr.mxu0 0.0
      %3744 = vmatpush1.msra.mxu0 0.0
      %3745 = vmatprep.subr.mxu0 0.0
      %3746 = vmatpush1.msra.mxu0 0.0
      %3747 = vmatprep.subr.mxu0 0.0
      %3748 = vmatpush1.msra.mxu0 0.0
      %3749 = vmatprep.subr.mxu0 0.0
      %3750 = vmatpush1.msra.mxu0 0.0
      %3751 = vmatprep.subr.mxu0 0.0
      %3752 = vmatpush1.msra.mxu0 0.0
      %3753 = vmatprep.subr.mxu0 0.0
      %3754 = vmatpush1.msra.mxu0 0.0
      %3755 = vmatprep.subr.mxu0 0.0
      %3756 = vmatpush1.msra.mxu0 0.0
      %3757 = vmatprep.subr.mxu0 0.0
      %3758 = vmatpush1.msra.mxu0 0.0
      %3759 = vmatprep.subr.mxu0 0.0
      %3760 = vmatpush1.msra.mxu0 0.0
      %3761 = vmatprep.subr.mxu0 0.0
      %3762 = vmatpush1.msra.mxu0 0.0
      %3763 = vmatprep.subr.mxu0 0.0
      %3764 = vmatpush1.msra.mxu0 0.0
      %3765 = vmatprep.subr.mxu0 0.0
      %3766 = vmatpush1.msra.mxu0 0.0
      %3767 = vmatprep.subr.mxu0 0.0
      %3768 = vmatpush1.msra.mxu0 0.0
      %3769 = vmatprep.subr.mxu0 0.0
      %3770 = vmatpush1.msra.mxu0 0.0
      %3771 = vmatprep.subr.mxu0 0.0
      %3772 = vmatpush1.msra.mxu0 0.0
      %3773 = vmatprep.subr.mxu0 0.0
      %3774 = vmatpush1.msra.mxu0 0.0
      %3775 = vmatprep.subr.mxu0 0.0
      %3776 = vmatpush1.msra.mxu0 0.0
      %3777 = vmatprep.subr.mxu0 0.0
      %3778 = vmatpush1.msra.mxu0 0.0
      %3779 = vmatprep.subr.mxu0 0.0
      %3780 = vmatpush1.msra.mxu0 0.0
      %3781 = vmatprep.subr.mxu0 0.0
      %3782 = vmatpush1.msra.mxu0 0.0
      %3783 = vmatprep.subr.mxu0 0.0
      %3784 = vmatpush1.msra.mxu0 0.0
      %3785 = vmatprep.mubr.f32.mxu0 0.0
      %3786 = vmatmul.mubr.f32.gmra.mrb[0].mxu0 %v3719
      %v3787 = vpop.f32.mrb[0].mxu0
      %v3788 = vadd.f32 %v3717, %v3787
      %v3789 = vpop.f32.mrb[0].mxu0
      %3790 = vdwg.mxu0
      %v3791 = vmul.f32 %v3788, 0.2
      %v3792 = vmax.f32 %v3788, %v3791
      %v3793 = vlaneseq
      %v3794 = vshrl.u32 %v3793, 7
      %v3795 = vsub.s32 0, %v3794
      %v3796 = vrot.slane %v3792, %v3795
      %v3797 = vmul.f32 %v3691, %v3796
      %v3798 = vmul.f32 %v3694, %v3796
      %v3799 = vmul.f32 %v3699, %v3796
      %v3800 = vmul.f32 %v3702, %v3796
      %v3801 = vmul.f32 %v3707, %v3796
      %v3802 = vsel %vm2670, %v3797, 0.0
      %3803 = vadd.xlane.f32.xlu0 %v3802
      %v3804 = vpop.xlane.xlu0 %3803
      %v3805 = vsel %vm2670, %v3798, 0.0
      %3806 = vadd.xlane.f32.xlu0 %v3805
      %v3807 = vpop.xlane.xlu0 %3806
      %v3808 = vsel %vm2670, %v3799, 0.0
      %3809 = vadd.xlane.f32.xlu0 %v3808
      %v3810 = vpop.xlane.xlu0 %3809
      %v3811 = vsel %vm2670, %v3800, 0.0
      %3812 = vadd.xlane.f32.xlu0 %v3811
      %v3813 = vpop.xlane.xlu0 %3812
      %v3814 = vsel %vm2670, %v3801, 0.0
      %3815 = vadd.xlane.f32.xlu0 %v3814
      %v3816 = vpop.xlane.xlu0 %3815
      %v3817 = vmul.f32 %v3804, 0.17677669
      %v3818 = vmul.f32 %v3807, 0.17677669
      %v3819 = vmul.f32 %v3810, 0.17677669
      %v3820 = vmul.f32 %v3813, 0.17677669
      %v3821 = vmul.f32 %v3816, 0.17677669
      %v3827 = vlaneseq
      %v3828 = vand.u32 %v3827, 127
      %v3829 = vlaneseq
      %v3830 = vshrl.u32 %v3829, 7
      %v3831 = vsub.s32 %v3828, %v3830
      %v3832 = vrot.slane %v3817, %v3831
      %v3833 = vadd.s32 %v3828, 4294967288
      %v3834 = vlaneseq
      %v3835 = vshrl.u32 %v3834, 7
      %v3836 = vsub.s32 %v3833, %v3835
      %v3837 = vrot.slane %v3818, %v3836
      %vm3838 = vcmask 130112
      %v3839 = vsel %vm3838, %v3837, %v3832
      %v3840 = vadd.s32 %v3828, 4294967280
      %v3841 = vlaneseq
      %v3842 = vshrl.u32 %v3841, 7
      %v3843 = vsub.s32 %v3840, %v3842
      %v3844 = vrot.slane %v3819, %v3843
      %vm3845 = vcmask 195712
      %v3846 = vsel %vm3845, %v3844, %v3839
      %v3847 = vadd.s32 %v3828, 4294967272
      %v3848 = vlaneseq
      %v3849 = vshrl.u32 %v3848, 7
      %v3850 = vsub.s32 %v3847, %v3849
      %v3851 = vrot.slane %v3820, %v3850
      %vm3852 = vcmask 261312
      %v3853 = vsel %vm3852, %v3851, %v3846
      %v3854 = vadd.s32 %v3828, 4294967264
      %v3855 = vlaneseq
      %v3856 = vshrl.u32 %v3855, 7
      %v3857 = vsub.s32 %v3854, %v3856
      %v3858 = vrot.slane %v3821, %v3857
      %vm3859 = vcmask 326912
      %v3860 = vsel %vm3859, %v3858, %v3853
      %vm3862 = vcmask 319488
      %3863 = vst.msk [vmem:[%s396] sm:$0x1] %vm3862, %v3860
      %p3864 = scmp.lt.s32.totalorder %s22, 1
      %s3865 = scalar_select %p3864, %s22, 1
      %s3866 = scalar_lea.vmem %s11, %s3865
      // Predicated region
      $region65: #{single_disc_cond_forward.1} parent=63 // pred_check
        %p3867 = pneg %p281
      $region66: #{single_disc_cond_forward.1} parent=63 // pred_check_branch
        %3869 = sbr.rel (%p3867) target = $region68
      $region67: #{single_disc_cond_forward.1} parent=63 // pred_region
        _
      $region68: #{single_disc_cond_forward.1} parent=63 // pred_fallthru
        _
    $region64: #{single_disc_cond_forward.1} parent=5 // pred_fallthru
      _
    %p3870 = scmp.le.s32.totalorder 2, %s17
    // Predicated region
    $region69: #{single_disc_cond_forward.1} parent=5 // pred_check
      %p3871 = pneg %p3870
    $region70: #{single_disc_cond_forward.1} parent=5 // pred_check_branch
      %3873 = sbr.rel (%p3871) target = $region72
    $region71: #{single_disc_cond_forward.1} parent=5 // pred_region
      %s3874 = ssub.s32 %s17, 2
      // Predicated region
      $region73: #{single_disc_cond_forward.1} parent=71 // pred_check
        %p3875 = pneg %p287
      $region74: #{single_disc_cond_forward.1} parent=71 // pred_check_branch
        %3877 = sbr.rel (%p3875) target = $region76
      $region75: #{single_disc_cond_forward.1} parent=71 // pred_region
        %p3878 = scmp.lt.s32.totalorder %s23, 1
        %s3879 = scalar_select %p3878, %s23, 1
        %s3880 = scalar_lea.vmem %s11, %s3879
      $region76: #{single_disc_cond_forward.1} parent=71 // pred_fallthru
        _
    $region72: #{single_disc_cond_forward.1} parent=5 // pred_fallthru
      _
  $region6: #{single_disc_cond_forward.1} parent=0 // loop_footer
    %s21 = sadd.s32 1, %s17
  $region7: #{single_disc_cond_forward.1} parent=0 // loop_footer_branch
    %16 = sbr.rel target = $region3
  $region8: #{single_disc_cond_forward.1} parent=0 // loop_exit
    _

</llo_original>
